<compile_context>
chip_gen: v7x
topology: tpu7x:2x2x1
jax: 0.10.0
libtpu: 0.0.40
codegen_flags: <defaults>
</compile_context>

<pallas_src>
import math
import functools

import jax
import jax.numpy as jnp
from jax.experimental import pallas as pl
from jax.experimental.pallas import tpu as pltpu

SQRT_HALF = math.sqrt(0.5)


def _round_up(v, m):
    return ((v + m - 1) // m) * m


# --------------------------------------------------------------------------- #
# Kernel: one grid step processes `bb` batch elements (bb*T rows).
# --------------------------------------------------------------------------- #
def convcap_kernel(we0_ref, yb_ref, imf_ref, imft_ref,
                   w_emb1, b_emb1, w_res, b_res,
                   w_convf, b_conv, w_in, b_in, w_out, b_out,
                   w_c0, b_c0, w_c1, b_c1,
                   logits_ref, attn_ref,
                   *, bb, T, nfeats, S, pad):
    R = bb * T
    two_n = 2 * nfeats
    K = w_convf.shape[0] // two_n          # kernel_size

    # ---- emb_1 linear over all bb*T rows at once -----------------------------
    we = jnp.dot(we0_ref[...], w_emb1[...],
                 preferred_element_type=jnp.float32) + b_emb1[...]            # (R, n)

    # ---- x = cat([wordemb, relu(imgproj(fc7))], channel dim) -----------------
    # yb (image projection broadcast over tokens) is precomputed in XLA.
    x = jnp.concatenate([we, yb_ref[...]], axis=1)                            # (R, 2n)

    # ---- layer-0 residual = resproj(x) ----------------------------------------
    residual = jnp.dot(x, w_res[...],
                       preferred_element_type=jnp.float32) + b_res[...]       # (R, n)

    # ---- causal Conv1d(kernel=K, left-pad=K-1) as ONE fused matmul -----------
    # Per-element left zero-pad, K shifted views concatenated along channels,
    # then a single (R, K*2n) x (K*2n, 2n) matmul.
    x3 = x.reshape(bb, T, two_n)
    xpad = jnp.concatenate(
        [jnp.zeros((bb, pad, two_n), jnp.float32), x3], axis=1)               # (bb, T+pad, 2n)
    win = jnp.concatenate([xpad[:, k:k + T, :] for k in range(K)], axis=2)    # (bb, T, K*2n)
    conv = jnp.dot(win.reshape(R, K * two_n), w_convf[...],
                   preferred_element_type=jnp.float32) + b_conv[...]          # (R, 2n)

    # ---- GLU over the channel dimension ---------------------------------------
    g = conv[:, :nfeats] * (1.0 / (1.0 + jnp.exp(-conv[:, nfeats:])))         # (R, n)

    # ---- AttentionLayer --------------------------------------------------------
    p = (jnp.dot(g, w_in[...], preferred_element_type=jnp.float32)
         + b_in[...] + we) * SQRT_HALF                                        # (R, n)
    scores = jnp.einsum('btn,bns->bts', p.reshape(bb, T, nfeats), imf_ref[...],
                        preferred_element_type=jnp.float32)                   # (bb, T, S)
    m = jnp.max(scores, axis=-1, keepdims=True)
    e = jnp.exp(scores - m)
    attn = e / jnp.sum(e, axis=-1, keepdims=True)                             # (bb, T, S)
    ctx = jnp.einsum('bts,bsn->btn', attn, imft_ref[...],
                     preferred_element_type=jnp.float32)                      # (bb, T, n)
    ctx = ctx.reshape(R, nfeats) * (S * math.sqrt(1.0 / S))
    xatt = (jnp.dot(ctx, w_out[...], preferred_element_type=jnp.float32)
            + b_out[...] + g) * SQRT_HALF

    # ---- add conv-block residual ------------------------------------------------
    x1 = (xatt + residual) * SQRT_HALF                                        # (R, n)

    # ---- classifiers (classifier_1 weights are zero-padded to lane-dense V) ----
    h = jnp.dot(x1, w_c0[...], preferred_element_type=jnp.float32) + b_c0[...]
    logits = jnp.dot(h, w_c1[...], preferred_element_type=jnp.float32) + b_c1[...]
    logits_ref[...] = logits.astype(logits_ref.dtype)                         # (R, V_pad)

    # ---- lane-dense attention store (zero lanes sliced off in the wrapper) -----
    attn_flat = attn.reshape(R, S)
    s_pad = attn_ref.shape[-1]
    if s_pad > S:
        attn_flat = jnp.concatenate(
            [attn_flat, jnp.zeros((R, s_pad - S), jnp.float32)], axis=1)
    attn_ref[...] = attn_flat.astype(attn_ref.dtype)


# --------------------------------------------------------------------------- #
# Synthetic parameters matching the torch init distributions.
# Linear weights are stored pre-transposed as (in, out); conv weight as
# (K, Cin, Cout).  weight_norm at init is identity so raw weights are used.
# TODO(synk): if real PyTorch weights are loaded, apply the weight_norm g/v
# reparameterization and transpose weights to (in, out) in the loader.
# --------------------------------------------------------------------------- #
def make_params(key, num_wordclass, nfeats=32, nimgfeats=2048,
                kernel_size=5, dropout=0.1):
    ks = jax.random.split(key, 9)
    n = lambda k, shape, std: jax.random.normal(k, shape, jnp.float32) * std
    z = lambda c: jnp.zeros((1, c), jnp.float32)
    p = {}
    p['emb0'] = n(ks[0], (num_wordclass, nfeats), 0.1).at[0].set(0.0)  # padding_idx=0
    p['w_emb1'] = n(ks[1], (nfeats, nfeats), math.sqrt((1 - dropout) / nfeats))
    p['b_emb1'] = z(nfeats)
    p['w_img'] = n(ks[2], (nimgfeats, nfeats), math.sqrt((1 - dropout) / nimgfeats))
    p['b_img'] = z(nfeats)
    p['w_res'] = n(ks[3], (2 * nfeats, nfeats), math.sqrt((1 - dropout) / (2 * nfeats)))
    p['b_res'] = z(nfeats)
    p['w_conv'] = n(ks[4], (kernel_size, 2 * nfeats, 2 * nfeats),
                    math.sqrt(4 * (1.0 - dropout) / (kernel_size * 2 * nfeats)))
    p['b_conv'] = z(2 * nfeats)
    p['w_in'] = n(ks[5], (nfeats, nfeats), math.sqrt(1.0 / nfeats))
    p['b_in'] = z(nfeats)
    p['w_out'] = n(ks[6], (nfeats, nfeats), math.sqrt(1.0 / nfeats))
    p['b_out'] = z(nfeats)
    p['w_c0'] = n(ks[7], (nfeats, nfeats // 2), math.sqrt(1.0 / nfeats))
    p['b_c0'] = z(nfeats // 2)
    p['w_c1'] = n(ks[8], (nfeats // 2, num_wordclass),
                  math.sqrt((1 - dropout) / (nfeats // 2)))
    p['b_c1'] = z(num_wordclass)
    return p


# --------------------------------------------------------------------------- #
# Wrapper
# --------------------------------------------------------------------------- #
def convcap_forward(params, imgsfeats, imgsfc7, wordclass, *, block_batch=8):
    B, C, fh, fw = imgsfeats.shape
    nfeats = C
    T = wordclass.shape[1]
    S = fh * fw
    V = params['w_c1'].shape[1]
    K = params['w_conv'].shape[0]
    pad = K - 1
    f32 = jnp.float32

    bb = max(1, min(block_batch, B))
    # keep per-step row count sublane-aligned when the grid has >1 step
    if B > bb and (bb * T) % 8 != 0:
        bb = B
    B_pad = _round_up(B, bb)
    V_pad = _round_up(V, 128)
    S_pad = _round_up(S, 128)

    # ---- hoisted XLA prologue --------------------------------------------------
    we0 = jnp.take(params['emb0'], wordclass, axis=0).astype(f32)        # (B, T, n)
    # full-batch imgsfc7 projection at proper MXU occupancy (hoisted from kernel)
    y = jax.nn.relu(imgsfc7.astype(f32) @ params['w_img'] + params['b_img'])  # (B, n)
    yb = jnp.broadcast_to(y[:, None, :], (B, T, nfeats))                 # (B, T, n)
    imf = imgsfeats.reshape(B, C, S).astype(f32)                         # (B, n, S)
    imft = jnp.transpose(imf, (0, 2, 1))                                 # (B, S, n)

    if B_pad != B:  # pad batch so the grid divides evenly (sliced off below)
        pb = B_pad - B
        we0 = jnp.concatenate([we0, jnp.zeros((pb, T, nfeats), f32)], axis=0)
        yb = jnp.concatenate([yb, jnp.zeros((pb, T, nfeats), f32)], axis=0)
        imf = jnp.concatenate([imf, jnp.zeros((pb, C, S), f32)], axis=0)
        imft = jnp.concatenate([imft, jnp.zeros((pb, S, C), f32)], axis=0)

    we0_flat = we0.reshape(B_pad * T, nfeats)
    yb_flat = yb.reshape(B_pad * T, nfeats)

    # fused conv weight and lane-dense (zero-padded) classifier_1
    w_convf = params['w_conv'].reshape(K * 2 * nfeats, 2 * nfeats)
    w_c1p = jnp.zeros((nfeats // 2, V_pad), f32).at[:, :V].set(params['w_c1'])
    b_c1p = jnp.zeros((1, V_pad), f32).at[:, :V].set(params['b_c1'])

    param_arrays = [params['w_emb1'], params['b_emb1'],
                    params['w_res'], params['b_res'],
                    w_convf, params['b_conv'],
                    params['w_in'], params['b_in'],
                    params['w_out'], params['b_out'],
                    params['w_c0'], params['b_c0'],
                    w_c1p, b_c1p]
    param_specs = [pl.BlockSpec(a.shape, lambda b: (0, 0)) for a in param_arrays]

    R_blk = bb * T
    in_specs = [pl.BlockSpec((R_blk, nfeats), lambda b: (b, 0)),         # we0 rows
                pl.BlockSpec((R_blk, nfeats), lambda b: (b, 0)),         # yb rows
                pl.BlockSpec((bb, nfeats, S), lambda b: (b, 0, 0)),      # imgsfeats (n,S)
                pl.BlockSpec((bb, S, nfeats), lambda b: (b, 0, 0)),      # imgsfeats (S,n)
                ] + param_specs
    out_specs = [pl.BlockSpec((R_blk, V_pad), lambda b: (b, 0)),
                 pl.BlockSpec((R_blk, S_pad), lambda b: (b, 0))]

    kernel = functools.partial(convcap_kernel, bb=bb, T=T, nfeats=nfeats,
                               S=S, pad=pad)

    logits_full, attn_full = pl.pallas_call(
        kernel,
        out_shape=(jax.ShapeDtypeStruct((B_pad * T, V_pad), f32),
                   jax.ShapeDtypeStruct((B_pad * T, S_pad), f32)),
        grid_spec=pltpu.PrefetchScalarGridSpec(
            num_scalar_prefetch=0,
            grid=(B_pad // bb,),
            in_specs=in_specs,
            out_specs=out_specs),
        compiler_params=pltpu.CompilerParams(
            dimension_semantics=("parallel",)),
    )(we0_flat, yb_flat, imf, imft, *param_arrays)

    logits = logits_full[:B * T, :V].reshape(B, T, V)
    attn = attn_full[:B * T, :S].reshape(B, T, S)
    # PyTorch output convention: logits (B, num_wordclass, T), attn (B, T, S)
    return jnp.transpose(logits, (0, 2, 1)), attn


# --------------------------------------------------------------------------- #
# Pure-JAX reference of the PyTorch forward (for a correctness check).
# --------------------------------------------------------------------------- #
def convcap_reference(params, imgsfeats, imgsfc7, wordclass):
    B, C, fh, fw = imgsfeats.shape
    n = C
    T = wordclass.shape[1]
    S = fh * fw
    K = params['w_conv'].shape[0]
    pad = K - 1
    we0 = jnp.take(params['emb0'], wordclass, axis=0)
    we = we0 @ params['w_emb1'] + params['b_emb1']                        # (B, T, n)
    y = jax.nn.relu(imgsfc7 @ params['w_img'] + params['b_img'])          # (B, n)
    x = jnp.concatenate([we, jnp.broadcast_to(y[:, None, :], (B, T, n))], axis=-1)
    residual = x @ params['w_res'] + params['b_res']
    xpad = jnp.concatenate([jnp.zeros((B, pad, 2 * n), jnp.float32), x], axis=1)
    conv = params['b_conv'] + sum(
        jnp.einsum('btc,cd->btd', xpad[:, k:k + T, :], params['w_conv'][k])
        for k in range(K))
    g = conv[..., :n] * jax.nn.sigmoid(conv[..., n:])
    p = (g @ params['w_in'] + params['b_in'] + we) * SQRT_HALF
    imf = imgsfeats.reshape(B, n, S)
    attn = jax.nn.softmax(jnp.einsum('btn,bns->bts', p, imf), axis=-1)
    ctx = jnp.einsum('bts,bsn->btn', attn,
                     jnp.transpose(imf, (0, 2, 1))) * (S * math.sqrt(1.0 / S))
    xatt = (ctx @ params['w_out'] + params['b_out'] + g) * SQRT_HALF
    x1 = (xatt + residual) * SQRT_HALF
    h = x1 @ params['w_c0'] + params['b_c0']
    out = h @ params['w_c1'] + params['b_c1']
    return jnp.transpose(out, (0, 2, 1)), attn


if __name__ == "__main__":
    key = jax.random.PRNGKey(0)
    B, T, nfeats, V, fh, fw = 16, 8, 32, 48, 4, 4
    nimgfeats = 2048  # fixed by the module (self.nimgfeats = 2048)

    k1, k2, k3, kp = jax.random.split(key, 4)
    imgsfeats = jax.random.normal(k1, (B, nfeats, fh, fw), jnp.float32)
    imgsfc7 = jax.random.normal(k2, (B, nimgfeats), jnp.float32)
    wordclass = jax.random.randint(k3, (B, T), 0, V, dtype=jnp.int32)

    params = make_params(kp, V, nfeats=nfeats, nimgfeats=nimgfeats)

    logits, attn = convcap_forward(params, imgsfeats, imgsfc7, wordclass)
    jax.block_until_ready((logits, attn))

    assert logits.shape == (B, V, T), logits.shape
    assert attn.shape == (B, T, fh * fw), attn.shape
    assert bool(jnp.all(jnp.isfinite(logits))) and bool(jnp.all(jnp.isfinite(attn)))
    # attention rows are softmax-normalized
    assert bool(jnp.allclose(jnp.sum(attn, axis=-1), 1.0, atol=1e-5))

    # compare against a pure-JAX reference (tolerance covers default MXU precision)
    ref_logits, ref_attn = convcap_reference(params, imgsfeats, imgsfc7, wordclass)
    assert bool(jnp.allclose(logits, ref_logits, atol=3e-2, rtol=3e-2)), \
        float(jnp.max(jnp.abs(logits - ref_logits)))
    assert bool(jnp.allclose(attn, ref_attn, atol=3e-2, rtol=3e-2)), \
        float(jnp.max(jnp.abs(attn - ref_attn)))

    print("KERNEL_OK")
</pallas_src>

<mosaic_0001>
module attributes {stable_mosaic.version = 11 : i64} {
  func.func @convcap_kernel(%arg0: i32, %arg1: memref<64x32xf32, #tpu.memory_space<vmem>>, %arg2: memref<64x32xf32, #tpu.memory_space<vmem>>, %arg3: memref<8x32x16xf32, #tpu.memory_space<vmem>>, %arg4: memref<8x16x32xf32, #tpu.memory_space<vmem>>, %arg5: memref<32x32xf32, #tpu.memory_space<vmem>>, %arg6: memref<1x32xf32, #tpu.memory_space<vmem>>, %arg7: memref<64x32xf32, #tpu.memory_space<vmem>>, %arg8: memref<1x32xf32, #tpu.memory_space<vmem>>, %arg9: memref<320x64xf32, #tpu.memory_space<vmem>>, %arg10: memref<1x64xf32, #tpu.memory_space<vmem>>, %arg11: memref<32x32xf32, #tpu.memory_space<vmem>>, %arg12: memref<1x32xf32, #tpu.memory_space<vmem>>, %arg13: memref<32x32xf32, #tpu.memory_space<vmem>>, %arg14: memref<1x32xf32, #tpu.memory_space<vmem>>, %arg15: memref<32x16xf32, #tpu.memory_space<vmem>>, %arg16: memref<1x16xf32, #tpu.memory_space<vmem>>, %arg17: memref<16x128xf32, #tpu.memory_space<vmem>>, %arg18: memref<1x128xf32, #tpu.memory_space<vmem>>, %arg19: memref<64x128xf32, #tpu.memory_space<vmem>>, %arg20: memref<64x128xf32, #tpu.memory_space<vmem>>) attributes {dimension_semantics = [#tpu.dimension_semantics<parallel>], iteration_bounds = array<i64: 2>, scalar_prefetch = 0 : i64, scratch_operands = 0 : i64, tpu.core_type = #tpu.core_type<tc>, window_params = [{transform_indices = @transform_0, window_bounds = array<i64: 64, 32>}, {transform_indices = @transform_1, window_bounds = array<i64: 64, 32>}, {transform_indices = @transform_2, window_bounds = array<i64: 8, 32, 16>}, {transform_indices = @transform_3, window_bounds = array<i64: 8, 16, 32>}, {pipeline_mode = #tpu.pipeline_mode<synchronous>, transform_indices = @transform_4, window_bounds = array<i64: 32, 32>}, {pipeline_mode = #tpu.pipeline_mode<synchronous>, transform_indices = @transform_5, window_bounds = array<i64: 1, 32>}, {pipeline_mode = #tpu.pipeline_mode<synchronous>, transform_indices = @transform_6, window_bounds = array<i64: 64, 32>}, {pipeline_mode = #tpu.pipeline_mode<synchronous>, transform_indices = @transform_7, window_bounds = array<i64: 1, 32>}, {pipeline_mode = #tpu.pipeline_mode<synchronous>, transform_indices = @transform_8, window_bounds = array<i64: 320, 64>}, {pipeline_mode = #tpu.pipeline_mode<synchronous>, transform_indices = @transform_9, window_bounds = array<i64: 1, 64>}, {pipeline_mode = #tpu.pipeline_mode<synchronous>, transform_indices = @transform_10, window_bounds = array<i64: 32, 32>}, {pipeline_mode = #tpu.pipeline_mode<synchronous>, transform_indices = @transform_11, window_bounds = array<i64: 1, 32>}, {pipeline_mode = #tpu.pipeline_mode<synchronous>, transform_indices = @transform_12, window_bounds = array<i64: 32, 32>}, {pipeline_mode = #tpu.pipeline_mode<synchronous>, transform_indices = @transform_13, window_bounds = array<i64: 1, 32>}, {pipeline_mode = #tpu.pipeline_mode<synchronous>, transform_indices = @transform_14, window_bounds = array<i64: 32, 16>}, {pipeline_mode = #tpu.pipeline_mode<synchronous>, transform_indices = @transform_15, window_bounds = array<i64: 1, 16>}, {pipeline_mode = #tpu.pipeline_mode<synchronous>, transform_indices = @transform_16, window_bounds = array<i64: 16, 128>}, {pipeline_mode = #tpu.pipeline_mode<synchronous>, transform_indices = @transform_17, window_bounds = array<i64: 1, 128>}, {transform_indices = @transform_18, window_bounds = array<i64: 64, 128>}, {transform_indices = @transform_19, window_bounds = array<i64: 64, 128>}]} {
    %c0 = arith.constant 0 : index
    %c0_0 = arith.constant 0 : index
    %0 = vector.load %arg1[%c0, %c0_0] : memref<64x32xf32, #tpu.memory_space<vmem>>, vector<64x32xf32>
    %c0_1 = arith.constant 0 : index
    %c0_2 = arith.constant 0 : index
    %1 = vector.load %arg5[%c0_1, %c0_2] : memref<32x32xf32, #tpu.memory_space<vmem>>, vector<32x32xf32>
    %cst = arith.constant dense<0.000000e+00> : vector<64x32xf32>
    %2 = tpu.matmul %0, %1, %cst {dimension_numbers = #tpu.dot_dimension_numbers<[1], [0], [0], [1], [0, 0, 1, 1], [], []>} : vector<64x32xf32>, vector<32x32xf32>, vector<64x32xf32> -> vector<64x32xf32>
    %c0_3 = arith.constant 0 : index
    %c0_4 = arith.constant 0 : index
    %3 = vector.load %arg6[%c0_3, %c0_4] : memref<1x32xf32, #tpu.memory_space<vmem>>, vector<1x32xf32>
    %4 = vector.broadcast %3 : vector<1x32xf32> to vector<64x32xf32>
    %5 = arith.addf %2, %4 : vector<64x32xf32>
    %c0_5 = arith.constant 0 : index
    %c0_6 = arith.constant 0 : index
    %6 = vector.load %arg2[%c0_5, %c0_6] : memref<64x32xf32, #tpu.memory_space<vmem>>, vector<64x32xf32>
    %7 = tpu.concatenate %5, %6 in 1 : vector<64x32xf32>, vector<64x32xf32> -> vector<64x64xf32>
    %c0_7 = arith.constant 0 : index
    %c0_8 = arith.constant 0 : index
    %8 = vector.load %arg7[%c0_7, %c0_8] : memref<64x32xf32, #tpu.memory_space<vmem>>, vector<64x32xf32>
    %cst_9 = arith.constant dense<0.000000e+00> : vector<64x32xf32>
    %9 = tpu.matmul %7, %8, %cst_9 {dimension_numbers = #tpu.dot_dimension_numbers<[1], [0], [0], [1], [0, 0, 1, 1], [], []>} : vector<64x64xf32>, vector<64x32xf32>, vector<64x32xf32> -> vector<64x32xf32>
    %c0_10 = arith.constant 0 : index
    %c0_11 = arith.constant 0 : index
    %10 = vector.load %arg8[%c0_10, %c0_11] : memref<1x32xf32, #tpu.memory_space<vmem>>, vector<1x32xf32>
    %11 = vector.broadcast %10 : vector<1x32xf32> to vector<64x32xf32>
    %12 = arith.addf %9, %11 : vector<64x32xf32>
    %13 = vector.shape_cast %7 : vector<64x64xf32> to vector<8x8x64xf32>
    %cst_12 = arith.constant 0.000000e+00 : f32
    %14 = vector.broadcast %cst_12 : f32 to vector<8x4x64xf32>
    %15 = tpu.concatenate %14, %13 in 1 : vector<8x4x64xf32>, vector<8x8x64xf32> -> vector<8x12x64xf32>
    %16 = vector.extract_strided_slice %15 {offsets = [0, 0, 0], sizes = [8, 8, 64], strides = [1, 1, 1]} : vector<8x12x64xf32> to vector<8x8x64xf32>
    %17 = vector.extract_strided_slice %15 {offsets = [0, 1, 0], sizes = [8, 8, 64], strides = [1, 1, 1]} : vector<8x12x64xf32> to vector<8x8x64xf32>
    %18 = vector.extract_strided_slice %15 {offsets = [0, 2, 0], sizes = [8, 8, 64], strides = [1, 1, 1]} : vector<8x12x64xf32> to vector<8x8x64xf32>
    %19 = vector.extract_strided_slice %15 {offsets = [0, 3, 0], sizes = [8, 8, 64], strides = [1, 1, 1]} : vector<8x12x64xf32> to vector<8x8x64xf32>
    %20 = vector.extract_strided_slice %15 {offsets = [0, 4, 0], sizes = [8, 8, 64], strides = [1, 1, 1]} : vector<8x12x64xf32> to vector<8x8x64xf32>
    %21 = tpu.concatenate %16, %17, %18, %19, %20 in 2 : vector<8x8x64xf32>, vector<8x8x64xf32>, vector<8x8x64xf32>, vector<8x8x64xf32>, vector<8x8x64xf32> -> vector<8x8x320xf32>
    %22 = vector.shape_cast %21 : vector<8x8x320xf32> to vector<64x320xf32>
    %c0_13 = arith.constant 0 : index
    %c0_14 = arith.constant 0 : index
    %23 = vector.load %arg9[%c0_13, %c0_14] : memref<320x64xf32, #tpu.memory_space<vmem>>, vector<320x64xf32>
    %cst_15 = arith.constant dense<0.000000e+00> : vector<64x64xf32>
    %24 = tpu.matmul %22, %23, %cst_15 {dimension_numbers = #tpu.dot_dimension_numbers<[1], [0], [0], [1], [0, 0, 1, 1], [], []>} : vector<64x320xf32>, vector<320x64xf32>, vector<64x64xf32> -> vector<64x64xf32>
    %c0_16 = arith.constant 0 : index
    %c0_17 = arith.constant 0 : index
    %25 = vector.load %arg10[%c0_16, %c0_17] : memref<1x64xf32, #tpu.memory_space<vmem>>, vector<1x64xf32>
    %26 = vector.broadcast %25 : vector<1x64xf32> to vector<64x64xf32>
    %27 = arith.addf %24, %26 : vector<64x64xf32>
    %28 = vector.extract_strided_slice %27 {offsets = [0, 0], sizes = [64, 32], strides = [1, 1]} : vector<64x64xf32> to vector<64x32xf32>
    %29 = vector.extract_strided_slice %27 {offsets = [0, 32], sizes = [64, 32], strides = [1, 1]} : vector<64x64xf32> to vector<64x32xf32>
    %cst_18 = arith.constant 0.000000e+00 : f32
    %30 = vector.broadcast %cst_18 : f32 to vector<64x32xf32>
    %31 = arith.subf %30, %29 : vector<64x32xf32>
    %32 = math.exp %31 : vector<64x32xf32>
    %cst_19 = arith.constant 1.000000e+00 : f32
    %33 = vector.broadcast %cst_19 : f32 to vector<64x32xf32>
    %34 = arith.addf %33, %32 : vector<64x32xf32>
    %cst_20 = arith.constant 1.000000e+00 : f32
    %35 = vector.broadcast %cst_20 : f32 to vector<64x32xf32>
    %36 = arith.divf %35, %34 : vector<64x32xf32>
    %37 = arith.mulf %28, %36 : vector<64x32xf32>
    %c0_21 = arith.constant 0 : index
    %c0_22 = arith.constant 0 : index
    %38 = vector.load %arg11[%c0_21, %c0_22] : memref<32x32xf32, #tpu.memory_space<vmem>>, vector<32x32xf32>
    %cst_23 = arith.constant dense<0.000000e+00> : vector<64x32xf32>
    %39 = tpu.matmul %37, %38, %cst_23 {dimension_numbers = #tpu.dot_dimension_numbers<[1], [0], [0], [1], [0, 0, 1, 1], [], []>} : vector<64x32xf32>, vector<32x32xf32>, vector<64x32xf32> -> vector<64x32xf32>
    %c0_24 = arith.constant 0 : index
    %c0_25 = arith.constant 0 : index
    %40 = vector.load %arg12[%c0_24, %c0_25] : memref<1x32xf32, #tpu.memory_space<vmem>>, vector<1x32xf32>
    %41 = vector.broadcast %40 : vector<1x32xf32> to vector<64x32xf32>
    %42 = arith.addf %39, %41 : vector<64x32xf32>
    %43 = arith.addf %42, %5 : vector<64x32xf32>
    %cst_26 = arith.constant 0.707106769 : f32
    %44 = vector.broadcast %cst_26 : f32 to vector<64x32xf32>
    %45 = arith.mulf %43, %44 : vector<64x32xf32>
    %46 = vector.shape_cast %45 : vector<64x32xf32> to vector<8x8x32xf32>
    %c0_27 = arith.constant 0 : index
    %c0_28 = arith.constant 0 : index
    %c0_29 = arith.constant 0 : index
    %47 = vector.load %arg3[%c0_27, %c0_28, %c0_29] : memref<8x32x16xf32, #tpu.memory_space<vmem>>, vector<8x32x16xf32>
    "tpu.trace_start"() <{level = 10 : i32, message = "btn,bns->bts"}> : () -> ()
    %cst_30 = arith.constant dense<0.000000e+00> : vector<8x8x16xf32>
    %48 = tpu.matmul %46, %47, %cst_30 {dimension_numbers = #tpu.dot_dimension_numbers<[2], [1], [1], [2], [0, 0, 0, 1, 1, 2], [0], [0]>} : vector<8x8x32xf32>, vector<8x32x16xf32>, vector<8x8x16xf32> -> vector<8x8x16xf32>
    "tpu.trace_stop"() : () -> ()
    %cst_31 = arith.constant dense<0xFF800000> : vector<8x8xf32>
    %49 = vector.multi_reduction <maximumf>, %48, %cst_31 [2] : vector<8x8x16xf32> to vector<8x8xf32>
    %50 = vector.shape_cast %49 : vector<8x8xf32> to vector<8x8x1xf32>
    %51 = vector.broadcast %50 : vector<8x8x1xf32> to vector<8x8x16xf32>
    %52 = arith.subf %48, %51 : vector<8x8x16xf32>
    %53 = math.exp %52 : vector<8x8x16xf32>
    %cst_32 = arith.constant dense<0.000000e+00> : vector<8x8xf32>
    %54 = vector.multi_reduction <add>, %53, %cst_32 [2] : vector<8x8x16xf32> to vector<8x8xf32>
    %55 = vector.shape_cast %54 : vector<8x8xf32> to vector<8x8x1xf32>
    %56 = vector.broadcast %55 : vector<8x8x1xf32> to vector<8x8x16xf32>
    %57 = arith.divf %53, %56 : vector<8x8x16xf32>
    %c0_33 = arith.constant 0 : index
    %c0_34 = arith.constant 0 : index
    %c0_35 = arith.constant 0 : index
    %58 = vector.load %arg4[%c0_33, %c0_34, %c0_35] : memref<8x16x32xf32, #tpu.memory_space<vmem>>, vector<8x16x32xf32>
    "tpu.trace_start"() <{level = 10 : i32, message = "bts,bsn->btn"}> : () -> ()
    %cst_36 = arith.constant dense<0.000000e+00> : vector<8x8x32xf32>
    %59 = tpu.matmul %57, %58, %cst_36 {dimension_numbers = #tpu.dot_dimension_numbers<[2], [1], [1], [2], [0, 0, 0, 1, 1, 2], [0], [0]>} : vector<8x8x16xf32>, vector<8x16x32xf32>, vector<8x8x32xf32> -> vector<8x8x32xf32>
    "tpu.trace_stop"() : () -> ()
    %60 = vector.shape_cast %59 : vector<8x8x32xf32> to vector<64x32xf32>
    %cst_37 = arith.constant 4.000000e+00 : f32
    %61 = vector.broadcast %cst_37 : f32 to vector<64x32xf32>
    %62 = arith.mulf %60, %61 : vector<64x32xf32>
    %c0_38 = arith.constant 0 : index
    %c0_39 = arith.constant 0 : index
    %63 = vector.load %arg13[%c0_38, %c0_39] : memref<32x32xf32, #tpu.memory_space<vmem>>, vector<32x32xf32>
    %cst_40 = arith.constant dense<0.000000e+00> : vector<64x32xf32>
    %64 = tpu.matmul %62, %63, %cst_40 {dimension_numbers = #tpu.dot_dimension_numbers<[1], [0], [0], [1], [0, 0, 1, 1], [], []>} : vector<64x32xf32>, vector<32x32xf32>, vector<64x32xf32> -> vector<64x32xf32>
    %c0_41 = arith.constant 0 : index
    %c0_42 = arith.constant 0 : index
    %65 = vector.load %arg14[%c0_41, %c0_42] : memref<1x32xf32, #tpu.memory_space<vmem>>, vector<1x32xf32>
    %66 = vector.broadcast %65 : vector<1x32xf32> to vector<64x32xf32>
    %67 = arith.addf %64, %66 : vector<64x32xf32>
    %68 = arith.addf %67, %37 : vector<64x32xf32>
    %cst_43 = arith.constant 0.707106769 : f32
    %69 = vector.broadcast %cst_43 : f32 to vector<64x32xf32>
    %70 = arith.mulf %68, %69 : vector<64x32xf32>
    %71 = arith.addf %70, %12 : vector<64x32xf32>
    %cst_44 = arith.constant 0.707106769 : f32
    %72 = vector.broadcast %cst_44 : f32 to vector<64x32xf32>
    %73 = arith.mulf %71, %72 : vector<64x32xf32>
    %c0_45 = arith.constant 0 : index
    %c0_46 = arith.constant 0 : index
    %74 = vector.load %arg15[%c0_45, %c0_46] : memref<32x16xf32, #tpu.memory_space<vmem>>, vector<32x16xf32>
    %cst_47 = arith.constant dense<0.000000e+00> : vector<64x16xf32>
    %75 = tpu.matmul %73, %74, %cst_47 {dimension_numbers = #tpu.dot_dimension_numbers<[1], [0], [0], [1], [0, 0, 1, 1], [], []>} : vector<64x32xf32>, vector<32x16xf32>, vector<64x16xf32> -> vector<64x16xf32>
    %c0_48 = arith.constant 0 : index
    %c0_49 = arith.constant 0 : index
    %76 = vector.load %arg16[%c0_48, %c0_49] : memref<1x16xf32, #tpu.memory_space<vmem>>, vector<1x16xf32>
    %77 = vector.broadcast %76 : vector<1x16xf32> to vector<64x16xf32>
    %78 = arith.addf %75, %77 : vector<64x16xf32>
    %c0_50 = arith.constant 0 : index
    %c0_51 = arith.constant 0 : index
    %79 = vector.load %arg17[%c0_50, %c0_51] : memref<16x128xf32, #tpu.memory_space<vmem>>, vector<16x128xf32>
    %cst_52 = arith.constant dense<0.000000e+00> : vector<64x128xf32>
    %80 = tpu.matmul %78, %79, %cst_52 {dimension_numbers = #tpu.dot_dimension_numbers<[1], [0], [0], [1], [0, 0, 1, 1], [], []>} : vector<64x16xf32>, vector<16x128xf32>, vector<64x128xf32> -> vector<64x128xf32>
    %c0_53 = arith.constant 0 : index
    %c0_54 = arith.constant 0 : index
    %81 = vector.load %arg18[%c0_53, %c0_54] : memref<1x128xf32, #tpu.memory_space<vmem>>, vector<1x128xf32>
    %82 = vector.broadcast %81 : vector<1x128xf32> to vector<64x128xf32>
    %83 = arith.addf %80, %82 : vector<64x128xf32>
    %c0_55 = arith.constant 0 : index
    %c0_56 = arith.constant 0 : index
    %84 = vector.load %arg19[%c0_55, %c0_56] : memref<64x128xf32, #tpu.memory_space<vmem>>, vector<64x128xf32>
    tpu.vector_store %arg19[%c0_55, %c0_56], %83 {strides = array<i32>} : memref<64x128xf32, #tpu.memory_space<vmem>>, vector<64x128xf32>,
    %85 = vector.shape_cast %57 : vector<8x8x16xf32> to vector<64x16xf32>
    %cst_57 = arith.constant 0.000000e+00 : f32
    %86 = vector.broadcast %cst_57 : f32 to vector<64x112xf32>
    %87 = tpu.concatenate %85, %86 in 1 : vector<64x16xf32>, vector<64x112xf32> -> vector<64x128xf32>
    %c0_58 = arith.constant 0 : index
    %c0_59 = arith.constant 0 : index
    %88 = vector.load %arg20[%c0_58, %c0_59] : memref<64x128xf32, #tpu.memory_space<vmem>>, vector<64x128xf32>
    tpu.vector_store %arg20[%c0_58, %c0_59], %87 {strides = array<i32>} : memref<64x128xf32, #tpu.memory_space<vmem>>, vector<64x128xf32>,
    return
  }
  func.func @transform_0(%arg0: i32) -> (i32, i32) {
    %c0_i32 = arith.constant 0 : i32
    %c0_i32_0 = arith.constant 0 : i32
    return %arg0, %c0_i32 : i32, i32
  }
  func.func @transform_1(%arg0: i32) -> (i32, i32) {
    %c0_i32 = arith.constant 0 : i32
    %c0_i32_0 = arith.constant 0 : i32
    return %arg0, %c0_i32 : i32, i32
  }
  func.func @transform_2(%arg0: i32) -> (i32, i32, i32) {
    %c0_i32 = arith.constant 0 : i32
    %c0_i32_0 = arith.constant 0 : i32
    %c0_i32_1 = arith.constant 0 : i32
    return %arg0, %c0_i32, %c0_i32_0 : i32, i32, i32
  }
  func.func @transform_3(%arg0: i32) -> (i32, i32, i32) {
    %c0_i32 = arith.constant 0 : i32
    %c0_i32_0 = arith.constant 0 : i32
    %c0_i32_1 = arith.constant 0 : i32
    return %arg0, %c0_i32, %c0_i32_0 : i32, i32, i32
  }
  func.func @transform_4(%arg0: i32) -> (i32, i32) {
    %c0_i32 = arith.constant 0 : i32
    %c0_i32_0 = arith.constant 0 : i32
    %c0_i32_1 = arith.constant 0 : i32
    return %c0_i32, %c0_i32_0 : i32, i32
  }
  func.func @transform_5(%arg0: i32) -> (i32, i32) {
    %c0_i32 = arith.constant 0 : i32
    %c0_i32_0 = arith.constant 0 : i32
    %c0_i32_1 = arith.constant 0 : i32
    return %c0_i32, %c0_i32_0 : i32, i32
  }
  func.func @transform_6(%arg0: i32) -> (i32, i32) {
    %c0_i32 = arith.constant 0 : i32
    %c0_i32_0 = arith.constant 0 : i32
    %c0_i32_1 = arith.constant 0 : i32
    return %c0_i32, %c0_i32_0 : i32, i32
  }
  func.func @transform_7(%arg0: i32) -> (i32, i32) {
    %c0_i32 = arith.constant 0 : i32
    %c0_i32_0 = arith.constant 0 : i32
    %c0_i32_1 = arith.constant 0 : i32
    return %c0_i32, %c0_i32_0 : i32, i32
  }
  func.func @transform_8(%arg0: i32) -> (i32, i32) {
    %c0_i32 = arith.constant 0 : i32
    %c0_i32_0 = arith.constant 0 : i32
    %c0_i32_1 = arith.constant 0 : i32
    return %c0_i32, %c0_i32_0 : i32, i32
  }
  func.func @transform_9(%arg0: i32) -> (i32, i32) {
    %c0_i32 = arith.constant 0 : i32
    %c0_i32_0 = arith.constant 0 : i32
    %c0_i32_1 = arith.constant 0 : i32
    return %c0_i32, %c0_i32_0 : i32, i32
  }
  func.func @transform_10(%arg0: i32) -> (i32, i32) {
    %c0_i32 = arith.constant 0 : i32
    %c0_i32_0 = arith.constant 0 : i32
    %c0_i32_1 = arith.constant 0 : i32
    return %c0_i32, %c0_i32_0 : i32, i32
  }
  func.func @transform_11(%arg0: i32) -> (i32, i32) {
    %c0_i32 = arith.constant 0 : i32
    %c0_i32_0 = arith.constant 0 : i32
    %c0_i32_1 = arith.constant 0 : i32
    return %c0_i32, %c0_i32_0 : i32, i32
  }
  func.func @transform_12(%arg0: i32) -> (i32, i32) {
    %c0_i32 = arith.constant 0 : i32
    %c0_i32_0 = arith.constant 0 : i32
    %c0_i32_1 = arith.constant 0 : i32
    return %c0_i32, %c0_i32_0 : i32, i32
  }
  func.func @transform_13(%arg0: i32) -> (i32, i32) {
    %c0_i32 = arith.constant 0 : i32
    %c0_i32_0 = arith.constant 0 : i32
    %c0_i32_1 = arith.constant 0 : i32
    return %c0_i32, %c0_i32_0 : i32, i32
  }
  func.func @transform_14(%arg0: i32) -> (i32, i32) {
    %c0_i32 = arith.constant 0 : i32
    %c0_i32_0 = arith.constant 0 : i32
    %c0_i32_1 = arith.constant 0 : i32
    return %c0_i32, %c0_i32_0 : i32, i32
  }
  func.func @transform_15(%arg0: i32) -> (i32, i32) {
    %c0_i32 = arith.constant 0 : i32
    %c0_i32_0 = arith.constant 0 : i32
    %c0_i32_1 = arith.constant 0 : i32
    return %c0_i32, %c0_i32_0 : i32, i32
  }
  func.func @transform_16(%arg0: i32) -> (i32, i32) {
    %c0_i32 = arith.constant 0 : i32
    %c0_i32_0 = arith.constant 0 : i32
    %c0_i32_1 = arith.constant 0 : i32
    return %c0_i32, %c0_i32_0 : i32, i32
  }
  func.func @transform_17(%arg0: i32) -> (i32, i32) {
    %c0_i32 = arith.constant 0 : i32
    %c0_i32_0 = arith.constant 0 : i32
    %c0_i32_1 = arith.constant 0 : i32
    return %c0_i32, %c0_i32_0 : i32, i32
  }
  func.func @transform_18(%arg0: i32) -> (i32, i32) {
    %c0_i32 = arith.constant 0 : i32
    %c0_i32_0 = arith.constant 0 : i32
    return %arg0, %c0_i32 : i32, i32
  }
  func.func @transform_19(%arg0: i32) -> (i32, i32) {
    %c0_i32 = arith.constant 0 : i32
    %c0_i32_0 = arith.constant 0 : i32
    return %arg0, %c0_i32 : i32, i32
  }
}

</mosaic_0001>

<llo_original>
// kernel: tpu_custom_call.1
$region0: #{tpu_custom_call.1}
  #allocation0 [shape = 'u32[]', space=smem, size = 0x4, offset = 0x4, fixed_abs, tag = 'smem constant byte address 0x4 - core index']
  #allocation1 [shape = 'u32[144,128]{1,0:T(1,128)}', space=vmem, size = 0x12000, scoped, tag = 'internal scratch']
  %s0 = inlined_call_operand.vmem [shape: f32[128,32], index: 0, kind: input, shape index: {}]
  %s1 = inlined_call_operand.vmem [shape: f32[128,32], index: 1, kind: input, shape index: {}]
  %s2 = inlined_call_operand.vmem [shape: f32[16,32,16], index: 2, kind: input, shape index: {}]
  %s3 = inlined_call_operand.vmem [shape: f32[16,16,32], index: 3, kind: input, shape index: {}]
  %s4 = inlined_call_operand.vmem [shape: f32[32,32], index: 4, kind: input, shape index: {}]
  %s5 = inlined_call_operand.vmem [shape: f32[1,32], index: 5, kind: input, shape index: {}]
  %s6 = inlined_call_operand.vmem [shape: f32[64,32], index: 6, kind: input, shape index: {}]
  %s7 = inlined_call_operand.vmem [shape: f32[1,32], index: 7, kind: input, shape index: {}]
  %s8 = inlined_call_operand.vmem [shape: f32[320,64], index: 8, kind: input, shape index: {}]
  %s9 = inlined_call_operand.vmem [shape: f32[1,64], index: 9, kind: input, shape index: {}]
  %s10 = inlined_call_operand.vmem [shape: f32[32,32], index: 10, kind: input, shape index: {}]
  %s11 = inlined_call_operand.vmem [shape: f32[1,32], index: 11, kind: input, shape index: {}]
  %s12 = inlined_call_operand.vmem [shape: f32[32,32], index: 12, kind: input, shape index: {}]
  %s13 = inlined_call_operand.vmem [shape: f32[1,32], index: 13, kind: input, shape index: {}]
  %s14 = inlined_call_operand.vmem [shape: f32[32,16], index: 14, kind: input, shape index: {}]
  %s15 = inlined_call_operand.vmem [shape: f32[1,16], index: 15, kind: input, shape index: {}]
  %s16 = inlined_call_operand.vmem [shape: f32[16,128], index: 16, kind: input, shape index: {}]
  %s17 = inlined_call_operand.vmem [shape: f32[1,128], index: 17, kind: input, shape index: {}]
  %s18 = inlined_call_operand.hbm [shape: f32[128,128], index: 18, kind: output, shape index: {0}]
  %s19 = inlined_call_operand.hbm [shape: f32[128,128], index: 19, kind: output, shape index: {1}]
  %20 = xla_tuple %s18, %s19
  %s21 = sld [smem:[#allocation0]]
  $region113: #{tpu_custom_call.1} parent=0
    _
  %s23 = ssub.s32 1, %s21
  %s24 = scalar_select 0, %s23, %s21
  $region1: #{tpu_custom_call.1} parent=0
    #allocation2 [shape = 'u8[65536]{0}', space=vmem, size = 0x10000, scoped, tag = 'output window, operand 0']
    #allocation3 [shape = 's32[2]{0}', space=sflag, size = 0x8, scoped, tag = 'scoped memory for tpu_custom_call.1']
    #allocation4 [shape = 'u8[65536]{0}', space=vmem, size = 0x10000, scoped, tag = 'output window, operand 1']
    #allocation5 [shape = 's32[2]{0}', space=sflag, size = 0x8, scoped, tag = 'scoped memory for tpu_custom_call.1']
    %25 = vsyncpa [#allocation3], 0
    %s26 = scalar_lea.sflag [#allocation3], 1
    %27 = vsyncpa %s26, 0
    %28 = vsyncpa [#allocation5], 0
    %s29 = scalar_lea.sflag [#allocation5], 1
    %30 = vsyncpa %s29, 0
    loop: start=0, step=1, limit=4
    $region2: #{tpu_custom_call.1} parent=1 // loop_pre_header
      _
    $region3: #{tpu_custom_call.1} parent=1 // loop_header
      %s32 = sphi 0, %s36
      %p33 = scmp.ge.s32.totalorder %s32, 4
      %s42 = sphi 0, %s44
      %s45 = sphi 0, %s42
      %s46 = sphi 0, %s45
      %s62 = sphi 0, %s46
      %s68 = sphi 0, %s70
      %s71 = sphi 0, %s68
      %s72 = sphi 0, %s71
      %s88 = sphi 0, %s72
      %s94 = sphi 0, %s96
      %s97 = sphi 0, %s94
      %s98 = sphi 0, %s97
      %s114 = sphi 0, %s98
      %s120 = sphi 0, %s122
      %s123 = sphi 0, %s120
      %s124 = sphi 0, %s123
      %s140 = sphi 0, %s124
      %s144 = sphi 0, %s144
      %s146 = sphi 0, %s144
      %s147 = sphi 0, %s146
      %s161 = sphi 0, %s147
      %s165 = sphi 0, %s165
      %s167 = sphi 0, %s165
      %s168 = sphi 0, %s167
      %s182 = sphi 0, %s168
      %s186 = sphi 0, %s186
      %s188 = sphi 0, %s186
      %s189 = sphi 0, %s188
      %s203 = sphi 0, %s189
      %s207 = sphi 0, %s207
      %s209 = sphi 0, %s207
      %s210 = sphi 0, %s209
      %s224 = sphi 0, %s210
      %s228 = sphi 0, %s228
      %s230 = sphi 0, %s228
      %s231 = sphi 0, %s230
      %s245 = sphi 0, %s231
      %s249 = sphi 0, %s249
      %s251 = sphi 0, %s249
      %s252 = sphi 0, %s251
      %s266 = sphi 0, %s252
      %s270 = sphi 0, %s270
      %s272 = sphi 0, %s270
      %s273 = sphi 0, %s272
      %s287 = sphi 0, %s273
      %s291 = sphi 0, %s291
      %s293 = sphi 0, %s291
      %s294 = sphi 0, %s293
      %s308 = sphi 0, %s294
      %s312 = sphi 0, %s312
      %s314 = sphi 0, %s312
      %s315 = sphi 0, %s314
      %s329 = sphi 0, %s315
      %s333 = sphi 0, %s333
      %s335 = sphi 0, %s333
      %s336 = sphi 0, %s335
      %s350 = sphi 0, %s336
      %s354 = sphi 0, %s354
      %s356 = sphi 0, %s354
      %s357 = sphi 0, %s356
      %s371 = sphi 0, %s357
      %s375 = sphi 0, %s375
      %s377 = sphi 0, %s375
      %s378 = sphi 0, %s377
      %s392 = sphi 0, %s378
      %s396 = sphi 0, %s396
      %s398 = sphi 0, %s396
      %s399 = sphi 0, %s398
      %s413 = sphi 0, %s399
      %s417 = sphi 0, %s417
      %s419 = sphi 0, %s417
      %s420 = sphi 0, %s419
      %s434 = sphi 0, %s420
      %s440 = sphi 0, %s442
      %s443 = sphi 0, %s440
      %s444 = sphi 0, %s443
      %s460 = sphi 0, %s444
      %s466 = sphi 0, %s468
      %s469 = sphi 0, %s466
      %s470 = sphi 0, %s469
      %s486 = sphi 0, %s470
    $region4: #{tpu_custom_call.1} parent=1 // loop_header_branch
      %35 = sbr.rel (%p33) target = $region8
    $region5: #{tpu_custom_call.1} parent=1 // loop_body
      %s37 = ssub.s32 %s32, 1
      %s38 = ssub.s32 %s32, 2
      %s39 = sadd.s32 %s32, 1
      %s40 = ssub.s32 %s32, %s39
      %p41 = scmp.eq.s32.totalorder %s40, 0
      %s43 = sadd.s32 %s42, 1
      %s44 = scalar_select %p41, %s42, %s43
      %p47 = pneg %p41
      %p48 = scmp.eq.s32.totalorder %s32, 1
      %p49 = por %p47, %p48
      %p50 = scmp.ne.s32.totalorder %s42, %s45
      %p51 = scmp.eq.s32.totalorder %s32, 0
      %p52 = por %p50, %p51
      %p53 = scmp.ne.s32.totalorder %s42, %s45
      %p54 = scmp.eq.s32.totalorder %s37, 1
      %p55 = por %p53, %p54
      %p56 = scmp.ne.s32.totalorder %s45, %s46
      %p57 = scmp.eq.s32.totalorder %s37, 0
      %p58 = por %p56, %p57
      %p59 = scmp.ne.s32.totalorder %s45, %s46
      %p60 = scmp.eq.s32.totalorder %s38, 1
      %p61 = por %p59, %p60
      %p63 = scmp.ne.s32.totalorder %s46, %s62
      %p64 = scmp.eq.s32.totalorder %s38, 0
      %p65 = por %p63, %p64
      %s66 = ssub.s32 %s32, %s39
      %p67 = scmp.eq.s32.totalorder %s66, 0
      %s69 = sadd.s32 %s68, 1
      %s70 = scalar_select %p67, %s68, %s69
      %p73 = pneg %p67
      %p74 = scmp.eq.s32.totalorder %s32, 1
      %p75 = por %p73, %p74
      %p76 = scmp.ne.s32.totalorder %s68, %s71
      %p77 = scmp.eq.s32.totalorder %s32, 0
      %p78 = por %p76, %p77
      %p79 = scmp.ne.s32.totalorder %s68, %s71
      %p80 = scmp.eq.s32.totalorder %s37, 1
      %p81 = por %p79, %p80
      %p82 = scmp.ne.s32.totalorder %s71, %s72
      %p83 = scmp.eq.s32.totalorder %s37, 0
      %p84 = por %p82, %p83
      %p85 = scmp.ne.s32.totalorder %s71, %s72
      %p86 = scmp.eq.s32.totalorder %s38, 1
      %p87 = por %p85, %p86
      %p89 = scmp.ne.s32.totalorder %s72, %s88
      %p90 = scmp.eq.s32.totalorder %s38, 0
      %p91 = por %p89, %p90
      %s92 = ssub.s32 %s32, %s39
      %p93 = scmp.eq.s32.totalorder %s92, 0
      %s95 = sadd.s32 %s94, 1
      %s96 = scalar_select %p93, %s94, %s95
      %p99 = pneg %p93
      %p100 = scmp.eq.s32.totalorder %s32, 1
      %p101 = por %p99, %p100
      %p102 = scmp.ne.s32.totalorder %s94, %s97
      %p103 = scmp.eq.s32.totalorder %s32, 0
      %p104 = por %p102, %p103
      %p105 = scmp.ne.s32.totalorder %s94, %s97
      %p106 = scmp.eq.s32.totalorder %s37, 1
      %p107 = por %p105, %p106
      %p108 = scmp.ne.s32.totalorder %s97, %s98
      %p109 = scmp.eq.s32.totalorder %s37, 0
      %p110 = por %p108, %p109
      %p111 = scmp.ne.s32.totalorder %s97, %s98
      %p112 = scmp.eq.s32.totalorder %s38, 1
      %p113 = por %p111, %p112
      %p115 = scmp.ne.s32.totalorder %s98, %s114
      %p116 = scmp.eq.s32.totalorder %s38, 0
      %p117 = por %p115, %p116
      %s118 = ssub.s32 %s32, %s39
      %p119 = scmp.eq.s32.totalorder %s118, 0
      %s121 = sadd.s32 %s120, 1
      %s122 = scalar_select %p119, %s120, %s121
      %p125 = pneg %p119
      %p126 = scmp.eq.s32.totalorder %s32, 1
      %p127 = por %p125, %p126
      %p128 = scmp.ne.s32.totalorder %s120, %s123
      %p129 = scmp.eq.s32.totalorder %s32, 0
      %p130 = por %p128, %p129
      %p131 = scmp.ne.s32.totalorder %s120, %s123
      %p132 = scmp.eq.s32.totalorder %s37, 1
      %p133 = por %p131, %p132
      %p134 = scmp.ne.s32.totalorder %s123, %s124
      %p135 = scmp.eq.s32.totalorder %s37, 0
      %p136 = por %p134, %p135
      %p137 = scmp.ne.s32.totalorder %s123, %s124
      %p138 = scmp.eq.s32.totalorder %s38, 1
      %p139 = por %p137, %p138
      %p141 = scmp.ne.s32.totalorder %s124, %s140
      %p142 = scmp.eq.s32.totalorder %s38, 0
      %p143 = por %p141, %p142
      %s145 = sadd.s32 %s144, 1
      %p148 = scmp.eq.s32.totalorder %s32, 1
      %p149 = scmp.ne.s32.totalorder %s144, %s146
      %p150 = scmp.eq.s32.totalorder %s32, 0
      %p151 = por %p149, %p150
      %p152 = scmp.ne.s32.totalorder %s144, %s146
      %p153 = scmp.eq.s32.totalorder %s37, 1
      %p154 = por %p152, %p153
      %p155 = scmp.ne.s32.totalorder %s146, %s147
      %p156 = scmp.eq.s32.totalorder %s37, 0
      %p157 = por %p155, %p156
      %p158 = scmp.ne.s32.totalorder %s146, %s147
      %p159 = scmp.eq.s32.totalorder %s38, 1
      %p160 = por %p158, %p159
      %p162 = scmp.ne.s32.totalorder %s147, %s161
      %p163 = scmp.eq.s32.totalorder %s38, 0
      %p164 = por %p162, %p163
      %s166 = sadd.s32 %s165, 1
      %p169 = scmp.eq.s32.totalorder %s32, 1
      %p170 = scmp.ne.s32.totalorder %s165, %s167
      %p171 = scmp.eq.s32.totalorder %s32, 0
      %p172 = por %p170, %p171
      %p173 = scmp.ne.s32.totalorder %s165, %s167
      %p174 = scmp.eq.s32.totalorder %s37, 1
      %p175 = por %p173, %p174
      %p176 = scmp.ne.s32.totalorder %s167, %s168
      %p177 = scmp.eq.s32.totalorder %s37, 0
      %p178 = por %p176, %p177
      %p179 = scmp.ne.s32.totalorder %s167, %s168
      %p180 = scmp.eq.s32.totalorder %s38, 1
      %p181 = por %p179, %p180
      %p183 = scmp.ne.s32.totalorder %s168, %s182
      %p184 = scmp.eq.s32.totalorder %s38, 0
      %p185 = por %p183, %p184
      %s187 = sadd.s32 %s186, 1
      %p190 = scmp.eq.s32.totalorder %s32, 1
      %p191 = scmp.ne.s32.totalorder %s186, %s188
      %p192 = scmp.eq.s32.totalorder %s32, 0
      %p193 = por %p191, %p192
      %p194 = scmp.ne.s32.totalorder %s186, %s188
      %p195 = scmp.eq.s32.totalorder %s37, 1
      %p196 = por %p194, %p195
      %p197 = scmp.ne.s32.totalorder %s188, %s189
      %p198 = scmp.eq.s32.totalorder %s37, 0
      %p199 = por %p197, %p198
      %p200 = scmp.ne.s32.totalorder %s188, %s189
      %p201 = scmp.eq.s32.totalorder %s38, 1
      %p202 = por %p200, %p201
      %p204 = scmp.ne.s32.totalorder %s189, %s203
      %p205 = scmp.eq.s32.totalorder %s38, 0
      %p206 = por %p204, %p205
      %s208 = sadd.s32 %s207, 1
      %p211 = scmp.eq.s32.totalorder %s32, 1
      %p212 = scmp.ne.s32.totalorder %s207, %s209
      %p213 = scmp.eq.s32.totalorder %s32, 0
      %p214 = por %p212, %p213
      %p215 = scmp.ne.s32.totalorder %s207, %s209
      %p216 = scmp.eq.s32.totalorder %s37, 1
      %p217 = por %p215, %p216
      %p218 = scmp.ne.s32.totalorder %s209, %s210
      %p219 = scmp.eq.s32.totalorder %s37, 0
      %p220 = por %p218, %p219
      %p221 = scmp.ne.s32.totalorder %s209, %s210
      %p222 = scmp.eq.s32.totalorder %s38, 1
      %p223 = por %p221, %p222
      %p225 = scmp.ne.s32.totalorder %s210, %s224
      %p226 = scmp.eq.s32.totalorder %s38, 0
      %p227 = por %p225, %p226
      %s229 = sadd.s32 %s228, 1
      %p232 = scmp.eq.s32.totalorder %s32, 1
      %p233 = scmp.ne.s32.totalorder %s228, %s230
      %p234 = scmp.eq.s32.totalorder %s32, 0
      %p235 = por %p233, %p234
      %p236 = scmp.ne.s32.totalorder %s228, %s230
      %p237 = scmp.eq.s32.totalorder %s37, 1
      %p238 = por %p236, %p237
      %p239 = scmp.ne.s32.totalorder %s230, %s231
      %p240 = scmp.eq.s32.totalorder %s37, 0
      %p241 = por %p239, %p240
      %p242 = scmp.ne.s32.totalorder %s230, %s231
      %p243 = scmp.eq.s32.totalorder %s38, 1
      %p244 = por %p242, %p243
      %p246 = scmp.ne.s32.totalorder %s231, %s245
      %p247 = scmp.eq.s32.totalorder %s38, 0
      %p248 = por %p246, %p247
      %s250 = sadd.s32 %s249, 1
      %p253 = scmp.eq.s32.totalorder %s32, 1
      %p254 = scmp.ne.s32.totalorder %s249, %s251
      %p255 = scmp.eq.s32.totalorder %s32, 0
      %p256 = por %p254, %p255
      %p257 = scmp.ne.s32.totalorder %s249, %s251
      %p258 = scmp.eq.s32.totalorder %s37, 1
      %p259 = por %p257, %p258
      %p260 = scmp.ne.s32.totalorder %s251, %s252
      %p261 = scmp.eq.s32.totalorder %s37, 0
      %p262 = por %p260, %p261
      %p263 = scmp.ne.s32.totalorder %s251, %s252
      %p264 = scmp.eq.s32.totalorder %s38, 1
      %p265 = por %p263, %p264
      %p267 = scmp.ne.s32.totalorder %s252, %s266
      %p268 = scmp.eq.s32.totalorder %s38, 0
      %p269 = por %p267, %p268
      %s271 = sadd.s32 %s270, 1
      %p274 = scmp.eq.s32.totalorder %s32, 1
      %p275 = scmp.ne.s32.totalorder %s270, %s272
      %p276 = scmp.eq.s32.totalorder %s32, 0
      %p277 = por %p275, %p276
      %p278 = scmp.ne.s32.totalorder %s270, %s272
      %p279 = scmp.eq.s32.totalorder %s37, 1
      %p280 = por %p278, %p279
      %p281 = scmp.ne.s32.totalorder %s272, %s273
      %p282 = scmp.eq.s32.totalorder %s37, 0
      %p283 = por %p281, %p282
      %p284 = scmp.ne.s32.totalorder %s272, %s273
      %p285 = scmp.eq.s32.totalorder %s38, 1
      %p286 = por %p284, %p285
      %p288 = scmp.ne.s32.totalorder %s273, %s287
      %p289 = scmp.eq.s32.totalorder %s38, 0
      %p290 = por %p288, %p289
      %s292 = sadd.s32 %s291, 1
      %p295 = scmp.eq.s32.totalorder %s32, 1
      %p296 = scmp.ne.s32.totalorder %s291, %s293
      %p297 = scmp.eq.s32.totalorder %s32, 0
      %p298 = por %p296, %p297
      %p299 = scmp.ne.s32.totalorder %s291, %s293
      %p300 = scmp.eq.s32.totalorder %s37, 1
      %p301 = por %p299, %p300
      %p302 = scmp.ne.s32.totalorder %s293, %s294
      %p303 = scmp.eq.s32.totalorder %s37, 0
      %p304 = por %p302, %p303
      %p305 = scmp.ne.s32.totalorder %s293, %s294
      %p306 = scmp.eq.s32.totalorder %s38, 1
      %p307 = por %p305, %p306
      %p309 = scmp.ne.s32.totalorder %s294, %s308
      %p310 = scmp.eq.s32.totalorder %s38, 0
      %p311 = por %p309, %p310
      %s313 = sadd.s32 %s312, 1
      %p316 = scmp.eq.s32.totalorder %s32, 1
      %p317 = scmp.ne.s32.totalorder %s312, %s314
      %p318 = scmp.eq.s32.totalorder %s32, 0
      %p319 = por %p317, %p318
      %p320 = scmp.ne.s32.totalorder %s312, %s314
      %p321 = scmp.eq.s32.totalorder %s37, 1
      %p322 = por %p320, %p321
      %p323 = scmp.ne.s32.totalorder %s314, %s315
      %p324 = scmp.eq.s32.totalorder %s37, 0
      %p325 = por %p323, %p324
      %p326 = scmp.ne.s32.totalorder %s314, %s315
      %p327 = scmp.eq.s32.totalorder %s38, 1
      %p328 = por %p326, %p327
      %p330 = scmp.ne.s32.totalorder %s315, %s329
      %p331 = scmp.eq.s32.totalorder %s38, 0
      %p332 = por %p330, %p331
      %s334 = sadd.s32 %s333, 1
      %p337 = scmp.eq.s32.totalorder %s32, 1
      %p338 = scmp.ne.s32.totalorder %s333, %s335
      %p339 = scmp.eq.s32.totalorder %s32, 0
      %p340 = por %p338, %p339
      %p341 = scmp.ne.s32.totalorder %s333, %s335
      %p342 = scmp.eq.s32.totalorder %s37, 1
      %p343 = por %p341, %p342
      %p344 = scmp.ne.s32.totalorder %s335, %s336
      %p345 = scmp.eq.s32.totalorder %s37, 0
      %p346 = por %p344, %p345
      %p347 = scmp.ne.s32.totalorder %s335, %s336
      %p348 = scmp.eq.s32.totalorder %s38, 1
      %p349 = por %p347, %p348
      %p351 = scmp.ne.s32.totalorder %s336, %s350
      %p352 = scmp.eq.s32.totalorder %s38, 0
      %p353 = por %p351, %p352
      %s355 = sadd.s32 %s354, 1
      %p358 = scmp.eq.s32.totalorder %s32, 1
      %p359 = scmp.ne.s32.totalorder %s354, %s356
      %p360 = scmp.eq.s32.totalorder %s32, 0
      %p361 = por %p359, %p360
      %p362 = scmp.ne.s32.totalorder %s354, %s356
      %p363 = scmp.eq.s32.totalorder %s37, 1
      %p364 = por %p362, %p363
      %p365 = scmp.ne.s32.totalorder %s356, %s357
      %p366 = scmp.eq.s32.totalorder %s37, 0
      %p367 = por %p365, %p366
      %p368 = scmp.ne.s32.totalorder %s356, %s357
      %p369 = scmp.eq.s32.totalorder %s38, 1
      %p370 = por %p368, %p369
      %p372 = scmp.ne.s32.totalorder %s357, %s371
      %p373 = scmp.eq.s32.totalorder %s38, 0
      %p374 = por %p372, %p373
      %s376 = sadd.s32 %s375, 1
      %p379 = scmp.eq.s32.totalorder %s32, 1
      %p380 = scmp.ne.s32.totalorder %s375, %s377
      %p381 = scmp.eq.s32.totalorder %s32, 0
      %p382 = por %p380, %p381
      %p383 = scmp.ne.s32.totalorder %s375, %s377
      %p384 = scmp.eq.s32.totalorder %s37, 1
      %p385 = por %p383, %p384
      %p386 = scmp.ne.s32.totalorder %s377, %s378
      %p387 = scmp.eq.s32.totalorder %s37, 0
      %p388 = por %p386, %p387
      %p389 = scmp.ne.s32.totalorder %s377, %s378
      %p390 = scmp.eq.s32.totalorder %s38, 1
      %p391 = por %p389, %p390
      %p393 = scmp.ne.s32.totalorder %s378, %s392
      %p394 = scmp.eq.s32.totalorder %s38, 0
      %p395 = por %p393, %p394
      %s397 = sadd.s32 %s396, 1
      %p400 = scmp.eq.s32.totalorder %s32, 1
      %p401 = scmp.ne.s32.totalorder %s396, %s398
      %p402 = scmp.eq.s32.totalorder %s32, 0
      %p403 = por %p401, %p402
      %p404 = scmp.ne.s32.totalorder %s396, %s398
      %p405 = scmp.eq.s32.totalorder %s37, 1
      %p406 = por %p404, %p405
      %p407 = scmp.ne.s32.totalorder %s398, %s399
      %p408 = scmp.eq.s32.totalorder %s37, 0
      %p409 = por %p407, %p408
      %p410 = scmp.ne.s32.totalorder %s398, %s399
      %p411 = scmp.eq.s32.totalorder %s38, 1
      %p412 = por %p410, %p411
      %p414 = scmp.ne.s32.totalorder %s399, %s413
      %p415 = scmp.eq.s32.totalorder %s38, 0
      %p416 = por %p414, %p415
      %s418 = sadd.s32 %s417, 1
      %p421 = scmp.eq.s32.totalorder %s32, 1
      %p422 = scmp.ne.s32.totalorder %s417, %s419
      %p423 = scmp.eq.s32.totalorder %s32, 0
      %p424 = por %p422, %p423
      %p425 = scmp.ne.s32.totalorder %s417, %s419
      %p426 = scmp.eq.s32.totalorder %s37, 1
      %p427 = por %p425, %p426
      %p428 = scmp.ne.s32.totalorder %s419, %s420
      %p429 = scmp.eq.s32.totalorder %s37, 0
      %p430 = por %p428, %p429
      %p431 = scmp.ne.s32.totalorder %s419, %s420
      %p432 = scmp.eq.s32.totalorder %s38, 1
      %p433 = por %p431, %p432
      %p435 = scmp.ne.s32.totalorder %s420, %s434
      %p436 = scmp.eq.s32.totalorder %s38, 0
      %p437 = por %p435, %p436
      %s438 = ssub.s32 %s32, %s39
      %p439 = scmp.eq.s32.totalorder %s438, 0
      %s441 = sadd.s32 %s440, 1
      %s442 = scalar_select %p439, %s440, %s441
      %p445 = pneg %p439
      %p446 = scmp.eq.s32.totalorder %s32, 1
      %p447 = por %p445, %p446
      %p448 = scmp.ne.s32.totalorder %s440, %s443
      %p449 = scmp.eq.s32.totalorder %s32, 0
      %p450 = por %p448, %p449
      %p451 = scmp.ne.s32.totalorder %s440, %s443
      %p452 = scmp.eq.s32.totalorder %s37, 1
      %p453 = por %p451, %p452
      %p454 = scmp.ne.s32.totalorder %s443, %s444
      %p455 = scmp.eq.s32.totalorder %s37, 0
      %p456 = por %p454, %p455
      %p457 = scmp.ne.s32.totalorder %s443, %s444
      %p458 = scmp.eq.s32.totalorder %s38, 1
      %p459 = por %p457, %p458
      %p461 = scmp.ne.s32.totalorder %s444, %s460
      %p462 = scmp.eq.s32.totalorder %s38, 0
      %p463 = por %p461, %p462
      %s464 = ssub.s32 %s32, %s39
      %p465 = scmp.eq.s32.totalorder %s464, 0
      %s467 = sadd.s32 %s466, 1
      %s468 = scalar_select %p465, %s466, %s467
      %p471 = pneg %p465
      %p472 = scmp.eq.s32.totalorder %s32, 1
      %p473 = por %p471, %p472
      %p474 = scmp.ne.s32.totalorder %s466, %s469
      %p475 = scmp.eq.s32.totalorder %s32, 0
      %p476 = por %p474, %p475
      %p477 = scmp.ne.s32.totalorder %s466, %s469
      %p478 = scmp.eq.s32.totalorder %s37, 1
      %p479 = por %p477, %p478
      %p480 = scmp.ne.s32.totalorder %s469, %s470
      %p481 = scmp.eq.s32.totalorder %s37, 0
      %p482 = por %p480, %p481
      %p483 = scmp.ne.s32.totalorder %s469, %s470
      %p484 = scmp.eq.s32.totalorder %s38, 1
      %p485 = por %p483, %p484
      %p487 = scmp.ne.s32.totalorder %s470, %s486
      %p488 = scmp.eq.s32.totalorder %s38, 0
      %p489 = por %p487, %p488
      %p490 = scmp.le.s32.totalorder 1, %s32
      %p491 = scmp.lt.s32.totalorder %s32, 3
      %p492 = pnand %p490, %p491
      %p493 = pneg %p492
      // Predicated region
      $region9: #{tpu_custom_call.1} parent=5 // pred_check
        _
      $region10: #{tpu_custom_call.1} parent=5 // pred_check_branch
        %495 = sbr.rel (%p492) target = $region12
      $region11: #{tpu_custom_call.1} parent=5 // pred_region
        %s496 = ssub.s32 %s32, 1
        // Predicated region
        $region13: #{tpu_custom_call.1} parent=11 // pred_check
          %p497 = pneg %p157
        $region14: #{tpu_custom_call.1} parent=11 // pred_check_branch
          %499 = sbr.rel (%p497) target = $region16
        $region15: #{tpu_custom_call.1} parent=11 // pred_region
          _
        $region16: #{tpu_custom_call.1} parent=11 // pred_fallthru
          _
        // Predicated region
        $region17: #{tpu_custom_call.1} parent=11 // pred_check
          %p500 = pneg %p178
        $region18: #{tpu_custom_call.1} parent=11 // pred_check_branch
          %502 = sbr.rel (%p500) target = $region20
        $region19: #{tpu_custom_call.1} parent=11 // pred_region
          _
        $region20: #{tpu_custom_call.1} parent=11 // pred_fallthru
          _
        // Predicated region
        $region21: #{tpu_custom_call.1} parent=11 // pred_check
          %p503 = pneg %p199
        $region22: #{tpu_custom_call.1} parent=11 // pred_check_branch
          %505 = sbr.rel (%p503) target = $region24
        $region23: #{tpu_custom_call.1} parent=11 // pred_region
          _
        $region24: #{tpu_custom_call.1} parent=11 // pred_fallthru
          _
        // Predicated region
        $region25: #{tpu_custom_call.1} parent=11 // pred_check
          %p506 = pneg %p220
        $region26: #{tpu_custom_call.1} parent=11 // pred_check_branch
          %508 = sbr.rel (%p506) target = $region28
        $region27: #{tpu_custom_call.1} parent=11 // pred_region
          _
        $region28: #{tpu_custom_call.1} parent=11 // pred_fallthru
          _
        // Predicated region
        $region29: #{tpu_custom_call.1} parent=11 // pred_check
          %p509 = pneg %p241
        $region30: #{tpu_custom_call.1} parent=11 // pred_check_branch
          %511 = sbr.rel (%p509) target = $region32
        $region31: #{tpu_custom_call.1} parent=11 // pred_region
          _
        $region32: #{tpu_custom_call.1} parent=11 // pred_fallthru
          _
        // Predicated region
        $region33: #{tpu_custom_call.1} parent=11 // pred_check
          %p512 = pneg %p262
        $region34: #{tpu_custom_call.1} parent=11 // pred_check_branch
          %514 = sbr.rel (%p512) target = $region36
        $region35: #{tpu_custom_call.1} parent=11 // pred_region
          _
        $region36: #{tpu_custom_call.1} parent=11 // pred_fallthru
          _
        // Predicated region
        $region37: #{tpu_custom_call.1} parent=11 // pred_check
          %p515 = pneg %p283
        $region38: #{tpu_custom_call.1} parent=11 // pred_check_branch
          %517 = sbr.rel (%p515) target = $region40
        $region39: #{tpu_custom_call.1} parent=11 // pred_region
          _
        $region40: #{tpu_custom_call.1} parent=11 // pred_fallthru
          _
        // Predicated region
        $region41: #{tpu_custom_call.1} parent=11 // pred_check
          %p518 = pneg %p304
        $region42: #{tpu_custom_call.1} parent=11 // pred_check_branch
          %520 = sbr.rel (%p518) target = $region44
        $region43: #{tpu_custom_call.1} parent=11 // pred_region
          _
        $region44: #{tpu_custom_call.1} parent=11 // pred_fallthru
          _
        // Predicated region
        $region45: #{tpu_custom_call.1} parent=11 // pred_check
          %p521 = pneg %p325
        $region46: #{tpu_custom_call.1} parent=11 // pred_check_branch
          %523 = sbr.rel (%p521) target = $region48
        $region47: #{tpu_custom_call.1} parent=11 // pred_region
          _
        $region48: #{tpu_custom_call.1} parent=11 // pred_fallthru
          _
        // Predicated region
        $region49: #{tpu_custom_call.1} parent=11 // pred_check
          %p524 = pneg %p346
        $region50: #{tpu_custom_call.1} parent=11 // pred_check_branch
          %526 = sbr.rel (%p524) target = $region52
        $region51: #{tpu_custom_call.1} parent=11 // pred_region
          _
        $region52: #{tpu_custom_call.1} parent=11 // pred_fallthru
          _
        // Predicated region
        $region53: #{tpu_custom_call.1} parent=11 // pred_check
          %p527 = pneg %p367
        $region54: #{tpu_custom_call.1} parent=11 // pred_check_branch
          %529 = sbr.rel (%p527) target = $region56
        $region55: #{tpu_custom_call.1} parent=11 // pred_region
          _
        $region56: #{tpu_custom_call.1} parent=11 // pred_fallthru
          _
        // Predicated region
        $region57: #{tpu_custom_call.1} parent=11 // pred_check
          %p530 = pneg %p388
        $region58: #{tpu_custom_call.1} parent=11 // pred_check_branch
          %532 = sbr.rel (%p530) target = $region60
        $region59: #{tpu_custom_call.1} parent=11 // pred_region
          _
        $region60: #{tpu_custom_call.1} parent=11 // pred_fallthru
          _
        // Predicated region
        $region61: #{tpu_custom_call.1} parent=11 // pred_check
          %p533 = pneg %p409
        $region62: #{tpu_custom_call.1} parent=11 // pred_check_branch
          %535 = sbr.rel (%p533) target = $region64
        $region63: #{tpu_custom_call.1} parent=11 // pred_region
          _
        $region64: #{tpu_custom_call.1} parent=11 // pred_fallthru
          _
        // Predicated region
        $region65: #{tpu_custom_call.1} parent=11 // pred_check
          %p536 = pneg %p430
        $region66: #{tpu_custom_call.1} parent=11 // pred_check_branch
          %538 = sbr.rel (%p536) target = $region68
        $region67: #{tpu_custom_call.1} parent=11 // pred_region
          _
        $region68: #{tpu_custom_call.1} parent=11 // pred_fallthru
          _
      $region12: #{tpu_custom_call.1} parent=5 // pred_fallthru
        _
      %p539 = scmp.lt.s32.totalorder %s32, 2
      // Predicated region
      $region69: #{tpu_custom_call.1} parent=5 // pred_check
        %p540 = pneg %p539
      $region70: #{tpu_custom_call.1} parent=5 // pred_check_branch
        %542 = sbr.rel (%p540) target = $region72
      $region71: #{tpu_custom_call.1} parent=5 // pred_region
        // Predicated region
        $region73: #{tpu_custom_call.1} parent=71 // pred_check
          %p543 = pneg %p52
        $region74: #{tpu_custom_call.1} parent=71 // pred_check_branch
          %545 = sbr.rel (%p543) target = $region76
        $region75: #{tpu_custom_call.1} parent=71 // pred_region
          %s546 = smul.u32 8, %s32
          %p547 = scmp.lt.s32.totalorder %s546, 15
          %s548 = scalar_select %p547, %s546, 15
          %s549 = smul.addr %s548, 8
          %s550 = scalar_lea.vmem %s0, %s549
          %s551 = smul.u32 8, %s32
        $region76: #{tpu_custom_call.1} parent=71 // pred_fallthru
          _
        // Predicated region
        $region77: #{tpu_custom_call.1} parent=71 // pred_check
          %p552 = pneg %p78
        $region78: #{tpu_custom_call.1} parent=71 // pred_check_branch
          %554 = sbr.rel (%p552) target = $region80
        $region79: #{tpu_custom_call.1} parent=71 // pred_region
          %s555 = smul.u32 8, %s32
          %p556 = scmp.lt.s32.totalorder %s555, 15
          %s557 = scalar_select %p556, %s555, 15
          %s558 = smul.addr %s557, 8
          %s559 = scalar_lea.vmem %s1, %s558
          %s560 = smul.u32 8, %s32
        $region80: #{tpu_custom_call.1} parent=71 // pred_fallthru
          _
        // Predicated region
        $region81: #{tpu_custom_call.1} parent=71 // pred_check
          %p561 = pneg %p104
        $region82: #{tpu_custom_call.1} parent=71 // pred_check_branch
          %563 = sbr.rel (%p561) target = $region84
        $region83: #{tpu_custom_call.1} parent=71 // pred_region
          %s564 = smul.u32 8, %s32
          %p565 = scmp.lt.s32.totalorder %s564, 15
          %s566 = scalar_select %p565, %s564, 15
          %s567 = smul.addr %s566, 4
          %s568 = smul.addr %s567, 8
          %s569 = scalar_lea.vmem %s2, %s568
          %s570 = smul.u32 8, %s32
        $region84: #{tpu_custom_call.1} parent=71 // pred_fallthru
          _
        // Predicated region
        $region85: #{tpu_custom_call.1} parent=71 // pred_check
          %p571 = pneg %p130
        $region86: #{tpu_custom_call.1} parent=71 // pred_check_branch
          %573 = sbr.rel (%p571) target = $region88
        $region87: #{tpu_custom_call.1} parent=71 // pred_region
          %s574 = smul.u32 8, %s32
          %p575 = scmp.lt.s32.totalorder %s574, 15
          %s576 = scalar_select %p575, %s574, 15
          %s577 = smul.addr %s576, 2
          %s578 = smul.addr %s577, 8
          %s579 = scalar_lea.vmem %s3, %s578
          %s580 = smul.u32 8, %s32
        $region88: #{tpu_custom_call.1} parent=71 // pred_fallthru
          _
      $region72: #{tpu_custom_call.1} parent=5 // pred_fallthru
        _
      %p581 = scmp.le.s32.totalorder 1, %s32
      %p582 = scmp.lt.s32.totalorder %s32, 3
      %p583 = pnand %p581, %p582
      %p584 = pneg %p583
      // Predicated region
      $region89: #{tpu_custom_call.1} parent=5 // pred_check
        _
      $region90: #{tpu_custom_call.1} parent=5 // pred_check_branch
        %586 = sbr.rel (%p583) target = $region92
      $region91: #{tpu_custom_call.1} parent=5 // pred_region
        %s587 = ssub.s32 %s32, 1
        %s588 = smul.u32 8, %s37
        %p589 = scmp.lt.s32.totalorder %s588, 15
        %s590 = scalar_select %p589, %s588, 15
        %s591 = smul.addr %s590, 8
        %s592 = scalar_lea.vmem %s0, %s591
        %p593 = pneg %p58
        %p594 = pneg %p55
        %s595 = smul.u32 8, %s37
        %p596 = scmp.lt.s32.totalorder %s595, 15
        %s597 = scalar_select %p596, %s595, 15
        %s598 = smul.addr %s597, 8
        %s599 = scalar_lea.vmem %s1, %s598
        %p600 = pneg %p84
        %p601 = pneg %p81
        %s602 = smul.u32 8, %s37
        %p603 = scmp.lt.s32.totalorder %s602, 15
        %s604 = scalar_select %p603, %s602, 15
        %s605 = smul.addr %s604, 4
        %s606 = smul.addr %s605, 8
        %s607 = scalar_lea.vmem %s2, %s606
        %p608 = pneg %p110
        %p609 = pneg %p107
        %s610 = smul.u32 8, %s37
        %p611 = scmp.lt.s32.totalorder %s610, 15
        %s612 = scalar_select %p611, %s610, 15
        %s613 = smul.addr %s612, 2
        %s614 = smul.addr %s613, 8
        %s615 = scalar_lea.vmem %s3, %s614
        %p616 = pneg %p136
        %p617 = pneg %p133
        %p618 = pneg %p157
        %p619 = pneg %p154
        %p620 = pneg %p178
        %p621 = pneg %p175
        %p622 = pneg %p199
        %p623 = pneg %p196
        %p624 = pneg %p220
        %p625 = pneg %p217
        %p626 = pneg %p241
        %p627 = pneg %p238
        %p628 = pneg %p262
        %p629 = pneg %p259
        %p630 = pneg %p283
        %p631 = pneg %p280
        %p632 = pneg %p304
        %p633 = pneg %p301
        %p634 = pneg %p325
        %p635 = pneg %p322
        %p636 = pneg %p346
        %p637 = pneg %p343
        %p638 = pneg %p367
        %p639 = pneg %p364
        %p640 = pneg %p388
        %p641 = pneg %p385
        %p642 = pneg %p409
        %p643 = pneg %p406
        %p644 = pneg %p430
        %p645 = pneg %p427
        %p646 = pneg %p456
        %p647 = pneg %p453
        %s648 = sand.u32 %s443, 1
        %s649 = scalar_lea.sflag [#allocation3], %s648
        %s650 = sand.u32 %s443, 1
        %s651 = smul.addr %s650, 64
        %s652 = scalar_lea.vmem [#allocation2], %s651
        %p653 = pneg %p482
        %p654 = pneg %p479
        %s655 = sand.u32 %s469, 1
        %s656 = scalar_lea.sflag [#allocation5], %s655
        %s657 = sand.u32 %s469, 1
        %s658 = smul.addr %s657, 64
        %s659 = scalar_lea.vmem [#allocation4], %s658
        %s660 = smul.u32 8, %s37
        %p661 = scmp.lt.s32.totalorder %s660, 15
        %s662 = scalar_select %p661, %s660, 15
        %s663 = smul.addr %s662, 8
        %s664 = scalar_lea.vmem %s0, %s663
        %s665 = smul.u32 8, %s37
        %s666 = smul.u32 8, %s37
        %p667 = scmp.lt.s32.totalorder %s666, 15
        %s668 = scalar_select %p667, %s666, 15
        %s669 = smul.addr %s668, 8
        %s670 = scalar_lea.vmem %s1, %s669
        %s671 = smul.u32 8, %s37
        %s672 = smul.u32 8, %s37
        %p673 = scmp.lt.s32.totalorder %s672, 15
        %s674 = scalar_select %p673, %s672, 15
        %s675 = smul.addr %s674, 4
        %s676 = smul.addr %s675, 8
        %s677 = scalar_lea.vmem %s2, %s676
        %s678 = smul.u32 8, %s37
        %s679 = smul.u32 8, %s37
        %p680 = scmp.lt.s32.totalorder %s679, 15
        %s681 = scalar_select %p680, %s679, 15
        %s682 = smul.addr %s681, 2
        %s683 = smul.addr %s682, 8
        %s684 = scalar_lea.vmem %s3, %s683
        %s685 = smul.u32 8, %s37
        %s686 = smul.u32 8, %s37
        %s687 = smul.u32 8, %s37
        %v688 = vld [vmem:[%s664] sm:$0xff]
        %v689 = vld [vmem:[%s664 + $0x8] sm:$0xff]
        %v690 = vld [vmem:[%s664 + $0x10] sm:$0xff]
        %v691 = vld [vmem:[%s664 + $0x18] sm:$0xff]
        %v692 = vld [vmem:[%s664 + $0x20] sm:$0xff]
        %v693 = vld [vmem:[%s664 + $0x28] sm:$0xff]
        %v694 = vld [vmem:[%s664 + $0x30] sm:$0xff]
        %v695 = vld [vmem:[%s664 + $0x38] sm:$0xff]
        %v696 = vld [vmem:[%s4] sm:$0xff]
        %v697 = vld [vmem:[%s4 + $0x8] sm:$0xff]
        %v698 = vld [vmem:[%s4 + $0x10] sm:$0xff]
        %v699 = vld [vmem:[%s4 + $0x18] sm:$0xff]
        %v700 = vld [vmem:[%s5] sm:$0x1]
        %v702 = vlaneseq
        %v703 = vshrl.u32 %v702, 7
        %v704 = vsub.s32 0, %v703
        %v705 = vrot.slane %v700, %v704
        %vm707 = vcmask 261120
        %v709 = vsel %vm707, %v688, 0
        %v712 = vsel %vm707, %v689, 0
        %v715 = vsel %vm707, %v690, 0
        %v718 = vsel %vm707, %v691, 0
        %v721 = vsel %vm707, %v692, 0
        %v724 = vsel %vm707, %v693, 0
        %v727 = vsel %vm707, %v694, 0
        %v730 = vsel %vm707, %v695, 0
        %732 = vmatprep.subr.mxu0 0.0
        %733 = vmatpush1.msra.mxu0 %v696
        %734 = vmatprep.subr.mxu0 0.0
        %735 = vmatpush1.msra.mxu0 %v697
        %736 = vmatprep.subr.mxu0 0.0
        %737 = vmatpush1.msra.mxu0 %v698
        %738 = vmatprep.subr.mxu0 0.0
        %739 = vmatpush1.msra.mxu0 %v699
        %740 = vmatprep.subr.mxu0 0.0
        %741 = vmatpush1.msra.mxu0 0.0
        %742 = vmatprep.subr.mxu0 0.0
        %743 = vmatpush1.msra.mxu0 0.0
        %744 = vmatprep.subr.mxu0 0.0
        %745 = vmatpush1.msra.mxu0 0.0
        %746 = vmatprep.subr.mxu0 0.0
        %747 = vmatpush1.msra.mxu0 0.0
        %748 = vmatprep.subr.mxu0 0.0
        %749 = vmatpush1.msra.mxu0 0.0
        %750 = vmatprep.subr.mxu0 0.0
        %751 = vmatpush1.msra.mxu0 0.0
        %752 = vmatprep.subr.mxu0 0.0
        %753 = vmatpush1.msra.mxu0 0.0
        %754 = vmatprep.subr.mxu0 0.0
        %755 = vmatpush1.msra.mxu0 0.0
        %756 = vmatprep.subr.mxu0 0.0
        %757 = vmatpush1.msra.mxu0 0.0
        %758 = vmatprep.subr.mxu0 0.0
        %759 = vmatpush1.msra.mxu0 0.0
        %760 = vmatprep.subr.mxu0 0.0
        %761 = vmatpush1.msra.mxu0 0.0
        %762 = vmatprep.subr.mxu0 0.0
        %763 = vmatpush1.msra.mxu0 0.0
        %764 = vmatprep.subr.mxu0 0.0
        %765 = vmatpush1.msra.mxu0 0.0
        %766 = vmatprep.subr.mxu0 0.0
        %767 = vmatpush1.msra.mxu0 0.0
        %768 = vmatprep.subr.mxu0 0.0
        %769 = vmatpush1.msra.mxu0 0.0
        %770 = vmatprep.subr.mxu0 0.0
        %771 = vmatpush1.msra.mxu0 0.0
        %772 = vmatprep.subr.mxu0 0.0
        %773 = vmatpush1.msra.mxu0 0.0
        %774 = vmatprep.subr.mxu0 0.0
        %775 = vmatpush1.msra.mxu0 0.0
        %776 = vmatprep.subr.mxu0 0.0
        %777 = vmatpush1.msra.mxu0 0.0
        %778 = vmatprep.subr.mxu0 0.0
        %779 = vmatpush1.msra.mxu0 0.0
        %780 = vmatprep.subr.mxu0 0.0
        %781 = vmatpush1.msra.mxu0 0.0
        %782 = vmatprep.subr.mxu0 0.0
        %783 = vmatpush1.msra.mxu0 0.0
        %784 = vmatprep.subr.mxu0 0.0
        %785 = vmatpush1.msra.mxu0 0.0
        %786 = vmatprep.subr.mxu0 0.0
        %787 = vmatpush1.msra.mxu0 0.0
        %788 = vmatprep.subr.mxu0 0.0
        %789 = vmatpush1.msra.mxu0 0.0
        %790 = vmatprep.subr.mxu0 0.0
        %791 = vmatpush1.msra.mxu0 0.0
        %792 = vmatprep.subr.mxu0 0.0
        %793 = vmatpush1.msra.mxu0 0.0
        %794 = vmatprep.subr.mxu0 0.0
        %795 = vmatpush1.msra.mxu0 0.0
        %796 = vmatprep.mubr.f32.mxu0 0.0
        %797 = vmatmul.mubr.f32.gmra.mrb[0].mxu0 %v709
        %v798 = vpop.f32.mrb[0].mxu0
        %v799 = vadd.f32 %v705, %v798
        %v800 = vpop.f32.mrb[0].mxu0
        %801 = vmatprep.mubr.f32.mxu0 0.0
        %802 = vmatmul.mubr.f32.gmra.mrb[0].mxu0 %v712
        %v803 = vpop.f32.mrb[0].mxu0
        %v804 = vadd.f32 %v705, %v803
        %v805 = vpop.f32.mrb[0].mxu0
        %806 = vmatprep.mubr.f32.mxu0 0.0
        %807 = vmatmul.mubr.f32.gmra.mrb[0].mxu0 %v715
        %v808 = vpop.f32.mrb[0].mxu0
        %v809 = vadd.f32 %v705, %v808
        %v810 = vpop.f32.mrb[0].mxu0
        %811 = vmatprep.mubr.f32.mxu0 0.0
        %812 = vmatmul.mubr.f32.gmra.mrb[0].mxu0 %v718
        %v813 = vpop.f32.mrb[0].mxu0
        %v814 = vadd.f32 %v705, %v813
        %v815 = vpop.f32.mrb[0].mxu0
        %816 = vmatprep.mubr.f32.mxu0 0.0
        %817 = vmatmul.mubr.f32.gmra.mrb[0].mxu0 %v721
        %v818 = vpop.f32.mrb[0].mxu0
        %v819 = vadd.f32 %v705, %v818
        %v820 = vpop.f32.mrb[0].mxu0
        %821 = vmatprep.mubr.f32.mxu0 0.0
        %822 = vmatmul.mubr.f32.gmra.mrb[0].mxu0 %v724
        %v823 = vpop.f32.mrb[0].mxu0
        %v824 = vadd.f32 %v705, %v823
        %v825 = vpop.f32.mrb[0].mxu0
        %826 = vmatprep.mubr.f32.mxu0 0.0
        %827 = vmatmul.mubr.f32.gmra.mrb[0].mxu0 %v727
        %v828 = vpop.f32.mrb[0].mxu0
        %v829 = vadd.f32 %v705, %v828
        %v830 = vpop.f32.mrb[0].mxu0
        %831 = vmatprep.mubr.f32.mxu0 0.0
        %832 = vmatmul.mubr.f32.gmra.mrb[0].mxu0 %v730
        %v833 = vpop.f32.mrb[0].mxu0
        %v834 = vadd.f32 %v705, %v833
        %v835 = vpop.f32.mrb[0].mxu0
        %836 = vdwg.mxu0
        %v837 = vld [vmem:[%s670] sm:$0xff]
        %v838 = vld [vmem:[%s670 + $0x8] sm:$0xff]
        %v839 = vld [vmem:[%s670 + $0x10] sm:$0xff]
        %v840 = vld [vmem:[%s670 + $0x18] sm:$0xff]
        %v841 = vld [vmem:[%s670 + $0x20] sm:$0xff]
        %v842 = vld [vmem:[%s670 + $0x28] sm:$0xff]
        %v843 = vld [vmem:[%s670 + $0x30] sm:$0xff]
        %v844 = vld [vmem:[%s670 + $0x38] sm:$0xff]
        %853 = vrot.lane.b32.xlu0 %v837, 32
        %v854 = vpop.permute.xlu0 %853
        %855 = vrot.lane.b32.xlu0 %v838, 32
        %v856 = vpop.permute.xlu0 %855
        %857 = vrot.lane.b32.xlu0 %v839, 32
        %v858 = vpop.permute.xlu0 %857
        %859 = vrot.lane.b32.xlu0 %v840, 32
        %v860 = vpop.permute.xlu0 %859
        %861 = vrot.lane.b32.xlu0 %v841, 32
        %v862 = vpop.permute.xlu0 %861
        %863 = vrot.lane.b32.xlu0 %v842, 32
        %v864 = vpop.permute.xlu0 %863
        %865 = vrot.lane.b32.xlu0 %v843, 32
        %v866 = vpop.permute.xlu0 %865
        %867 = vrot.lane.b32.xlu0 %v844, 32
        %v868 = vpop.permute.xlu0 %867
        %v877 = vsel %vm707, %v799, %v854
        %v878 = vsel %vm707, %v804, %v856
        %v879 = vsel %vm707, %v809, %v858
        %v880 = vsel %vm707, %v814, %v860
        %v881 = vsel %vm707, %v819, %v862
        %v882 = vsel %vm707, %v824, %v864
        %v883 = vsel %vm707, %v829, %v866
        %v884 = vsel %vm707, %v834, %v868
        %v885 = vld [vmem:[%s6] sm:$0xff]
        %v886 = vld [vmem:[%s6 + $0x8] sm:$0xff]
        %v887 = vld [vmem:[%s6 + $0x10] sm:$0xff]
        %v888 = vld [vmem:[%s6 + $0x18] sm:$0xff]
        %v889 = vld [vmem:[%s6 + $0x20] sm:$0xff]
        %v890 = vld [vmem:[%s6 + $0x28] sm:$0xff]
        %v891 = vld [vmem:[%s6 + $0x30] sm:$0xff]
        %v892 = vld [vmem:[%s6 + $0x38] sm:$0xff]
        %v893 = vld [vmem:[%s7] sm:$0x1]
        %v895 = vlaneseq
        %v896 = vshrl.u32 %v895, 7
        %v897 = vsub.s32 0, %v896
        %v898 = vrot.slane %v893, %v897
        %vm900 = vcmask 523264
        %v902 = vsel %vm900, %v877, 0
        %v905 = vsel %vm900, %v878, 0
        %v908 = vsel %vm900, %v879, 0
        %v911 = vsel %vm900, %v880, 0
        %v914 = vsel %vm900, %v881, 0
        %v917 = vsel %vm900, %v882, 0
        %v920 = vsel %vm900, %v883, 0
        %v923 = vsel %vm900, %v884, 0
        %925 = vmatprep.subr.mxu0 0.0
        %926 = vmatpush1.msra.mxu0 %v885
        %927 = vmatprep.subr.mxu0 0.0
        %928 = vmatpush1.msra.mxu0 %v886
        %929 = vmatprep.subr.mxu0 0.0
        %930 = vmatpush1.msra.mxu0 %v887
        %931 = vmatprep.subr.mxu0 0.0
        %932 = vmatpush1.msra.mxu0 %v888
        %933 = vmatprep.subr.mxu0 0.0
        %934 = vmatpush1.msra.mxu0 %v889
        %935 = vmatprep.subr.mxu0 0.0
        %936 = vmatpush1.msra.mxu0 %v890
        %937 = vmatprep.subr.mxu0 0.0
        %938 = vmatpush1.msra.mxu0 %v891
        %939 = vmatprep.subr.mxu0 0.0
        %940 = vmatpush1.msra.mxu0 %v892
        %941 = vmatprep.subr.mxu0 0.0
        %942 = vmatpush1.msra.mxu0 0.0
        %943 = vmatprep.subr.mxu0 0.0
        %944 = vmatpush1.msra.mxu0 0.0
        %945 = vmatprep.subr.mxu0 0.0
        %946 = vmatpush1.msra.mxu0 0.0
        %947 = vmatprep.subr.mxu0 0.0
        %948 = vmatpush1.msra.mxu0 0.0
        %949 = vmatprep.subr.mxu0 0.0
        %950 = vmatpush1.msra.mxu0 0.0
        %951 = vmatprep.subr.mxu0 0.0
        %952 = vmatpush1.msra.mxu0 0.0
        %953 = vmatprep.subr.mxu0 0.0
        %954 = vmatpush1.msra.mxu0 0.0
        %955 = vmatprep.subr.mxu0 0.0
        %956 = vmatpush1.msra.mxu0 0.0
        %957 = vmatprep.subr.mxu0 0.0
        %958 = vmatpush1.msra.mxu0 0.0
        %959 = vmatprep.subr.mxu0 0.0
        %960 = vmatpush1.msra.mxu0 0.0
        %961 = vmatprep.subr.mxu0 0.0
        %962 = vmatpush1.msra.mxu0 0.0
        %963 = vmatprep.subr.mxu0 0.0
        %964 = vmatpush1.msra.mxu0 0.0
        %965 = vmatprep.subr.mxu0 0.0
        %966 = vmatpush1.msra.mxu0 0.0
        %967 = vmatprep.subr.mxu0 0.0
        %968 = vmatpush1.msra.mxu0 0.0
        %969 = vmatprep.subr.mxu0 0.0
        %970 = vmatpush1.msra.mxu0 0.0
        %971 = vmatprep.subr.mxu0 0.0
        %972 = vmatpush1.msra.mxu0 0.0
        %973 = vmatprep.subr.mxu0 0.0
        %974 = vmatpush1.msra.mxu0 0.0
        %975 = vmatprep.subr.mxu0 0.0
        %976 = vmatpush1.msra.mxu0 0.0
        %977 = vmatprep.subr.mxu0 0.0
        %978 = vmatpush1.msra.mxu0 0.0
        %979 = vmatprep.subr.mxu0 0.0
        %980 = vmatpush1.msra.mxu0 0.0
        %981 = vmatprep.subr.mxu0 0.0
        %982 = vmatpush1.msra.mxu0 0.0
        %983 = vmatprep.subr.mxu0 0.0
        %984 = vmatpush1.msra.mxu0 0.0
        %985 = vmatprep.subr.mxu0 0.0
        %986 = vmatpush1.msra.mxu0 0.0
        %987 = vmatprep.subr.mxu0 0.0
        %988 = vmatpush1.msra.mxu0 0.0
        %989 = vmatprep.mubr.f32.mxu0 0.0
        %990 = vmatmul.mubr.f32.gmra.mrb[0].mxu0 %v902
        %v991 = vpop.f32.mrb[0].mxu0
        %v992 = vadd.f32 %v898, %v991
        %v993 = vpop.f32.mrb[0].mxu0
        %994 = vmatprep.mubr.f32.mxu0 0.0
        %995 = vmatmul.mubr.f32.gmra.mrb[0].mxu0 %v905
        %v996 = vpop.f32.mrb[0].mxu0
        %v997 = vadd.f32 %v898, %v996
        %v998 = vpop.f32.mrb[0].mxu0
        %999 = vmatprep.mubr.f32.mxu0 0.0
        %1000 = vmatmul.mubr.f32.gmra.mrb[0].mxu0 %v908
        %v1001 = vpop.f32.mrb[0].mxu0
        %v1002 = vadd.f32 %v898, %v1001
        %v1003 = vpop.f32.mrb[0].mxu0
        %1004 = vmatprep.mubr.f32.mxu0 0.0
        %1005 = vmatmul.mubr.f32.gmra.mrb[0].mxu0 %v911
        %v1006 = vpop.f32.mrb[0].mxu0
        %v1007 = vadd.f32 %v898, %v1006
        %v1008 = vpop.f32.mrb[0].mxu0
        %1009 = vmatprep.mubr.f32.mxu0 0.0
        %1010 = vmatmul.mubr.f32.gmra.mrb[0].mxu0 %v914
        %v1011 = vpop.f32.mrb[0].mxu0
        %v1012 = vadd.f32 %v898, %v1011
        %v1013 = vpop.f32.mrb[0].mxu0
        %1014 = vmatprep.mubr.f32.mxu0 0.0
        %1015 = vmatmul.mubr.f32.gmra.mrb[0].mxu0 %v917
        %v1016 = vpop.f32.mrb[0].mxu0
        %v1017 = vadd.f32 %v898, %v1016
        %v1018 = vpop.f32.mrb[0].mxu0
        %1019 = vmatprep.mubr.f32.mxu0 0.0
        %1020 = vmatmul.mubr.f32.gmra.mrb[0].mxu0 %v920
        %v1021 = vpop.f32.mrb[0].mxu0
        %v1022 = vadd.f32 %v898, %v1021
        %v1023 = vpop.f32.mrb[0].mxu0
        %1024 = vmatprep.mubr.f32.mxu0 0.0
        %1025 = vmatmul.mubr.f32.gmra.mrb[0].mxu0 %v923
        %v1026 = vpop.f32.mrb[0].mxu0
        %v1027 = vadd.f32 %v898, %v1026
        %v1028 = vpop.f32.mrb[0].mxu0
        %1029 = vdwg.mxu0
        %v1030 = vrot.slane %v877, 4
        %v1031 = vrot.slane %v878, 4
        %v1032 = vrot.slane %v879, 4
        %v1033 = vrot.slane %v880, 4
        %v1034 = vrot.slane %v881, 4
        %v1035 = vrot.slane %v882, 4
        %v1036 = vrot.slane %v883, 4
        %v1037 = vrot.slane %v884, 4
        %vm1046 = vcmask 1043456
        %v1047 = vsel %vm1046, 0.0, %v1030
        %v1048 = vsel %vm1046, 0.0, %v1031
        %v1049 = vsel %vm1046, 0.0, %v1032
        %v1050 = vsel %vm1046, 0.0, %v1033
        %v1051 = vsel %vm1046, 0.0, %v1034
        %v1052 = vsel %vm1046, 0.0, %v1035
        %v1053 = vsel %vm1046, 0.0, %v1036
        %v1054 = vsel %vm1046, 0.0, %v1037
        %vm1063 = vcmask 1046528
        %v1064 = vrot.slane %v1047, 1
        %v1065 = vrot.slane %v1030, 1
        %v1066 = vsel %vm1063, %v1064, %v1065
        %v1067 = vrot.slane %v1048, 1
        %v1068 = vrot.slane %v1031, 1
        %v1069 = vsel %vm1063, %v1067, %v1068
        %v1070 = vrot.slane %v1049, 1
        %v1071 = vrot.slane %v1032, 1
        %v1072 = vsel %vm1063, %v1070, %v1071
        %v1073 = vrot.slane %v1050, 1
        %v1074 = vrot.slane %v1033, 1
        %v1075 = vsel %vm1063, %v1073, %v1074
        %v1076 = vrot.slane %v1051, 1
        %v1077 = vrot.slane %v1034, 1
        %v1078 = vsel %vm1063, %v1076, %v1077
        %v1079 = vrot.slane %v1052, 1
        %v1080 = vrot.slane %v1035, 1
        %v1081 = vsel %vm1063, %v1079, %v1080
        %v1082 = vrot.slane %v1053, 1
        %v1083 = vrot.slane %v1036, 1
        %v1084 = vsel %vm1063, %v1082, %v1083
        %v1085 = vrot.slane %v1054, 1
        %v1086 = vrot.slane %v1037, 1
        %v1087 = vsel %vm1063, %v1085, %v1086
        %1088 = vrot.lane.b32.xlu0 %v1066, 64
        %v1089 = vpop.permute.xlu0 %1088
        %1090 = vrot.lane.b32.xlu0 %v1069, 64
        %v1091 = vpop.permute.xlu0 %1090
        %1092 = vrot.lane.b32.xlu0 %v1072, 64
        %v1093 = vpop.permute.xlu0 %1092
        %1094 = vrot.lane.b32.xlu0 %v1075, 64
        %v1095 = vpop.permute.xlu0 %1094
        %1096 = vrot.lane.b32.xlu0 %v1078, 64
        %v1097 = vpop.permute.xlu0 %1096
        %1098 = vrot.lane.b32.xlu0 %v1081, 64
        %v1099 = vpop.permute.xlu0 %1098
        %1100 = vrot.lane.b32.xlu0 %v1084, 64
        %v1101 = vpop.permute.xlu0 %1100
        %1102 = vrot.lane.b32.xlu0 %v1087, 64
        %v1103 = vpop.permute.xlu0 %1102
        %vm1112 = vcmask 1045504
        %v1113 = vrot.slane %v1047, 2
        %v1114 = vrot.slane %v1030, 2
        %v1115 = vsel %vm1112, %v1113, %v1114
        %v1116 = vrot.slane %v1048, 2
        %v1117 = vrot.slane %v1031, 2
        %v1118 = vsel %vm1112, %v1116, %v1117
        %v1119 = vrot.slane %v1049, 2
        %v1120 = vrot.slane %v1032, 2
        %v1121 = vsel %vm1112, %v1119, %v1120
        %v1122 = vrot.slane %v1050, 2
        %v1123 = vrot.slane %v1033, 2
        %v1124 = vsel %vm1112, %v1122, %v1123
        %v1125 = vrot.slane %v1051, 2
        %v1126 = vrot.slane %v1034, 2
        %v1127 = vsel %vm1112, %v1125, %v1126
        %v1128 = vrot.slane %v1052, 2
        %v1129 = vrot.slane %v1035, 2
        %v1130 = vsel %vm1112, %v1128, %v1129
        %v1131 = vrot.slane %v1053, 2
        %v1132 = vrot.slane %v1036, 2
        %v1133 = vsel %vm1112, %v1131, %v1132
        %v1134 = vrot.slane %v1054, 2
        %v1135 = vrot.slane %v1037, 2
        %v1136 = vsel %vm1112, %v1134, %v1135
        %vm1145 = vcmask 1044480
        %v1146 = vrot.slane %v1047, 3
        %v1147 = vrot.slane %v1030, 3
        %v1148 = vsel %vm1145, %v1146, %v1147
        %v1149 = vrot.slane %v1048, 3
        %v1150 = vrot.slane %v1031, 3
        %v1151 = vsel %vm1145, %v1149, %v1150
        %v1152 = vrot.slane %v1049, 3
        %v1153 = vrot.slane %v1032, 3
        %v1154 = vsel %vm1145, %v1152, %v1153
        %v1155 = vrot.slane %v1050, 3
        %v1156 = vrot.slane %v1033, 3
        %v1157 = vsel %vm1145, %v1155, %v1156
        %v1158 = vrot.slane %v1051, 3
        %v1159 = vrot.slane %v1034, 3
        %v1160 = vsel %vm1145, %v1158, %v1159
        %v1161 = vrot.slane %v1052, 3
        %v1162 = vrot.slane %v1035, 3
        %v1163 = vsel %vm1145, %v1161, %v1162
        %v1164 = vrot.slane %v1053, 3
        %v1165 = vrot.slane %v1036, 3
        %v1166 = vsel %vm1145, %v1164, %v1165
        %v1167 = vrot.slane %v1054, 3
        %v1168 = vrot.slane %v1037, 3
        %v1169 = vsel %vm1145, %v1167, %v1168
        %1170 = vrot.lane.b32.xlu0 %v1148, 64
        %v1171 = vpop.permute.xlu0 %1170
        %1172 = vrot.lane.b32.xlu0 %v1151, 64
        %v1173 = vpop.permute.xlu0 %1172
        %1174 = vrot.lane.b32.xlu0 %v1154, 64
        %v1175 = vpop.permute.xlu0 %1174
        %1176 = vrot.lane.b32.xlu0 %v1157, 64
        %v1177 = vpop.permute.xlu0 %1176
        %1178 = vrot.lane.b32.xlu0 %v1160, 64
        %v1179 = vpop.permute.xlu0 %1178
        %1180 = vrot.lane.b32.xlu0 %v1163, 64
        %v1181 = vpop.permute.xlu0 %1180
        %1182 = vrot.lane.b32.xlu0 %v1166, 64
        %v1183 = vpop.permute.xlu0 %1182
        %1184 = vrot.lane.b32.xlu0 %v1169, 64
        %v1185 = vpop.permute.xlu0 %1184
        %v1194 = vrot.slane %v1047, 4
        %v1195 = vrot.slane %v1030, 4
        %v1196 = vsel %vm1046, %v1194, %v1195
        %v1197 = vrot.slane %v1048, 4
        %v1198 = vrot.slane %v1031, 4
        %v1199 = vsel %vm1046, %v1197, %v1198
        %v1200 = vrot.slane %v1049, 4
        %v1201 = vrot.slane %v1032, 4
        %v1202 = vsel %vm1046, %v1200, %v1201
        %v1203 = vrot.slane %v1050, 4
        %v1204 = vrot.slane %v1033, 4
        %v1205 = vsel %vm1046, %v1203, %v1204
        %v1206 = vrot.slane %v1051, 4
        %v1207 = vrot.slane %v1034, 4
        %v1208 = vsel %vm1046, %v1206, %v1207
        %v1209 = vrot.slane %v1052, 4
        %v1210 = vrot.slane %v1035, 4
        %v1211 = vsel %vm1046, %v1209, %v1210
        %v1212 = vrot.slane %v1053, 4
        %v1213 = vrot.slane %v1036, 4
        %v1214 = vsel %vm1046, %v1212, %v1213
        %v1215 = vrot.slane %v1054, 4
        %v1216 = vrot.slane %v1037, 4
        %v1217 = vsel %vm1046, %v1215, %v1216
        %v1218 = vsel %vm900, %v1047, %v1089
        %v1219 = vsel %vm900, %v1048, %v1091
        %v1220 = vsel %vm900, %v1049, %v1093
        %v1221 = vsel %vm900, %v1050, %v1095
        %v1222 = vsel %vm900, %v1051, %v1097
        %v1223 = vsel %vm900, %v1052, %v1099
        %v1224 = vsel %vm900, %v1053, %v1101
        %v1225 = vsel %vm900, %v1054, %v1103
        %v1226 = vsel %vm900, %v1115, %v1171
        %v1227 = vsel %vm900, %v1118, %v1173
        %v1228 = vsel %vm900, %v1121, %v1175
        %v1229 = vsel %vm900, %v1124, %v1177
        %v1230 = vsel %vm900, %v1127, %v1179
        %v1231 = vsel %vm900, %v1130, %v1181
        %v1232 = vsel %vm900, %v1133, %v1183
        %v1233 = vsel %vm900, %v1136, %v1185
        %v1234 = vld [vmem:[%s8] sm:$0xff]
        %v1235 = vld [vmem:[%s8 + $0x8] sm:$0xff]
        %v1236 = vld [vmem:[%s8 + $0x10] sm:$0xff]
        %v1237 = vld [vmem:[%s8 + $0x18] sm:$0xff]
        %v1238 = vld [vmem:[%s8 + $0x20] sm:$0xff]
        %v1239 = vld [vmem:[%s8 + $0x28] sm:$0xff]
        %v1240 = vld [vmem:[%s8 + $0x30] sm:$0xff]
        %v1241 = vld [vmem:[%s8 + $0x38] sm:$0xff]
        %v1242 = vld [vmem:[%s8 + $0x40] sm:$0xff]
        %v1243 = vld [vmem:[%s8 + $0x48] sm:$0xff]
        %v1244 = vld [vmem:[%s8 + $0x50] sm:$0xff]
        %v1245 = vld [vmem:[%s8 + $0x58] sm:$0xff]
        %v1246 = vld [vmem:[%s8 + $0x60] sm:$0xff]
        %v1247 = vld [vmem:[%s8 + $0x68] sm:$0xff]
        %v1248 = vld [vmem:[%s8 + $0x70] sm:$0xff]
        %v1249 = vld [vmem:[%s8 + $0x78] sm:$0xff]
        %v1250 = vld [vmem:[%s8 + $0x80] sm:$0xff]
        %v1251 = vld [vmem:[%s8 + $0x88] sm:$0xff]
        %v1252 = vld [vmem:[%s8 + $0x90] sm:$0xff]
        %v1253 = vld [vmem:[%s8 + $0x98] sm:$0xff]
        %v1254 = vld [vmem:[%s8 + $0xa0] sm:$0xff]
        %v1255 = vld [vmem:[%s8 + $0xa8] sm:$0xff]
        %v1256 = vld [vmem:[%s8 + $0xb0] sm:$0xff]
        %v1257 = vld [vmem:[%s8 + $0xb8] sm:$0xff]
        %v1258 = vld [vmem:[%s8 + $0xc0] sm:$0xff]
        %v1259 = vld [vmem:[%s8 + $0xc8] sm:$0xff]
        %v1260 = vld [vmem:[%s8 + $0xd0] sm:$0xff]
        %v1261 = vld [vmem:[%s8 + $0xd8] sm:$0xff]
        %v1262 = vld [vmem:[%s8 + $0xe0] sm:$0xff]
        %v1263 = vld [vmem:[%s8 + $0xe8] sm:$0xff]
        %v1264 = vld [vmem:[%s8 + $0xf0] sm:$0xff]
        %v1265 = vld [vmem:[%s8 + $0xf8] sm:$0xff]
        %v1266 = vld [vmem:[%s8 + $0x100] sm:$0xff]
        %v1267 = vld [vmem:[%s8 + $0x108] sm:$0xff]
        %v1268 = vld [vmem:[%s8 + $0x110] sm:$0xff]
        %v1269 = vld [vmem:[%s8 + $0x118] sm:$0xff]
        %v1270 = vld [vmem:[%s8 + $0x120] sm:$0xff]
        %v1271 = vld [vmem:[%s8 + $0x128] sm:$0xff]
        %v1272 = vld [vmem:[%s8 + $0x130] sm:$0xff]
        %v1273 = vld [vmem:[%s8 + $0x138] sm:$0xff]
        %v1274 = vld [vmem:[%s9] sm:$0x1]
        %v1276 = vlaneseq
        %v1277 = vshrl.u32 %v1276, 7
        %v1278 = vsub.s32 0, %v1277
        %v1279 = vrot.slane %v1274, %v1278
        %v1281 = vsel %vm900, %v1196, 0
        %v1283 = vsel %vm900, %v1199, 0
        %v1285 = vsel %vm900, %v1202, 0
        %v1287 = vsel %vm900, %v1205, 0
        %v1289 = vsel %vm900, %v1208, 0
        %v1291 = vsel %vm900, %v1211, 0
        %v1293 = vsel %vm900, %v1214, 0
        %v1295 = vsel %vm900, %v1217, 0
        %1297 = vmatprep.subr.mxu0 0.0
        %1298 = vmatpush1.msra.mxu0 %v1234
        %1299 = vmatprep.subr.mxu0 0.0
        %1300 = vmatpush1.msra.mxu0 %v1235
        %1301 = vmatprep.subr.mxu0 0.0
        %1302 = vmatpush1.msra.mxu0 %v1236
        %1303 = vmatprep.subr.mxu0 0.0
        %1304 = vmatpush1.msra.mxu0 %v1237
        %1305 = vmatprep.subr.mxu0 0.0
        %1306 = vmatpush1.msra.mxu0 %v1238
        %1307 = vmatprep.subr.mxu0 0.0
        %1308 = vmatpush1.msra.mxu0 %v1239
        %1309 = vmatprep.subr.mxu0 0.0
        %1310 = vmatpush1.msra.mxu0 %v1240
        %1311 = vmatprep.subr.mxu0 0.0
        %1312 = vmatpush1.msra.mxu0 %v1241
        %1313 = vmatprep.subr.mxu0 0.0
        %1314 = vmatpush1.msra.mxu0 %v1242
        %1315 = vmatprep.subr.mxu0 0.0
        %1316 = vmatpush1.msra.mxu0 %v1243
        %1317 = vmatprep.subr.mxu0 0.0
        %1318 = vmatpush1.msra.mxu0 %v1244
        %1319 = vmatprep.subr.mxu0 0.0
        %1320 = vmatpush1.msra.mxu0 %v1245
        %1321 = vmatprep.subr.mxu0 0.0
        %1322 = vmatpush1.msra.mxu0 %v1246
        %1323 = vmatprep.subr.mxu0 0.0
        %1324 = vmatpush1.msra.mxu0 %v1247
        %1325 = vmatprep.subr.mxu0 0.0
        %1326 = vmatpush1.msra.mxu0 %v1248
        %1327 = vmatprep.subr.mxu0 0.0
        %1328 = vmatpush1.msra.mxu0 %v1249
        %1329 = vmatprep.subr.mxu0 0.0
        %1330 = vmatpush1.msra.mxu0 %v1250
        %1331 = vmatprep.subr.mxu0 0.0
        %1332 = vmatpush1.msra.mxu0 %v1251
        %1333 = vmatprep.subr.mxu0 0.0
        %1334 = vmatpush1.msra.mxu0 %v1252
        %1335 = vmatprep.subr.mxu0 0.0
        %1336 = vmatpush1.msra.mxu0 %v1253
        %1337 = vmatprep.subr.mxu0 0.0
        %1338 = vmatpush1.msra.mxu0 %v1254
        %1339 = vmatprep.subr.mxu0 0.0
        %1340 = vmatpush1.msra.mxu0 %v1255
        %1341 = vmatprep.subr.mxu0 0.0
        %1342 = vmatpush1.msra.mxu0 %v1256
        %1343 = vmatprep.subr.mxu0 0.0
        %1344 = vmatpush1.msra.mxu0 %v1257
        %1345 = vmatprep.subr.mxu0 0.0
        %1346 = vmatpush1.msra.mxu0 %v1258
        %1347 = vmatprep.subr.mxu0 0.0
        %1348 = vmatpush1.msra.mxu0 %v1259
        %1349 = vmatprep.subr.mxu0 0.0
        %1350 = vmatpush1.msra.mxu0 %v1260
        %1351 = vmatprep.subr.mxu0 0.0
        %1352 = vmatpush1.msra.mxu0 %v1261
        %1353 = vmatprep.subr.mxu0 0.0
        %1354 = vmatpush1.msra.mxu0 %v1262
        %1355 = vmatprep.subr.mxu0 0.0
        %1356 = vmatpush1.msra.mxu0 %v1263
        %1357 = vmatprep.subr.mxu0 0.0
        %1358 = vmatpush1.msra.mxu0 %v1264
        %1359 = vmatprep.subr.mxu0 0.0
        %1360 = vmatpush1.msra.mxu0 %v1265
        %1361 = vmatprep.mubr.f32.mxu0 %v1226
        %1362 = vmatmul.mubr.f32.gmra.mrb[0].mxu0 %v1218
        %v1363 = vpop.f32.mrb[0].mxu0
        %v1364 = vadd.f32 %v1279, %v1363
        %v1365 = vpop.f32.mrb[0].mxu0
        %1366 = vmatprep.mubr.f32.mxu0 %v1227
        %1367 = vmatmul.mubr.f32.gmra.mrb[0].mxu0 %v1219
        %v1368 = vpop.f32.mrb[0].mxu0
        %v1369 = vadd.f32 %v1279, %v1368
        %v1370 = vpop.f32.mrb[0].mxu0
        %1371 = vmatprep.mubr.f32.mxu0 %v1228
        %1372 = vmatmul.mubr.f32.gmra.mrb[0].mxu0 %v1220
        %v1373 = vpop.f32.mrb[0].mxu0
        %v1374 = vadd.f32 %v1279, %v1373
        %v1375 = vpop.f32.mrb[0].mxu0
        %1376 = vmatprep.mubr.f32.mxu0 %v1229
        %1377 = vmatmul.mubr.f32.gmra.mrb[0].mxu0 %v1221
        %v1378 = vpop.f32.mrb[0].mxu0
        %v1379 = vadd.f32 %v1279, %v1378
        %v1380 = vpop.f32.mrb[0].mxu0
        %1381 = vmatprep.mubr.f32.mxu0 %v1230
        %1382 = vmatmul.mubr.f32.gmra.mrb[0].mxu0 %v1222
        %v1383 = vpop.f32.mrb[0].mxu0
        %v1384 = vadd.f32 %v1279, %v1383
        %v1385 = vpop.f32.mrb[0].mxu0
        %1386 = vmatprep.mubr.f32.mxu0 %v1231
        %1387 = vmatmul.mubr.f32.gmra.mrb[0].mxu0 %v1223
        %v1388 = vpop.f32.mrb[0].mxu0
        %v1389 = vadd.f32 %v1279, %v1388
        %v1390 = vpop.f32.mrb[0].mxu0
        %1391 = vmatprep.mubr.f32.mxu0 %v1232
        %1392 = vmatmul.mubr.f32.gmra.mrb[0].mxu0 %v1224
        %v1393 = vpop.f32.mrb[0].mxu0
        %v1394 = vadd.f32 %v1279, %v1393
        %v1395 = vpop.f32.mrb[0].mxu0
        %1396 = vmatprep.mubr.f32.mxu0 %v1233
        %1397 = vmatmul.mubr.f32.gmra.mrb[0].mxu0 %v1225
        %v1398 = vpop.f32.mrb[0].mxu0
        %v1399 = vadd.f32 %v1279, %v1398
        %v1400 = vpop.f32.mrb[0].mxu0
        %1401 = vdwg.mxu0
        %1402 = vmatprep.subr.mxu0 0.0
        %1403 = vmatpush1.msra.mxu0 %v1266
        %1404 = vmatprep.subr.mxu0 0.0
        %1405 = vmatpush1.msra.mxu0 %v1267
        %1406 = vmatprep.subr.mxu0 0.0
        %1407 = vmatpush1.msra.mxu0 %v1268
        %1408 = vmatprep.subr.mxu0 0.0
        %1409 = vmatpush1.msra.mxu0 %v1269
        %1410 = vmatprep.subr.mxu0 0.0
        %1411 = vmatpush1.msra.mxu0 %v1270
        %1412 = vmatprep.subr.mxu0 0.0
        %1413 = vmatpush1.msra.mxu0 %v1271
        %1414 = vmatprep.subr.mxu0 0.0
        %1415 = vmatpush1.msra.mxu0 %v1272
        %1416 = vmatprep.subr.mxu0 0.0
        %1417 = vmatpush1.msra.mxu0 %v1273
        %1418 = vmatprep.subr.mxu0 0.0
        %1419 = vmatpush1.msra.mxu0 0.0
        %1420 = vmatprep.subr.mxu0 0.0
        %1421 = vmatpush1.msra.mxu0 0.0
        %1422 = vmatprep.subr.mxu0 0.0
        %1423 = vmatpush1.msra.mxu0 0.0
        %1424 = vmatprep.subr.mxu0 0.0
        %1425 = vmatpush1.msra.mxu0 0.0
        %1426 = vmatprep.subr.mxu0 0.0
        %1427 = vmatpush1.msra.mxu0 0.0
        %1428 = vmatprep.subr.mxu0 0.0
        %1429 = vmatpush1.msra.mxu0 0.0
        %1430 = vmatprep.subr.mxu0 0.0
        %1431 = vmatpush1.msra.mxu0 0.0
        %1432 = vmatprep.subr.mxu0 0.0
        %1433 = vmatpush1.msra.mxu0 0.0
        %1434 = vmatprep.subr.mxu0 0.0
        %1435 = vmatpush1.msra.mxu0 0.0
        %1436 = vmatprep.subr.mxu0 0.0
        %1437 = vmatpush1.msra.mxu0 0.0
        %1438 = vmatprep.subr.mxu0 0.0
        %1439 = vmatpush1.msra.mxu0 0.0
        %1440 = vmatprep.subr.mxu0 0.0
        %1441 = vmatpush1.msra.mxu0 0.0
        %1442 = vmatprep.subr.mxu0 0.0
        %1443 = vmatpush1.msra.mxu0 0.0
        %1444 = vmatprep.subr.mxu0 0.0
        %1445 = vmatpush1.msra.mxu0 0.0
        %1446 = vmatprep.subr.mxu0 0.0
        %1447 = vmatpush1.msra.mxu0 0.0
        %1448 = vmatprep.subr.mxu0 0.0
        %1449 = vmatpush1.msra.mxu0 0.0
        %1450 = vmatprep.subr.mxu0 0.0
        %1451 = vmatpush1.msra.mxu0 0.0
        %1452 = vmatprep.subr.mxu0 0.0
        %1453 = vmatpush1.msra.mxu0 0.0
        %1454 = vmatprep.subr.mxu0 0.0
        %1455 = vmatpush1.msra.mxu0 0.0
        %1456 = vmatprep.subr.mxu0 0.0
        %1457 = vmatpush1.msra.mxu0 0.0
        %1458 = vmatprep.subr.mxu0 0.0
        %1459 = vmatpush1.msra.mxu0 0.0
        %1460 = vmatprep.subr.mxu0 0.0
        %1461 = vmatpush1.msra.mxu0 0.0
        %1462 = vmatprep.subr.mxu0 0.0
        %1463 = vmatpush1.msra.mxu0 0.0
        %1464 = vmatprep.subr.mxu0 0.0
        %1465 = vmatpush1.msra.mxu0 0.0
        %1466 = vmatprep.mubr.f32.mxu0 0.0
        %1467 = vmatmul.mubr.f32.gmra.mrb[0].mxu0 %v1281
        %v1468 = vpop.f32.mrb[0].mxu0
        %v1469 = vadd.f32 %v1364, %v1468
        %v1470 = vpop.f32.mrb[0].mxu0
        %1471 = vmatprep.mubr.f32.mxu0 0.0
        %1472 = vmatmul.mubr.f32.gmra.mrb[0].mxu0 %v1283
        %v1473 = vpop.f32.mrb[0].mxu0
        %v1474 = vadd.f32 %v1369, %v1473
        %v1475 = vpop.f32.mrb[0].mxu0
        %1476 = vmatprep.mubr.f32.mxu0 0.0
        %1477 = vmatmul.mubr.f32.gmra.mrb[0].mxu0 %v1285
        %v1478 = vpop.f32.mrb[0].mxu0
        %v1479 = vadd.f32 %v1374, %v1478
        %v1480 = vpop.f32.mrb[0].mxu0
        %1481 = vmatprep.mubr.f32.mxu0 0.0
        %1482 = vmatmul.mubr.f32.gmra.mrb[0].mxu0 %v1287
        %v1483 = vpop.f32.mrb[0].mxu0
        %v1484 = vadd.f32 %v1379, %v1483
        %v1485 = vpop.f32.mrb[0].mxu0
        %1486 = vmatprep.mubr.f32.mxu0 0.0
        %1487 = vmatmul.mubr.f32.gmra.mrb[0].mxu0 %v1289
        %v1488 = vpop.f32.mrb[0].mxu0
        %v1489 = vadd.f32 %v1384, %v1488
        %v1490 = vpop.f32.mrb[0].mxu0
        %1491 = vmatprep.mubr.f32.mxu0 0.0
        %1492 = vmatmul.mubr.f32.gmra.mrb[0].mxu0 %v1291
        %v1493 = vpop.f32.mrb[0].mxu0
        %v1494 = vadd.f32 %v1389, %v1493
        %v1495 = vpop.f32.mrb[0].mxu0
        %1496 = vmatprep.mubr.f32.mxu0 0.0
        %1497 = vmatmul.mubr.f32.gmra.mrb[0].mxu0 %v1293
        %v1498 = vpop.f32.mrb[0].mxu0
        %v1499 = vadd.f32 %v1394, %v1498
        %v1500 = vpop.f32.mrb[0].mxu0
        %1501 = vmatprep.mubr.f32.mxu0 0.0
        %1502 = vmatmul.mubr.f32.gmra.mrb[0].mxu0 %v1295
        %v1503 = vpop.f32.mrb[0].mxu0
        %v1504 = vadd.f32 %v1399, %v1503
        %v1505 = vpop.f32.mrb[0].mxu0
        %1506 = vdwg.mxu0
        %v1507 = vsub.f32 0.0, %v1469
        %v1508 = vsub.f32 0.0, %v1474
        %v1509 = vsub.f32 0.0, %v1479
        %v1510 = vsub.f32 0.0, %v1484
        %v1511 = vsub.f32 0.0, %v1489
        %v1512 = vsub.f32 0.0, %v1494
        %v1513 = vsub.f32 0.0, %v1499
        %v1514 = vsub.f32 0.0, %v1504
        %v1515 = vmul.f32 %v1507, 1.442695
        %v1516 = vpow.pop %v1515
        %v1517 = vmul.f32 %v1508, 1.442695
        %v1518 = vpow.pop %v1517
        %v1519 = vmul.f32 %v1509, 1.442695
        %v1520 = vpow.pop %v1519
        %v1521 = vmul.f32 %v1510, 1.442695
        %v1522 = vpow.pop %v1521
        %v1523 = vmul.f32 %v1511, 1.442695
        %v1524 = vpow.pop %v1523
        %v1525 = vmul.f32 %v1512, 1.442695
        %v1526 = vpow.pop %v1525
        %v1527 = vmul.f32 %v1513, 1.442695
        %v1528 = vpow.pop %v1527
        %v1529 = vmul.f32 %v1514, 1.442695
        %v1530 = vpow.pop %v1529
        %v1531 = vadd.f32 %v1516, 1.0
        %v1532 = vadd.f32 %v1518, 1.0
        %v1533 = vadd.f32 %v1520, 1.0
        %v1534 = vadd.f32 %v1522, 1.0
        %v1535 = vadd.f32 %v1524, 1.0
        %v1536 = vadd.f32 %v1526, 1.0
        %v1537 = vadd.f32 %v1528, 1.0
        %v1538 = vadd.f32 %v1530, 1.0
        %v1539 = vrcp.pop %v1531
        %v1540 = vmul.f32 1.0, %v1539
        %v1541 = vrcp.pop %v1532
        %v1542 = vmul.f32 1.0, %v1541
        %v1543 = vrcp.pop %v1533
        %v1544 = vmul.f32 1.0, %v1543
        %v1545 = vrcp.pop %v1534
        %v1546 = vmul.f32 1.0, %v1545
        %v1547 = vrcp.pop %v1535
        %v1548 = vmul.f32 1.0, %v1547
        %v1549 = vrcp.pop %v1536
        %v1550 = vmul.f32 1.0, %v1549
        %v1551 = vrcp.pop %v1537
        %v1552 = vmul.f32 1.0, %v1551
        %v1553 = vrcp.pop %v1538
        %v1554 = vmul.f32 1.0, %v1553
        %1563 = vrot.lane.b32.xlu0 %v1540, 96
        %v1564 = vpop.permute.xlu0 %1563
        %1565 = vrot.lane.b32.xlu0 %v1542, 96
        %v1566 = vpop.permute.xlu0 %1565
        %1567 = vrot.lane.b32.xlu0 %v1544, 96
        %v1568 = vpop.permute.xlu0 %1567
        %1569 = vrot.lane.b32.xlu0 %v1546, 96
        %v1570 = vpop.permute.xlu0 %1569
        %1571 = vrot.lane.b32.xlu0 %v1548, 96
        %v1572 = vpop.permute.xlu0 %1571
        %1573 = vrot.lane.b32.xlu0 %v1550, 96
        %v1574 = vpop.permute.xlu0 %1573
        %1575 = vrot.lane.b32.xlu0 %v1552, 96
        %v1576 = vpop.permute.xlu0 %1575
        %1577 = vrot.lane.b32.xlu0 %v1554, 96
        %v1578 = vpop.permute.xlu0 %1577
        %v1587 = vmul.f32 %v1469, %v1564
        %v1588 = vmul.f32 %v1474, %v1566
        %v1589 = vmul.f32 %v1479, %v1568
        %v1590 = vmul.f32 %v1484, %v1570
        %v1591 = vmul.f32 %v1489, %v1572
        %v1592 = vmul.f32 %v1494, %v1574
        %v1593 = vmul.f32 %v1499, %v1576
        %v1594 = vmul.f32 %v1504, %v1578
        %v1595 = vld [vmem:[%s10] sm:$0xff]
        %v1596 = vld [vmem:[%s10 + $0x8] sm:$0xff]
        %v1597 = vld [vmem:[%s10 + $0x10] sm:$0xff]
        %v1598 = vld [vmem:[%s10 + $0x18] sm:$0xff]
        %v1599 = vld [vmem:[%s11] sm:$0x1]
        %v1601 = vlaneseq
        %v1602 = vshrl.u32 %v1601, 7
        %v1603 = vsub.s32 0, %v1602
        %v1604 = vrot.slane %v1599, %v1603
        %v1607 = vsel %vm707, %v1587, 0
        %v1610 = vsel %vm707, %v1588, 0
        %v1613 = vsel %vm707, %v1589, 0
        %v1616 = vsel %vm707, %v1590, 0
        %v1619 = vsel %vm707, %v1591, 0
        %v1622 = vsel %vm707, %v1592, 0
        %v1625 = vsel %vm707, %v1593, 0
        %v1628 = vsel %vm707, %v1594, 0
        %1630 = vmatprep.subr.mxu0 0.0
        %1631 = vmatpush1.msra.mxu0 %v1595
        %1632 = vmatprep.subr.mxu0 0.0
        %1633 = vmatpush1.msra.mxu0 %v1596
        %1634 = vmatprep.subr.mxu0 0.0
        %1635 = vmatpush1.msra.mxu0 %v1597
        %1636 = vmatprep.subr.mxu0 0.0
        %1637 = vmatpush1.msra.mxu0 %v1598
        %1638 = vmatprep.subr.mxu0 0.0
        %1639 = vmatpush1.msra.mxu0 0.0
        %1640 = vmatprep.subr.mxu0 0.0
        %1641 = vmatpush1.msra.mxu0 0.0
        %1642 = vmatprep.subr.mxu0 0.0
        %1643 = vmatpush1.msra.mxu0 0.0
        %1644 = vmatprep.subr.mxu0 0.0
        %1645 = vmatpush1.msra.mxu0 0.0
        %1646 = vmatprep.subr.mxu0 0.0
        %1647 = vmatpush1.msra.mxu0 0.0
        %1648 = vmatprep.subr.mxu0 0.0
        %1649 = vmatpush1.msra.mxu0 0.0
        %1650 = vmatprep.subr.mxu0 0.0
        %1651 = vmatpush1.msra.mxu0 0.0
        %1652 = vmatprep.subr.mxu0 0.0
        %1653 = vmatpush1.msra.mxu0 0.0
        %1654 = vmatprep.subr.mxu0 0.0
        %1655 = vmatpush1.msra.mxu0 0.0
        %1656 = vmatprep.subr.mxu0 0.0
        %1657 = vmatpush1.msra.mxu0 0.0
        %1658 = vmatprep.subr.mxu0 0.0
        %1659 = vmatpush1.msra.mxu0 0.0
        %1660 = vmatprep.subr.mxu0 0.0
        %1661 = vmatpush1.msra.mxu0 0.0
        %1662 = vmatprep.subr.mxu0 0.0
        %1663 = vmatpush1.msra.mxu0 0.0
        %1664 = vmatprep.subr.mxu0 0.0
        %1665 = vmatpush1.msra.mxu0 0.0
        %1666 = vmatprep.subr.mxu0 0.0
        %1667 = vmatpush1.msra.mxu0 0.0
        %1668 = vmatprep.subr.mxu0 0.0
        %1669 = vmatpush1.msra.mxu0 0.0
        %1670 = vmatprep.subr.mxu0 0.0
        %1671 = vmatpush1.msra.mxu0 0.0
        %1672 = vmatprep.subr.mxu0 0.0
        %1673 = vmatpush1.msra.mxu0 0.0
        %1674 = vmatprep.subr.mxu0 0.0
        %1675 = vmatpush1.msra.mxu0 0.0
        %1676 = vmatprep.subr.mxu0 0.0
        %1677 = vmatpush1.msra.mxu0 0.0
        %1678 = vmatprep.subr.mxu0 0.0
        %1679 = vmatpush1.msra.mxu0 0.0
        %1680 = vmatprep.subr.mxu0 0.0
        %1681 = vmatpush1.msra.mxu0 0.0
        %1682 = vmatprep.subr.mxu0 0.0
        %1683 = vmatpush1.msra.mxu0 0.0
        %1684 = vmatprep.subr.mxu0 0.0
        %1685 = vmatpush1.msra.mxu0 0.0
        %1686 = vmatprep.subr.mxu0 0.0
        %1687 = vmatpush1.msra.mxu0 0.0
        %1688 = vmatprep.subr.mxu0 0.0
        %1689 = vmatpush1.msra.mxu0 0.0
        %1690 = vmatprep.subr.mxu0 0.0
        %1691 = vmatpush1.msra.mxu0 0.0
        %1692 = vmatprep.subr.mxu0 0.0
        %1693 = vmatpush1.msra.mxu0 0.0
        %1694 = vmatprep.mubr.f32.mxu0 0.0
        %1695 = vmatmul.mubr.f32.gmra.mrb[0].mxu0 %v1607
        %v1696 = vpop.f32.mrb[0].mxu0
        %v1697 = vadd.f32 %v1604, %v1696
        %v1698 = vpop.f32.mrb[0].mxu0
        %1699 = vmatprep.mubr.f32.mxu0 0.0
        %1700 = vmatmul.mubr.f32.gmra.mrb[0].mxu0 %v1610
        %v1701 = vpop.f32.mrb[0].mxu0
        %v1702 = vadd.f32 %v1604, %v1701
        %v1703 = vpop.f32.mrb[0].mxu0
        %1704 = vmatprep.mubr.f32.mxu0 0.0
        %1705 = vmatmul.mubr.f32.gmra.mrb[0].mxu0 %v1613
        %v1706 = vpop.f32.mrb[0].mxu0
        %v1707 = vadd.f32 %v1604, %v1706
        %v1708 = vpop.f32.mrb[0].mxu0
        %1709 = vmatprep.mubr.f32.mxu0 0.0
        %1710 = vmatmul.mubr.f32.gmra.mrb[0].mxu0 %v1616
        %v1711 = vpop.f32.mrb[0].mxu0
        %v1712 = vadd.f32 %v1604, %v1711
        %v1713 = vpop.f32.mrb[0].mxu0
        %1714 = vmatprep.mubr.f32.mxu0 0.0
        %1715 = vmatmul.mubr.f32.gmra.mrb[0].mxu0 %v1619
        %v1716 = vpop.f32.mrb[0].mxu0
        %v1717 = vadd.f32 %v1604, %v1716
        %v1718 = vpop.f32.mrb[0].mxu0
        %1719 = vmatprep.mubr.f32.mxu0 0.0
        %1720 = vmatmul.mubr.f32.gmra.mrb[0].mxu0 %v1622
        %v1721 = vpop.f32.mrb[0].mxu0
        %v1722 = vadd.f32 %v1604, %v1721
        %v1723 = vpop.f32.mrb[0].mxu0
        %1724 = vmatprep.mubr.f32.mxu0 0.0
        %1725 = vmatmul.mubr.f32.gmra.mrb[0].mxu0 %v1625
        %v1726 = vpop.f32.mrb[0].mxu0
        %v1727 = vadd.f32 %v1604, %v1726
        %v1728 = vpop.f32.mrb[0].mxu0
        %1729 = vmatprep.mubr.f32.mxu0 0.0
        %1730 = vmatmul.mubr.f32.gmra.mrb[0].mxu0 %v1628
        %v1731 = vpop.f32.mrb[0].mxu0
        %v1732 = vadd.f32 %v1604, %v1731
        %v1733 = vpop.f32.mrb[0].mxu0
        %1734 = vdwg.mxu0
        %v1735 = vadd.f32 %v1697, %v799
        %v1736 = vadd.f32 %v1702, %v804
        %v1737 = vadd.f32 %v1707, %v809
        %v1738 = vadd.f32 %v1712, %v814
        %v1739 = vadd.f32 %v1717, %v819
        %v1740 = vadd.f32 %v1722, %v824
        %v1741 = vadd.f32 %v1727, %v829
        %v1742 = vadd.f32 %v1732, %v834
        %v1743 = vmul.f32 %v1735, 0.70710677
        %v1744 = vmul.f32 %v1736, 0.70710677
        %v1745 = vmul.f32 %v1737, 0.70710677
        %v1746 = vmul.f32 %v1738, 0.70710677
        %v1747 = vmul.f32 %v1739, 0.70710677
        %v1748 = vmul.f32 %v1740, 0.70710677
        %v1749 = vmul.f32 %v1741, 0.70710677
        %v1750 = vmul.f32 %v1742, 0.70710677
        %v1751 = vld [vmem:[%s677] sm:$0xff]
        %v1752 = vld [vmem:[%s677 + $0x8] sm:$0xff]
        %v1753 = vld [vmem:[%s677 + $0x10] sm:$0xff]
        %v1754 = vld [vmem:[%s677 + $0x18] sm:$0xff]
        %v1755 = vld [vmem:[%s677 + $0x20] sm:$0xff]
        %v1756 = vld [vmem:[%s677 + $0x28] sm:$0xff]
        %v1757 = vld [vmem:[%s677 + $0x30] sm:$0xff]
        %v1758 = vld [vmem:[%s677 + $0x38] sm:$0xff]
        %v1759 = vld [vmem:[%s677 + $0x40] sm:$0xff]
        %v1760 = vld [vmem:[%s677 + $0x48] sm:$0xff]
        %v1761 = vld [vmem:[%s677 + $0x50] sm:$0xff]
        %v1762 = vld [vmem:[%s677 + $0x58] sm:$0xff]
        %v1763 = vld [vmem:[%s677 + $0x60] sm:$0xff]
        %v1764 = vld [vmem:[%s677 + $0x68] sm:$0xff]
        %v1765 = vld [vmem:[%s677 + $0x70] sm:$0xff]
        %v1766 = vld [vmem:[%s677 + $0x78] sm:$0xff]
        %v1767 = vld [vmem:[%s677 + $0x80] sm:$0xff]
        %v1768 = vld [vmem:[%s677 + $0x88] sm:$0xff]
        %v1769 = vld [vmem:[%s677 + $0x90] sm:$0xff]
        %v1770 = vld [vmem:[%s677 + $0x98] sm:$0xff]
        %v1771 = vld [vmem:[%s677 + $0xa0] sm:$0xff]
        %v1772 = vld [vmem:[%s677 + $0xa8] sm:$0xff]
        %v1773 = vld [vmem:[%s677 + $0xb0] sm:$0xff]
        %v1774 = vld [vmem:[%s677 + $0xb8] sm:$0xff]
        %v1775 = vld [vmem:[%s677 + $0xc0] sm:$0xff]
        %v1776 = vld [vmem:[%s677 + $0xc8] sm:$0xff]
        %v1777 = vld [vmem:[%s677 + $0xd0] sm:$0xff]
        %v1778 = vld [vmem:[%s677 + $0xd8] sm:$0xff]
        %v1779 = vld [vmem:[%s677 + $0xe0] sm:$0xff]
        %v1780 = vld [vmem:[%s677 + $0xe8] sm:$0xff]
        %v1781 = vld [vmem:[%s677 + $0xf0] sm:$0xff]
        %v1782 = vld [vmem:[%s677 + $0xf8] sm:$0xff]
        %v1784 = vsel %vm707, %v1743, 0
        %1786 = vmatprep.subr.mxu0 0.0
        %1787 = vmatpush1.msra.mxu0 %v1751
        %1788 = vmatprep.subr.mxu0 0.0
        %1789 = vmatpush1.msra.mxu0 %v1752
        %1790 = vmatprep.subr.mxu0 0.0
        %1791 = vmatpush1.msra.mxu0 %v1753
        %1792 = vmatprep.subr.mxu0 0.0
        %1793 = vmatpush1.msra.mxu0 %v1754
        %1794 = vmatprep.subr.mxu0 0.0
        %1795 = vmatpush1.msra.mxu0 0.0
        %1796 = vmatprep.subr.mxu0 0.0
        %1797 = vmatpush1.msra.mxu0 0.0
        %1798 = vmatprep.subr.mxu0 0.0
        %1799 = vmatpush1.msra.mxu0 0.0
        %1800 = vmatprep.subr.mxu0 0.0
        %1801 = vmatpush1.msra.mxu0 0.0
        %1802 = vmatprep.subr.mxu0 0.0
        %1803 = vmatpush1.msra.mxu0 0.0
        %1804 = vmatprep.subr.mxu0 0.0
        %1805 = vmatpush1.msra.mxu0 0.0
        %1806 = vmatprep.subr.mxu0 0.0
        %1807 = vmatpush1.msra.mxu0 0.0
        %1808 = vmatprep.subr.mxu0 0.0
        %1809 = vmatpush1.msra.mxu0 0.0
        %1810 = vmatprep.subr.mxu0 0.0
        %1811 = vmatpush1.msra.mxu0 0.0
        %1812 = vmatprep.subr.mxu0 0.0
        %1813 = vmatpush1.msra.mxu0 0.0
        %1814 = vmatprep.subr.mxu0 0.0
        %1815 = vmatpush1.msra.mxu0 0.0
        %1816 = vmatprep.subr.mxu0 0.0
        %1817 = vmatpush1.msra.mxu0 0.0
        %1818 = vmatprep.subr.mxu0 0.0
        %1819 = vmatpush1.msra.mxu0 0.0
        %1820 = vmatprep.subr.mxu0 0.0
        %1821 = vmatpush1.msra.mxu0 0.0
        %1822 = vmatprep.subr.mxu0 0.0
        %1823 = vmatpush1.msra.mxu0 0.0
        %1824 = vmatprep.subr.mxu0 0.0
        %1825 = vmatpush1.msra.mxu0 0.0
        %1826 = vmatprep.subr.mxu0 0.0
        %1827 = vmatpush1.msra.mxu0 0.0
        %1828 = vmatprep.subr.mxu0 0.0
        %1829 = vmatpush1.msra.mxu0 0.0
        %1830 = vmatprep.subr.mxu0 0.0
        %1831 = vmatpush1.msra.mxu0 0.0
        %1832 = vmatprep.subr.mxu0 0.0
        %1833 = vmatpush1.msra.mxu0 0.0
        %1834 = vmatprep.subr.mxu0 0.0
        %1835 = vmatpush1.msra.mxu0 0.0
        %1836 = vmatprep.subr.mxu0 0.0
        %1837 = vmatpush1.msra.mxu0 0.0
        %1838 = vmatprep.subr.mxu0 0.0
        %1839 = vmatpush1.msra.mxu0 0.0
        %1840 = vmatprep.subr.mxu0 0.0
        %1841 = vmatpush1.msra.mxu0 0.0
        %1842 = vmatprep.subr.mxu0 0.0
        %1843 = vmatpush1.msra.mxu0 0.0
        %1844 = vmatprep.subr.mxu0 0.0
        %1845 = vmatpush1.msra.mxu0 0.0
        %1846 = vmatprep.subr.mxu0 0.0
        %1847 = vmatpush1.msra.mxu0 0.0
        %1848 = vmatprep.subr.mxu0 0.0
        %1849 = vmatpush1.msra.mxu0 0.0
        %1850 = vmatprep.mubr.f32.mxu0 0.0
        %1851 = vmatmul.mubr.f32.gmra.mrb[0].mxu0 %v1784
        %v1852 = vpop.f32.mrb[0].mxu0
        %v1853 = vadd.f32 0.0, %v1852
        %v1854 = vpop.f32.mrb[0].mxu0
        %1855 = vdwg.mxu0
        %v1857 = vsel %vm707, %v1744, 0
        %1859 = vmatprep.subr.mxu0 0.0
        %1860 = vmatpush1.msra.mxu0 %v1755
        %1861 = vmatprep.subr.mxu0 0.0
        %1862 = vmatpush1.msra.mxu0 %v1756
        %1863 = vmatprep.subr.mxu0 0.0
        %1864 = vmatpush1.msra.mxu0 %v1757
        %1865 = vmatprep.subr.mxu0 0.0
        %1866 = vmatpush1.msra.mxu0 %v1758
        %1867 = vmatprep.subr.mxu0 0.0
        %1868 = vmatpush1.msra.mxu0 0.0
        %1869 = vmatprep.subr.mxu0 0.0
        %1870 = vmatpush1.msra.mxu0 0.0
        %1871 = vmatprep.subr.mxu0 0.0
        %1872 = vmatpush1.msra.mxu0 0.0
        %1873 = vmatprep.subr.mxu0 0.0
        %1874 = vmatpush1.msra.mxu0 0.0
        %1875 = vmatprep.subr.mxu0 0.0
        %1876 = vmatpush1.msra.mxu0 0.0
        %1877 = vmatprep.subr.mxu0 0.0
        %1878 = vmatpush1.msra.mxu0 0.0
        %1879 = vmatprep.subr.mxu0 0.0
        %1880 = vmatpush1.msra.mxu0 0.0
        %1881 = vmatprep.subr.mxu0 0.0
        %1882 = vmatpush1.msra.mxu0 0.0
        %1883 = vmatprep.subr.mxu0 0.0
        %1884 = vmatpush1.msra.mxu0 0.0
        %1885 = vmatprep.subr.mxu0 0.0
        %1886 = vmatpush1.msra.mxu0 0.0
        %1887 = vmatprep.subr.mxu0 0.0
        %1888 = vmatpush1.msra.mxu0 0.0
        %1889 = vmatprep.subr.mxu0 0.0
        %1890 = vmatpush1.msra.mxu0 0.0
        %1891 = vmatprep.subr.mxu0 0.0
        %1892 = vmatpush1.msra.mxu0 0.0
        %1893 = vmatprep.subr.mxu0 0.0
        %1894 = vmatpush1.msra.mxu0 0.0
        %1895 = vmatprep.subr.mxu0 0.0
        %1896 = vmatpush1.msra.mxu0 0.0
        %1897 = vmatprep.subr.mxu0 0.0
        %1898 = vmatpush1.msra.mxu0 0.0
        %1899 = vmatprep.subr.mxu0 0.0
        %1900 = vmatpush1.msra.mxu0 0.0
        %1901 = vmatprep.subr.mxu0 0.0
        %1902 = vmatpush1.msra.mxu0 0.0
        %1903 = vmatprep.subr.mxu0 0.0
        %1904 = vmatpush1.msra.mxu0 0.0
        %1905 = vmatprep.subr.mxu0 0.0
        %1906 = vmatpush1.msra.mxu0 0.0
        %1907 = vmatprep.subr.mxu0 0.0
        %1908 = vmatpush1.msra.mxu0 0.0
        %1909 = vmatprep.subr.mxu0 0.0
        %1910 = vmatpush1.msra.mxu0 0.0
        %1911 = vmatprep.subr.mxu0 0.0
        %1912 = vmatpush1.msra.mxu0 0.0
        %1913 = vmatprep.subr.mxu0 0.0
        %1914 = vmatpush1.msra.mxu0 0.0
        %1915 = vmatprep.subr.mxu0 0.0
        %1916 = vmatpush1.msra.mxu0 0.0
        %1917 = vmatprep.subr.mxu0 0.0
        %1918 = vmatpush1.msra.mxu0 0.0
        %1919 = vmatprep.subr.mxu0 0.0
        %1920 = vmatpush1.msra.mxu0 0.0
        %1921 = vmatprep.subr.mxu0 0.0
        %1922 = vmatpush1.msra.mxu0 0.0
        %1923 = vmatprep.mubr.f32.mxu0 0.0
        %1924 = vmatmul.mubr.f32.gmra.mrb[0].mxu0 %v1857
        %v1925 = vpop.f32.mrb[0].mxu0
        %v1926 = vadd.f32 0.0, %v1925
        %v1927 = vpop.f32.mrb[0].mxu0
        %1928 = vdwg.mxu0
        %v1930 = vsel %vm707, %v1745, 0
        %1932 = vmatprep.subr.mxu0 0.0
        %1933 = vmatpush1.msra.mxu0 %v1759
        %1934 = vmatprep.subr.mxu0 0.0
        %1935 = vmatpush1.msra.mxu0 %v1760
        %1936 = vmatprep.subr.mxu0 0.0
        %1937 = vmatpush1.msra.mxu0 %v1761
        %1938 = vmatprep.subr.mxu0 0.0
        %1939 = vmatpush1.msra.mxu0 %v1762
        %1940 = vmatprep.subr.mxu0 0.0
        %1941 = vmatpush1.msra.mxu0 0.0
        %1942 = vmatprep.subr.mxu0 0.0
        %1943 = vmatpush1.msra.mxu0 0.0
        %1944 = vmatprep.subr.mxu0 0.0
        %1945 = vmatpush1.msra.mxu0 0.0
        %1946 = vmatprep.subr.mxu0 0.0
        %1947 = vmatpush1.msra.mxu0 0.0
        %1948 = vmatprep.subr.mxu0 0.0
        %1949 = vmatpush1.msra.mxu0 0.0
        %1950 = vmatprep.subr.mxu0 0.0
        %1951 = vmatpush1.msra.mxu0 0.0
        %1952 = vmatprep.subr.mxu0 0.0
        %1953 = vmatpush1.msra.mxu0 0.0
        %1954 = vmatprep.subr.mxu0 0.0
        %1955 = vmatpush1.msra.mxu0 0.0
        %1956 = vmatprep.subr.mxu0 0.0
        %1957 = vmatpush1.msra.mxu0 0.0
        %1958 = vmatprep.subr.mxu0 0.0
        %1959 = vmatpush1.msra.mxu0 0.0
        %1960 = vmatprep.subr.mxu0 0.0
        %1961 = vmatpush1.msra.mxu0 0.0
        %1962 = vmatprep.subr.mxu0 0.0
        %1963 = vmatpush1.msra.mxu0 0.0
        %1964 = vmatprep.subr.mxu0 0.0
        %1965 = vmatpush1.msra.mxu0 0.0
        %1966 = vmatprep.subr.mxu0 0.0
        %1967 = vmatpush1.msra.mxu0 0.0
        %1968 = vmatprep.subr.mxu0 0.0
        %1969 = vmatpush1.msra.mxu0 0.0
        %1970 = vmatprep.subr.mxu0 0.0
        %1971 = vmatpush1.msra.mxu0 0.0
        %1972 = vmatprep.subr.mxu0 0.0
        %1973 = vmatpush1.msra.mxu0 0.0
        %1974 = vmatprep.subr.mxu0 0.0
        %1975 = vmatpush1.msra.mxu0 0.0
        %1976 = vmatprep.subr.mxu0 0.0
        %1977 = vmatpush1.msra.mxu0 0.0
        %1978 = vmatprep.subr.mxu0 0.0
        %1979 = vmatpush1.msra.mxu0 0.0
        %1980 = vmatprep.subr.mxu0 0.0
        %1981 = vmatpush1.msra.mxu0 0.0
        %1982 = vmatprep.subr.mxu0 0.0
        %1983 = vmatpush1.msra.mxu0 0.0
        %1984 = vmatprep.subr.mxu0 0.0
        %1985 = vmatpush1.msra.mxu0 0.0
        %1986 = vmatprep.subr.mxu0 0.0
        %1987 = vmatpush1.msra.mxu0 0.0
        %1988 = vmatprep.subr.mxu0 0.0
        %1989 = vmatpush1.msra.mxu0 0.0
        %1990 = vmatprep.subr.mxu0 0.0
        %1991 = vmatpush1.msra.mxu0 0.0
        %1992 = vmatprep.subr.mxu0 0.0
        %1993 = vmatpush1.msra.mxu0 0.0
        %1994 = vmatprep.subr.mxu0 0.0
        %1995 = vmatpush1.msra.mxu0 0.0
        %1996 = vmatprep.mubr.f32.mxu0 0.0
        %1997 = vmatmul.mubr.f32.gmra.mrb[0].mxu0 %v1930
        %v1998 = vpop.f32.mrb[0].mxu0
        %v1999 = vadd.f32 0.0, %v1998
        %v2000 = vpop.f32.mrb[0].mxu0
        %2001 = vdwg.mxu0
        %v2003 = vsel %vm707, %v1746, 0
        %2005 = vmatprep.subr.mxu0 0.0
        %2006 = vmatpush1.msra.mxu0 %v1763
        %2007 = vmatprep.subr.mxu0 0.0
        %2008 = vmatpush1.msra.mxu0 %v1764
        %2009 = vmatprep.subr.mxu0 0.0
        %2010 = vmatpush1.msra.mxu0 %v1765
        %2011 = vmatprep.subr.mxu0 0.0
        %2012 = vmatpush1.msra.mxu0 %v1766
        %2013 = vmatprep.subr.mxu0 0.0
        %2014 = vmatpush1.msra.mxu0 0.0
        %2015 = vmatprep.subr.mxu0 0.0
        %2016 = vmatpush1.msra.mxu0 0.0
        %2017 = vmatprep.subr.mxu0 0.0
        %2018 = vmatpush1.msra.mxu0 0.0
        %2019 = vmatprep.subr.mxu0 0.0
        %2020 = vmatpush1.msra.mxu0 0.0
        %2021 = vmatprep.subr.mxu0 0.0
        %2022 = vmatpush1.msra.mxu0 0.0
        %2023 = vmatprep.subr.mxu0 0.0
        %2024 = vmatpush1.msra.mxu0 0.0
        %2025 = vmatprep.subr.mxu0 0.0
        %2026 = vmatpush1.msra.mxu0 0.0
        %2027 = vmatprep.subr.mxu0 0.0
        %2028 = vmatpush1.msra.mxu0 0.0
        %2029 = vmatprep.subr.mxu0 0.0
        %2030 = vmatpush1.msra.mxu0 0.0
        %2031 = vmatprep.subr.mxu0 0.0
        %2032 = vmatpush1.msra.mxu0 0.0
        %2033 = vmatprep.subr.mxu0 0.0
        %2034 = vmatpush1.msra.mxu0 0.0
        %2035 = vmatprep.subr.mxu0 0.0
        %2036 = vmatpush1.msra.mxu0 0.0
        %2037 = vmatprep.subr.mxu0 0.0
        %2038 = vmatpush1.msra.mxu0 0.0
        %2039 = vmatprep.subr.mxu0 0.0
        %2040 = vmatpush1.msra.mxu0 0.0
        %2041 = vmatprep.subr.mxu0 0.0
        %2042 = vmatpush1.msra.mxu0 0.0
        %2043 = vmatprep.subr.mxu0 0.0
        %2044 = vmatpush1.msra.mxu0 0.0
        %2045 = vmatprep.subr.mxu0 0.0
        %2046 = vmatpush1.msra.mxu0 0.0
        %2047 = vmatprep.subr.mxu0 0.0
        %2048 = vmatpush1.msra.mxu0 0.0
        %2049 = vmatprep.subr.mxu0 0.0
        %2050 = vmatpush1.msra.mxu0 0.0
        %2051 = vmatprep.subr.mxu0 0.0
        %2052 = vmatpush1.msra.mxu0 0.0
        %2053 = vmatprep.subr.mxu0 0.0
        %2054 = vmatpush1.msra.mxu0 0.0
        %2055 = vmatprep.subr.mxu0 0.0
        %2056 = vmatpush1.msra.mxu0 0.0
        %2057 = vmatprep.subr.mxu0 0.0
        %2058 = vmatpush1.msra.mxu0 0.0
        %2059 = vmatprep.subr.mxu0 0.0
        %2060 = vmatpush1.msra.mxu0 0.0
        %2061 = vmatprep.subr.mxu0 0.0
        %2062 = vmatpush1.msra.mxu0 0.0
        %2063 = vmatprep.subr.mxu0 0.0
        %2064 = vmatpush1.msra.mxu0 0.0
        %2065 = vmatprep.subr.mxu0 0.0
        %2066 = vmatpush1.msra.mxu0 0.0
        %2067 = vmatprep.subr.mxu0 0.0
        %2068 = vmatpush1.msra.mxu0 0.0
        %2069 = vmatprep.mubr.f32.mxu0 0.0
        %2070 = vmatmul.mubr.f32.gmra.mrb[0].mxu0 %v2003
        %v2071 = vpop.f32.mrb[0].mxu0
        %v2072 = vadd.f32 0.0, %v2071
        %v2073 = vpop.f32.mrb[0].mxu0
        %2074 = vdwg.mxu0
        %v2076 = vsel %vm707, %v1747, 0
        %2078 = vmatprep.subr.mxu0 0.0
        %2079 = vmatpush1.msra.mxu0 %v1767
        %2080 = vmatprep.subr.mxu0 0.0
        %2081 = vmatpush1.msra.mxu0 %v1768
        %2082 = vmatprep.subr.mxu0 0.0
        %2083 = vmatpush1.msra.mxu0 %v1769
        %2084 = vmatprep.subr.mxu0 0.0
        %2085 = vmatpush1.msra.mxu0 %v1770
        %2086 = vmatprep.subr.mxu0 0.0
        %2087 = vmatpush1.msra.mxu0 0.0
        %2088 = vmatprep.subr.mxu0 0.0
        %2089 = vmatpush1.msra.mxu0 0.0
        %2090 = vmatprep.subr.mxu0 0.0
        %2091 = vmatpush1.msra.mxu0 0.0
        %2092 = vmatprep.subr.mxu0 0.0
        %2093 = vmatpush1.msra.mxu0 0.0
        %2094 = vmatprep.subr.mxu0 0.0
        %2095 = vmatpush1.msra.mxu0 0.0
        %2096 = vmatprep.subr.mxu0 0.0
        %2097 = vmatpush1.msra.mxu0 0.0
        %2098 = vmatprep.subr.mxu0 0.0
        %2099 = vmatpush1.msra.mxu0 0.0
        %2100 = vmatprep.subr.mxu0 0.0
        %2101 = vmatpush1.msra.mxu0 0.0
        %2102 = vmatprep.subr.mxu0 0.0
        %2103 = vmatpush1.msra.mxu0 0.0
        %2104 = vmatprep.subr.mxu0 0.0
        %2105 = vmatpush1.msra.mxu0 0.0
        %2106 = vmatprep.subr.mxu0 0.0
        %2107 = vmatpush1.msra.mxu0 0.0
        %2108 = vmatprep.subr.mxu0 0.0
        %2109 = vmatpush1.msra.mxu0 0.0
        %2110 = vmatprep.subr.mxu0 0.0
        %2111 = vmatpush1.msra.mxu0 0.0
        %2112 = vmatprep.subr.mxu0 0.0
        %2113 = vmatpush1.msra.mxu0 0.0
        %2114 = vmatprep.subr.mxu0 0.0
        %2115 = vmatpush1.msra.mxu0 0.0
        %2116 = vmatprep.subr.mxu0 0.0
        %2117 = vmatpush1.msra.mxu0 0.0
        %2118 = vmatprep.subr.mxu0 0.0
        %2119 = vmatpush1.msra.mxu0 0.0
        %2120 = vmatprep.subr.mxu0 0.0
        %2121 = vmatpush1.msra.mxu0 0.0
        %2122 = vmatprep.subr.mxu0 0.0
        %2123 = vmatpush1.msra.mxu0 0.0
        %2124 = vmatprep.subr.mxu0 0.0
        %2125 = vmatpush1.msra.mxu0 0.0
        %2126 = vmatprep.subr.mxu0 0.0
        %2127 = vmatpush1.msra.mxu0 0.0
        %2128 = vmatprep.subr.mxu0 0.0
        %2129 = vmatpush1.msra.mxu0 0.0
        %2130 = vmatprep.subr.mxu0 0.0
        %2131 = vmatpush1.msra.mxu0 0.0
        %2132 = vmatprep.subr.mxu0 0.0
        %2133 = vmatpush1.msra.mxu0 0.0
        %2134 = vmatprep.subr.mxu0 0.0
        %2135 = vmatpush1.msra.mxu0 0.0
        %2136 = vmatprep.subr.mxu0 0.0
        %2137 = vmatpush1.msra.mxu0 0.0
        %2138 = vmatprep.subr.mxu0 0.0
        %2139 = vmatpush1.msra.mxu0 0.0
        %2140 = vmatprep.subr.mxu0 0.0
        %2141 = vmatpush1.msra.mxu0 0.0
        %2142 = vmatprep.mubr.f32.mxu0 0.0
        %2143 = vmatmul.mubr.f32.gmra.mrb[0].mxu0 %v2076
        %v2144 = vpop.f32.mrb[0].mxu0
        %v2145 = vadd.f32 0.0, %v2144
        %v2146 = vpop.f32.mrb[0].mxu0
        %2147 = vdwg.mxu0
        %v2149 = vsel %vm707, %v1748, 0
        %2151 = vmatprep.subr.mxu0 0.0
        %2152 = vmatpush1.msra.mxu0 %v1771
        %2153 = vmatprep.subr.mxu0 0.0
        %2154 = vmatpush1.msra.mxu0 %v1772
        %2155 = vmatprep.subr.mxu0 0.0
        %2156 = vmatpush1.msra.mxu0 %v1773
        %2157 = vmatprep.subr.mxu0 0.0
        %2158 = vmatpush1.msra.mxu0 %v1774
        %2159 = vmatprep.subr.mxu0 0.0
        %2160 = vmatpush1.msra.mxu0 0.0
        %2161 = vmatprep.subr.mxu0 0.0
        %2162 = vmatpush1.msra.mxu0 0.0
        %2163 = vmatprep.subr.mxu0 0.0
        %2164 = vmatpush1.msra.mxu0 0.0
        %2165 = vmatprep.subr.mxu0 0.0
        %2166 = vmatpush1.msra.mxu0 0.0
        %2167 = vmatprep.subr.mxu0 0.0
        %2168 = vmatpush1.msra.mxu0 0.0
        %2169 = vmatprep.subr.mxu0 0.0
        %2170 = vmatpush1.msra.mxu0 0.0
        %2171 = vmatprep.subr.mxu0 0.0
        %2172 = vmatpush1.msra.mxu0 0.0
        %2173 = vmatprep.subr.mxu0 0.0
        %2174 = vmatpush1.msra.mxu0 0.0
        %2175 = vmatprep.subr.mxu0 0.0
        %2176 = vmatpush1.msra.mxu0 0.0
        %2177 = vmatprep.subr.mxu0 0.0
        %2178 = vmatpush1.msra.mxu0 0.0
        %2179 = vmatprep.subr.mxu0 0.0
        %2180 = vmatpush1.msra.mxu0 0.0
        %2181 = vmatprep.subr.mxu0 0.0
        %2182 = vmatpush1.msra.mxu0 0.0
        %2183 = vmatprep.subr.mxu0 0.0
        %2184 = vmatpush1.msra.mxu0 0.0
        %2185 = vmatprep.subr.mxu0 0.0
        %2186 = vmatpush1.msra.mxu0 0.0
        %2187 = vmatprep.subr.mxu0 0.0
        %2188 = vmatpush1.msra.mxu0 0.0
        %2189 = vmatprep.subr.mxu0 0.0
        %2190 = vmatpush1.msra.mxu0 0.0
        %2191 = vmatprep.subr.mxu0 0.0
        %2192 = vmatpush1.msra.mxu0 0.0
        %2193 = vmatprep.subr.mxu0 0.0
        %2194 = vmatpush1.msra.mxu0 0.0
        %2195 = vmatprep.subr.mxu0 0.0
        %2196 = vmatpush1.msra.mxu0 0.0
        %2197 = vmatprep.subr.mxu0 0.0
        %2198 = vmatpush1.msra.mxu0 0.0
        %2199 = vmatprep.subr.mxu0 0.0
        %2200 = vmatpush1.msra.mxu0 0.0
        %2201 = vmatprep.subr.mxu0 0.0
        %2202 = vmatpush1.msra.mxu0 0.0
        %2203 = vmatprep.subr.mxu0 0.0
        %2204 = vmatpush1.msra.mxu0 0.0
        %2205 = vmatprep.subr.mxu0 0.0
        %2206 = vmatpush1.msra.mxu0 0.0
        %2207 = vmatprep.subr.mxu0 0.0
        %2208 = vmatpush1.msra.mxu0 0.0
        %2209 = vmatprep.subr.mxu0 0.0
        %2210 = vmatpush1.msra.mxu0 0.0
        %2211 = vmatprep.subr.mxu0 0.0
        %2212 = vmatpush1.msra.mxu0 0.0
        %2213 = vmatprep.subr.mxu0 0.0
        %2214 = vmatpush1.msra.mxu0 0.0
        %2215 = vmatprep.mubr.f32.mxu0 0.0
        %2216 = vmatmul.mubr.f32.gmra.mrb[0].mxu0 %v2149
        %v2217 = vpop.f32.mrb[0].mxu0
        %v2218 = vadd.f32 0.0, %v2217
        %v2219 = vpop.f32.mrb[0].mxu0
        %2220 = vdwg.mxu0
        %v2222 = vsel %vm707, %v1749, 0
        %2224 = vmatprep.subr.mxu0 0.0
        %2225 = vmatpush1.msra.mxu0 %v1775
        %2226 = vmatprep.subr.mxu0 0.0
        %2227 = vmatpush1.msra.mxu0 %v1776
        %2228 = vmatprep.subr.mxu0 0.0
        %2229 = vmatpush1.msra.mxu0 %v1777
        %2230 = vmatprep.subr.mxu0 0.0
        %2231 = vmatpush1.msra.mxu0 %v1778
        %2232 = vmatprep.subr.mxu0 0.0
        %2233 = vmatpush1.msra.mxu0 0.0
        %2234 = vmatprep.subr.mxu0 0.0
        %2235 = vmatpush1.msra.mxu0 0.0
        %2236 = vmatprep.subr.mxu0 0.0
        %2237 = vmatpush1.msra.mxu0 0.0
        %2238 = vmatprep.subr.mxu0 0.0
        %2239 = vmatpush1.msra.mxu0 0.0
        %2240 = vmatprep.subr.mxu0 0.0
        %2241 = vmatpush1.msra.mxu0 0.0
        %2242 = vmatprep.subr.mxu0 0.0
        %2243 = vmatpush1.msra.mxu0 0.0
        %2244 = vmatprep.subr.mxu0 0.0
        %2245 = vmatpush1.msra.mxu0 0.0
        %2246 = vmatprep.subr.mxu0 0.0
        %2247 = vmatpush1.msra.mxu0 0.0
        %2248 = vmatprep.subr.mxu0 0.0
        %2249 = vmatpush1.msra.mxu0 0.0
        %2250 = vmatprep.subr.mxu0 0.0
        %2251 = vmatpush1.msra.mxu0 0.0
        %2252 = vmatprep.subr.mxu0 0.0
        %2253 = vmatpush1.msra.mxu0 0.0
        %2254 = vmatprep.subr.mxu0 0.0
        %2255 = vmatpush1.msra.mxu0 0.0
        %2256 = vmatprep.subr.mxu0 0.0
        %2257 = vmatpush1.msra.mxu0 0.0
        %2258 = vmatprep.subr.mxu0 0.0
        %2259 = vmatpush1.msra.mxu0 0.0
        %2260 = vmatprep.subr.mxu0 0.0
        %2261 = vmatpush1.msra.mxu0 0.0
        %2262 = vmatprep.subr.mxu0 0.0
        %2263 = vmatpush1.msra.mxu0 0.0
        %2264 = vmatprep.subr.mxu0 0.0
        %2265 = vmatpush1.msra.mxu0 0.0
        %2266 = vmatprep.subr.mxu0 0.0
        %2267 = vmatpush1.msra.mxu0 0.0
        %2268 = vmatprep.subr.mxu0 0.0
        %2269 = vmatpush1.msra.mxu0 0.0
        %2270 = vmatprep.subr.mxu0 0.0
        %2271 = vmatpush1.msra.mxu0 0.0
        %2272 = vmatprep.subr.mxu0 0.0
        %2273 = vmatpush1.msra.mxu0 0.0
        %2274 = vmatprep.subr.mxu0 0.0
        %2275 = vmatpush1.msra.mxu0 0.0
        %2276 = vmatprep.subr.mxu0 0.0
        %2277 = vmatpush1.msra.mxu0 0.0
        %2278 = vmatprep.subr.mxu0 0.0
        %2279 = vmatpush1.msra.mxu0 0.0
        %2280 = vmatprep.subr.mxu0 0.0
        %2281 = vmatpush1.msra.mxu0 0.0
        %2282 = vmatprep.subr.mxu0 0.0
        %2283 = vmatpush1.msra.mxu0 0.0
        %2284 = vmatprep.subr.mxu0 0.0
        %2285 = vmatpush1.msra.mxu0 0.0
        %2286 = vmatprep.subr.mxu0 0.0
        %2287 = vmatpush1.msra.mxu0 0.0
        %2288 = vmatprep.mubr.f32.mxu0 0.0
        %2289 = vmatmul.mubr.f32.gmra.mrb[0].mxu0 %v2222
        %v2290 = vpop.f32.mrb[0].mxu0
        %v2291 = vadd.f32 0.0, %v2290
        %v2292 = vpop.f32.mrb[0].mxu0
        %2293 = vdwg.mxu0
        %v2295 = vsel %vm707, %v1750, 0
        %2297 = vmatprep.subr.mxu0 0.0
        %2298 = vmatpush1.msra.mxu0 %v1779
        %2299 = vmatprep.subr.mxu0 0.0
        %2300 = vmatpush1.msra.mxu0 %v1780
        %2301 = vmatprep.subr.mxu0 0.0
        %2302 = vmatpush1.msra.mxu0 %v1781
        %2303 = vmatprep.subr.mxu0 0.0
        %2304 = vmatpush1.msra.mxu0 %v1782
        %2305 = vmatprep.subr.mxu0 0.0
        %2306 = vmatpush1.msra.mxu0 0.0
        %2307 = vmatprep.subr.mxu0 0.0
        %2308 = vmatpush1.msra.mxu0 0.0
        %2309 = vmatprep.subr.mxu0 0.0
        %2310 = vmatpush1.msra.mxu0 0.0
        %2311 = vmatprep.subr.mxu0 0.0
        %2312 = vmatpush1.msra.mxu0 0.0
        %2313 = vmatprep.subr.mxu0 0.0
        %2314 = vmatpush1.msra.mxu0 0.0
        %2315 = vmatprep.subr.mxu0 0.0
        %2316 = vmatpush1.msra.mxu0 0.0
        %2317 = vmatprep.subr.mxu0 0.0
        %2318 = vmatpush1.msra.mxu0 0.0
        %2319 = vmatprep.subr.mxu0 0.0
        %2320 = vmatpush1.msra.mxu0 0.0
        %2321 = vmatprep.subr.mxu0 0.0
        %2322 = vmatpush1.msra.mxu0 0.0
        %2323 = vmatprep.subr.mxu0 0.0
        %2324 = vmatpush1.msra.mxu0 0.0
        %2325 = vmatprep.subr.mxu0 0.0
        %2326 = vmatpush1.msra.mxu0 0.0
        %2327 = vmatprep.subr.mxu0 0.0
        %2328 = vmatpush1.msra.mxu0 0.0
        %2329 = vmatprep.subr.mxu0 0.0
        %2330 = vmatpush1.msra.mxu0 0.0
        %2331 = vmatprep.subr.mxu0 0.0
        %2332 = vmatpush1.msra.mxu0 0.0
        %2333 = vmatprep.subr.mxu0 0.0
        %2334 = vmatpush1.msra.mxu0 0.0
        %2335 = vmatprep.subr.mxu0 0.0
        %2336 = vmatpush1.msra.mxu0 0.0
        %2337 = vmatprep.subr.mxu0 0.0
        %2338 = vmatpush1.msra.mxu0 0.0
        %2339 = vmatprep.subr.mxu0 0.0
        %2340 = vmatpush1.msra.mxu0 0.0
        %2341 = vmatprep.subr.mxu0 0.0
        %2342 = vmatpush1.msra.mxu0 0.0
        %2343 = vmatprep.subr.mxu0 0.0
        %2344 = vmatpush1.msra.mxu0 0.0
        %2345 = vmatprep.subr.mxu0 0.0
        %2346 = vmatpush1.msra.mxu0 0.0
        %2347 = vmatprep.subr.mxu0 0.0
        %2348 = vmatpush1.msra.mxu0 0.0
        %2349 = vmatprep.subr.mxu0 0.0
        %2350 = vmatpush1.msra.mxu0 0.0
        %2351 = vmatprep.subr.mxu0 0.0
        %2352 = vmatpush1.msra.mxu0 0.0
        %2353 = vmatprep.subr.mxu0 0.0
        %2354 = vmatpush1.msra.mxu0 0.0
        %2355 = vmatprep.subr.mxu0 0.0
        %2356 = vmatpush1.msra.mxu0 0.0
        %2357 = vmatprep.subr.mxu0 0.0
        %2358 = vmatpush1.msra.mxu0 0.0
        %2359 = vmatprep.subr.mxu0 0.0
        %2360 = vmatpush1.msra.mxu0 0.0
        %2361 = vmatprep.mubr.f32.mxu0 0.0
        %2362 = vmatmul.mubr.f32.gmra.mrb[0].mxu0 %v2295
        %v2363 = vpop.f32.mrb[0].mxu0
        %v2364 = vadd.f32 0.0, %v2363
        %v2365 = vpop.f32.mrb[0].mxu0
        %2366 = vdwg.mxu0
        %vm2367 = vcmask 130048
        %v2368 = vsel %vm2367, %v1853, -inf
        %2369 = vmax.xlane.f32.xlu0 %v2368
        %v2370 = vpop.xlane.xlu0 %2369
        %v2371 = vsel %vm2367, %v1926, -inf
        %2372 = vmax.xlane.f32.xlu0 %v2371
        %v2373 = vpop.xlane.xlu0 %2372
        %v2374 = vsel %vm2367, %v1999, -inf
        %2375 = vmax.xlane.f32.xlu0 %v2374
        %v2376 = vpop.xlane.xlu0 %2375
        %v2377 = vsel %vm2367, %v2072, -inf
        %2378 = vmax.xlane.f32.xlu0 %v2377
        %v2379 = vpop.xlane.xlu0 %2378
        %v2380 = vsel %vm2367, %v2145, -inf
        %2381 = vmax.xlane.f32.xlu0 %v2380
        %v2382 = vpop.xlane.xlu0 %2381
        %v2383 = vsel %vm2367, %v2218, -inf
        %2384 = vmax.xlane.f32.xlu0 %v2383
        %v2385 = vpop.xlane.xlu0 %2384
        %v2386 = vsel %vm2367, %v2291, -inf
        %2387 = vmax.xlane.f32.xlu0 %v2386
        %v2388 = vpop.xlane.xlu0 %2387
        %v2389 = vsel %vm2367, %v2364, -inf
        %2390 = vmax.xlane.f32.xlu0 %v2389
        %v2391 = vpop.xlane.xlu0 %2390
        %v2392 = vsub.f32 %v1853, %v2370
        %v2393 = vsub.f32 %v1926, %v2373
        %v2394 = vsub.f32 %v1999, %v2376
        %v2395 = vsub.f32 %v2072, %v2379
        %v2396 = vsub.f32 %v2145, %v2382
        %v2397 = vsub.f32 %v2218, %v2385
        %v2398 = vsub.f32 %v2291, %v2388
        %v2399 = vsub.f32 %v2364, %v2391
        %v2400 = vmul.f32 %v2392, 1.442695
        %v2401 = vpow.pop %v2400
        %v2402 = vmul.f32 %v2393, 1.442695
        %v2403 = vpow.pop %v2402
        %v2404 = vmul.f32 %v2394, 1.442695
        %v2405 = vpow.pop %v2404
        %v2406 = vmul.f32 %v2395, 1.442695
        %v2407 = vpow.pop %v2406
        %v2408 = vmul.f32 %v2396, 1.442695
        %v2409 = vpow.pop %v2408
        %v2410 = vmul.f32 %v2397, 1.442695
        %v2411 = vpow.pop %v2410
        %v2412 = vmul.f32 %v2398, 1.442695
        %v2413 = vpow.pop %v2412
        %v2414 = vmul.f32 %v2399, 1.442695
        %v2415 = vpow.pop %v2414
        %v2416 = vsel %vm2367, %v2401, 0.0
        %2417 = vadd.xlane.f32.xlu0 %v2416
        %v2418 = vpop.xlane.xlu0 %2417
        %v2419 = vsel %vm2367, %v2403, 0.0
        %2420 = vadd.xlane.f32.xlu0 %v2419
        %v2421 = vpop.xlane.xlu0 %2420
        %v2422 = vsel %vm2367, %v2405, 0.0
        %2423 = vadd.xlane.f32.xlu0 %v2422
        %v2424 = vpop.xlane.xlu0 %2423
        %v2425 = vsel %vm2367, %v2407, 0.0
        %2426 = vadd.xlane.f32.xlu0 %v2425
        %v2427 = vpop.xlane.xlu0 %2426
        %v2428 = vsel %vm2367, %v2409, 0.0
        %2429 = vadd.xlane.f32.xlu0 %v2428
        %v2430 = vpop.xlane.xlu0 %2429
        %v2431 = vsel %vm2367, %v2411, 0.0
        %2432 = vadd.xlane.f32.xlu0 %v2431
        %v2433 = vpop.xlane.xlu0 %2432
        %v2434 = vsel %vm2367, %v2413, 0.0
        %2435 = vadd.xlane.f32.xlu0 %v2434
        %v2436 = vpop.xlane.xlu0 %2435
        %v2437 = vsel %vm2367, %v2415, 0.0
        %2438 = vadd.xlane.f32.xlu0 %v2437
        %v2439 = vpop.xlane.xlu0 %2438
        %v2440 = vrcp.pop %v2418
        %v2441 = vmul.f32 %v2401, %v2440
        %v2442 = vrcp.pop %v2421
        %v2443 = vmul.f32 %v2403, %v2442
        %v2444 = vrcp.pop %v2424
        %v2445 = vmul.f32 %v2405, %v2444
        %v2446 = vrcp.pop %v2427
        %v2447 = vmul.f32 %v2407, %v2446
        %v2448 = vrcp.pop %v2430
        %v2449 = vmul.f32 %v2409, %v2448
        %v2450 = vrcp.pop %v2433
        %v2451 = vmul.f32 %v2411, %v2450
        %v2452 = vrcp.pop %v2436
        %v2453 = vmul.f32 %v2413, %v2452
        %v2454 = vrcp.pop %v2439
        %v2455 = vmul.f32 %v2415, %v2454
        %v2456 = vld [vmem:[%s684] sm:$0xff]
        %v2457 = vld [vmem:[%s684 + $0x8] sm:$0xff]
        %v2458 = vld [vmem:[%s684 + $0x10] sm:$0xff]
        %v2459 = vld [vmem:[%s684 + $0x18] sm:$0xff]
        %v2460 = vld [vmem:[%s684 + $0x20] sm:$0xff]
        %v2461 = vld [vmem:[%s684 + $0x28] sm:$0xff]
        %v2462 = vld [vmem:[%s684 + $0x30] sm:$0xff]
        %v2463 = vld [vmem:[%s684 + $0x38] sm:$0xff]
        %v2464 = vld [vmem:[%s684 + $0x40] sm:$0xff]
        %v2465 = vld [vmem:[%s684 + $0x48] sm:$0xff]
        %v2466 = vld [vmem:[%s684 + $0x50] sm:$0xff]
        %v2467 = vld [vmem:[%s684 + $0x58] sm:$0xff]
        %v2468 = vld [vmem:[%s684 + $0x60] sm:$0xff]
        %v2469 = vld [vmem:[%s684 + $0x68] sm:$0xff]
        %v2470 = vld [vmem:[%s684 + $0x70] sm:$0xff]
        %v2471 = vld [vmem:[%s684 + $0x78] sm:$0xff]
        %v2473 = vsel %vm2367, %v2441, 0
        %2475 = vmatprep.subr.mxu0 0.0
        %2476 = vmatpush1.msra.mxu0 %v2456
        %2477 = vmatprep.subr.mxu0 0.0
        %2478 = vmatpush1.msra.mxu0 %v2457
        %2479 = vmatprep.subr.mxu0 0.0
        %2480 = vmatpush1.msra.mxu0 0.0
        %2481 = vmatprep.subr.mxu0 0.0
        %2482 = vmatpush1.msra.mxu0 0.0
        %2483 = vmatprep.subr.mxu0 0.0
        %2484 = vmatpush1.msra.mxu0 0.0
        %2485 = vmatprep.subr.mxu0 0.0
        %2486 = vmatpush1.msra.mxu0 0.0
        %2487 = vmatprep.subr.mxu0 0.0
        %2488 = vmatpush1.msra.mxu0 0.0
        %2489 = vmatprep.subr.mxu0 0.0
        %2490 = vmatpush1.msra.mxu0 0.0
        %2491 = vmatprep.subr.mxu0 0.0
        %2492 = vmatpush1.msra.mxu0 0.0
        %2493 = vmatprep.subr.mxu0 0.0
        %2494 = vmatpush1.msra.mxu0 0.0
        %2495 = vmatprep.subr.mxu0 0.0
        %2496 = vmatpush1.msra.mxu0 0.0
        %2497 = vmatprep.subr.mxu0 0.0
        %2498 = vmatpush1.msra.mxu0 0.0
        %2499 = vmatprep.subr.mxu0 0.0
        %2500 = vmatpush1.msra.mxu0 0.0
        %2501 = vmatprep.subr.mxu0 0.0
        %2502 = vmatpush1.msra.mxu0 0.0
        %2503 = vmatprep.subr.mxu0 0.0
        %2504 = vmatpush1.msra.mxu0 0.0
        %2505 = vmatprep.subr.mxu0 0.0
        %2506 = vmatpush1.msra.mxu0 0.0
        %2507 = vmatprep.subr.mxu0 0.0
        %2508 = vmatpush1.msra.mxu0 0.0
        %2509 = vmatprep.subr.mxu0 0.0
        %2510 = vmatpush1.msra.mxu0 0.0
        %2511 = vmatprep.subr.mxu0 0.0
        %2512 = vmatpush1.msra.mxu0 0.0
        %2513 = vmatprep.subr.mxu0 0.0
        %2514 = vmatpush1.msra.mxu0 0.0
        %2515 = vmatprep.subr.mxu0 0.0
        %2516 = vmatpush1.msra.mxu0 0.0
        %2517 = vmatprep.subr.mxu0 0.0
        %2518 = vmatpush1.msra.mxu0 0.0
        %2519 = vmatprep.subr.mxu0 0.0
        %2520 = vmatpush1.msra.mxu0 0.0
        %2521 = vmatprep.subr.mxu0 0.0
        %2522 = vmatpush1.msra.mxu0 0.0
        %2523 = vmatprep.subr.mxu0 0.0
        %2524 = vmatpush1.msra.mxu0 0.0
        %2525 = vmatprep.subr.mxu0 0.0
        %2526 = vmatpush1.msra.mxu0 0.0
        %2527 = vmatprep.subr.mxu0 0.0
        %2528 = vmatpush1.msra.mxu0 0.0
        %2529 = vmatprep.subr.mxu0 0.0
        %2530 = vmatpush1.msra.mxu0 0.0
        %2531 = vmatprep.subr.mxu0 0.0
        %2532 = vmatpush1.msra.mxu0 0.0
        %2533 = vmatprep.subr.mxu0 0.0
        %2534 = vmatpush1.msra.mxu0 0.0
        %2535 = vmatprep.subr.mxu0 0.0
        %2536 = vmatpush1.msra.mxu0 0.0
        %2537 = vmatprep.subr.mxu0 0.0
        %2538 = vmatpush1.msra.mxu0 0.0
        %2539 = vmatprep.mubr.f32.mxu0 0.0
        %2540 = vmatmul.mubr.f32.gmra.mrb[0].mxu0 %v2473
        %v2541 = vpop.f32.mrb[0].mxu0
        %v2542 = vadd.f32 0.0, %v2541
        %v2543 = vpop.f32.mrb[0].mxu0
        %2544 = vdwg.mxu0
        %v2546 = vsel %vm2367, %v2443, 0
        %2548 = vmatprep.subr.mxu0 0.0
        %2549 = vmatpush1.msra.mxu0 %v2458
        %2550 = vmatprep.subr.mxu0 0.0
        %2551 = vmatpush1.msra.mxu0 %v2459
        %2552 = vmatprep.subr.mxu0 0.0
        %2553 = vmatpush1.msra.mxu0 0.0
        %2554 = vmatprep.subr.mxu0 0.0
        %2555 = vmatpush1.msra.mxu0 0.0
        %2556 = vmatprep.subr.mxu0 0.0
        %2557 = vmatpush1.msra.mxu0 0.0
        %2558 = vmatprep.subr.mxu0 0.0
        %2559 = vmatpush1.msra.mxu0 0.0
        %2560 = vmatprep.subr.mxu0 0.0
        %2561 = vmatpush1.msra.mxu0 0.0
        %2562 = vmatprep.subr.mxu0 0.0
        %2563 = vmatpush1.msra.mxu0 0.0
        %2564 = vmatprep.subr.mxu0 0.0
        %2565 = vmatpush1.msra.mxu0 0.0
        %2566 = vmatprep.subr.mxu0 0.0
        %2567 = vmatpush1.msra.mxu0 0.0
        %2568 = vmatprep.subr.mxu0 0.0
        %2569 = vmatpush1.msra.mxu0 0.0
        %2570 = vmatprep.subr.mxu0 0.0
        %2571 = vmatpush1.msra.mxu0 0.0
        %2572 = vmatprep.subr.mxu0 0.0
        %2573 = vmatpush1.msra.mxu0 0.0
        %2574 = vmatprep.subr.mxu0 0.0
        %2575 = vmatpush1.msra.mxu0 0.0
        %2576 = vmatprep.subr.mxu0 0.0
        %2577 = vmatpush1.msra.mxu0 0.0
        %2578 = vmatprep.subr.mxu0 0.0
        %2579 = vmatpush1.msra.mxu0 0.0
        %2580 = vmatprep.subr.mxu0 0.0
        %2581 = vmatpush1.msra.mxu0 0.0
        %2582 = vmatprep.subr.mxu0 0.0
        %2583 = vmatpush1.msra.mxu0 0.0
        %2584 = vmatprep.subr.mxu0 0.0
        %2585 = vmatpush1.msra.mxu0 0.0
        %2586 = vmatprep.subr.mxu0 0.0
        %2587 = vmatpush1.msra.mxu0 0.0
        %2588 = vmatprep.subr.mxu0 0.0
        %2589 = vmatpush1.msra.mxu0 0.0
        %2590 = vmatprep.subr.mxu0 0.0
        %2591 = vmatpush1.msra.mxu0 0.0
        %2592 = vmatprep.subr.mxu0 0.0
        %2593 = vmatpush1.msra.mxu0 0.0
        %2594 = vmatprep.subr.mxu0 0.0
        %2595 = vmatpush1.msra.mxu0 0.0
        %2596 = vmatprep.subr.mxu0 0.0
        %2597 = vmatpush1.msra.mxu0 0.0
        %2598 = vmatprep.subr.mxu0 0.0
        %2599 = vmatpush1.msra.mxu0 0.0
        %2600 = vmatprep.subr.mxu0 0.0
        %2601 = vmatpush1.msra.mxu0 0.0
        %2602 = vmatprep.subr.mxu0 0.0
        %2603 = vmatpush1.msra.mxu0 0.0
        %2604 = vmatprep.subr.mxu0 0.0
        %2605 = vmatpush1.msra.mxu0 0.0
        %2606 = vmatprep.subr.mxu0 0.0
        %2607 = vmatpush1.msra.mxu0 0.0
        %2608 = vmatprep.subr.mxu0 0.0
        %2609 = vmatpush1.msra.mxu0 0.0
        %2610 = vmatprep.subr.mxu0 0.0
        %2611 = vmatpush1.msra.mxu0 0.0
        %2612 = vmatprep.mubr.f32.mxu0 0.0
        %2613 = vmatmul.mubr.f32.gmra.mrb[0].mxu0 %v2546
        %v2614 = vpop.f32.mrb[0].mxu0
        %v2615 = vadd.f32 0.0, %v2614
        %v2616 = vpop.f32.mrb[0].mxu0
        %2617 = vdwg.mxu0
        %v2619 = vsel %vm2367, %v2445, 0
        %2621 = vmatprep.subr.mxu0 0.0
        %2622 = vmatpush1.msra.mxu0 %v2460
        %2623 = vmatprep.subr.mxu0 0.0
        %2624 = vmatpush1.msra.mxu0 %v2461
        %2625 = vmatprep.subr.mxu0 0.0
        %2626 = vmatpush1.msra.mxu0 0.0
        %2627 = vmatprep.subr.mxu0 0.0
        %2628 = vmatpush1.msra.mxu0 0.0
        %2629 = vmatprep.subr.mxu0 0.0
        %2630 = vmatpush1.msra.mxu0 0.0
        %2631 = vmatprep.subr.mxu0 0.0
        %2632 = vmatpush1.msra.mxu0 0.0
        %2633 = vmatprep.subr.mxu0 0.0
        %2634 = vmatpush1.msra.mxu0 0.0
        %2635 = vmatprep.subr.mxu0 0.0
        %2636 = vmatpush1.msra.mxu0 0.0
        %2637 = vmatprep.subr.mxu0 0.0
        %2638 = vmatpush1.msra.mxu0 0.0
        %2639 = vmatprep.subr.mxu0 0.0
        %2640 = vmatpush1.msra.mxu0 0.0
        %2641 = vmatprep.subr.mxu0 0.0
        %2642 = vmatpush1.msra.mxu0 0.0
        %2643 = vmatprep.subr.mxu0 0.0
        %2644 = vmatpush1.msra.mxu0 0.0
        %2645 = vmatprep.subr.mxu0 0.0
        %2646 = vmatpush1.msra.mxu0 0.0
        %2647 = vmatprep.subr.mxu0 0.0
        %2648 = vmatpush1.msra.mxu0 0.0
        %2649 = vmatprep.subr.mxu0 0.0
        %2650 = vmatpush1.msra.mxu0 0.0
        %2651 = vmatprep.subr.mxu0 0.0
        %2652 = vmatpush1.msra.mxu0 0.0
        %2653 = vmatprep.subr.mxu0 0.0
        %2654 = vmatpush1.msra.mxu0 0.0
        %2655 = vmatprep.subr.mxu0 0.0
        %2656 = vmatpush1.msra.mxu0 0.0
        %2657 = vmatprep.subr.mxu0 0.0
        %2658 = vmatpush1.msra.mxu0 0.0
        %2659 = vmatprep.subr.mxu0 0.0
        %2660 = vmatpush1.msra.mxu0 0.0
        %2661 = vmatprep.subr.mxu0 0.0
        %2662 = vmatpush1.msra.mxu0 0.0
        %2663 = vmatprep.subr.mxu0 0.0
        %2664 = vmatpush1.msra.mxu0 0.0
        %2665 = vmatprep.subr.mxu0 0.0
        %2666 = vmatpush1.msra.mxu0 0.0
        %2667 = vmatprep.subr.mxu0 0.0
        %2668 = vmatpush1.msra.mxu0 0.0
        %2669 = vmatprep.subr.mxu0 0.0
        %2670 = vmatpush1.msra.mxu0 0.0
        %2671 = vmatprep.subr.mxu0 0.0
        %2672 = vmatpush1.msra.mxu0 0.0
        %2673 = vmatprep.subr.mxu0 0.0
        %2674 = vmatpush1.msra.mxu0 0.0
        %2675 = vmatprep.subr.mxu0 0.0
        %2676 = vmatpush1.msra.mxu0 0.0
        %2677 = vmatprep.subr.mxu0 0.0
        %2678 = vmatpush1.msra.mxu0 0.0
        %2679 = vmatprep.subr.mxu0 0.0
        %2680 = vmatpush1.msra.mxu0 0.0
        %2681 = vmatprep.subr.mxu0 0.0
        %2682 = vmatpush1.msra.mxu0 0.0
        %2683 = vmatprep.subr.mxu0 0.0
        %2684 = vmatpush1.msra.mxu0 0.0
        %2685 = vmatprep.mubr.f32.mxu0 0.0
        %2686 = vmatmul.mubr.f32.gmra.mrb[0].mxu0 %v2619
        %v2687 = vpop.f32.mrb[0].mxu0
        %v2688 = vadd.f32 0.0, %v2687
        %v2689 = vpop.f32.mrb[0].mxu0
        %2690 = vdwg.mxu0
        %v2692 = vsel %vm2367, %v2447, 0
        %2694 = vmatprep.subr.mxu0 0.0
        %2695 = vmatpush1.msra.mxu0 %v2462
        %2696 = vmatprep.subr.mxu0 0.0
        %2697 = vmatpush1.msra.mxu0 %v2463
        %2698 = vmatprep.subr.mxu0 0.0
        %2699 = vmatpush1.msra.mxu0 0.0
        %2700 = vmatprep.subr.mxu0 0.0
        %2701 = vmatpush1.msra.mxu0 0.0
        %2702 = vmatprep.subr.mxu0 0.0
        %2703 = vmatpush1.msra.mxu0 0.0
        %2704 = vmatprep.subr.mxu0 0.0
        %2705 = vmatpush1.msra.mxu0 0.0
        %2706 = vmatprep.subr.mxu0 0.0
        %2707 = vmatpush1.msra.mxu0 0.0
        %2708 = vmatprep.subr.mxu0 0.0
        %2709 = vmatpush1.msra.mxu0 0.0
        %2710 = vmatprep.subr.mxu0 0.0
        %2711 = vmatpush1.msra.mxu0 0.0
        %2712 = vmatprep.subr.mxu0 0.0
        %2713 = vmatpush1.msra.mxu0 0.0
        %2714 = vmatprep.subr.mxu0 0.0
        %2715 = vmatpush1.msra.mxu0 0.0
        %2716 = vmatprep.subr.mxu0 0.0
        %2717 = vmatpush1.msra.mxu0 0.0
        %2718 = vmatprep.subr.mxu0 0.0
        %2719 = vmatpush1.msra.mxu0 0.0
        %2720 = vmatprep.subr.mxu0 0.0
        %2721 = vmatpush1.msra.mxu0 0.0
        %2722 = vmatprep.subr.mxu0 0.0
        %2723 = vmatpush1.msra.mxu0 0.0
        %2724 = vmatprep.subr.mxu0 0.0
        %2725 = vmatpush1.msra.mxu0 0.0
        %2726 = vmatprep.subr.mxu0 0.0
        %2727 = vmatpush1.msra.mxu0 0.0
        %2728 = vmatprep.subr.mxu0 0.0
        %2729 = vmatpush1.msra.mxu0 0.0
        %2730 = vmatprep.subr.mxu0 0.0
        %2731 = vmatpush1.msra.mxu0 0.0
        %2732 = vmatprep.subr.mxu0 0.0
        %2733 = vmatpush1.msra.mxu0 0.0
        %2734 = vmatprep.subr.mxu0 0.0
        %2735 = vmatpush1.msra.mxu0 0.0
        %2736 = vmatprep.subr.mxu0 0.0
        %2737 = vmatpush1.msra.mxu0 0.0
        %2738 = vmatprep.subr.mxu0 0.0
        %2739 = vmatpush1.msra.mxu0 0.0
        %2740 = vmatprep.subr.mxu0 0.0
        %2741 = vmatpush1.msra.mxu0 0.0
        %2742 = vmatprep.subr.mxu0 0.0
        %2743 = vmatpush1.msra.mxu0 0.0
        %2744 = vmatprep.subr.mxu0 0.0
        %2745 = vmatpush1.msra.mxu0 0.0
        %2746 = vmatprep.subr.mxu0 0.0
        %2747 = vmatpush1.msra.mxu0 0.0
        %2748 = vmatprep.subr.mxu0 0.0
        %2749 = vmatpush1.msra.mxu0 0.0
        %2750 = vmatprep.subr.mxu0 0.0
        %2751 = vmatpush1.msra.mxu0 0.0
        %2752 = vmatprep.subr.mxu0 0.0
        %2753 = vmatpush1.msra.mxu0 0.0
        %2754 = vmatprep.subr.mxu0 0.0
        %2755 = vmatpush1.msra.mxu0 0.0
        %2756 = vmatprep.subr.mxu0 0.0
        %2757 = vmatpush1.msra.mxu0 0.0
        %2758 = vmatprep.mubr.f32.mxu0 0.0
        %2759 = vmatmul.mubr.f32.gmra.mrb[0].mxu0 %v2692
        %v2760 = vpop.f32.mrb[0].mxu0
        %v2761 = vadd.f32 0.0, %v2760
        %v2762 = vpop.f32.mrb[0].mxu0
        %2763 = vdwg.mxu0
        %v2765 = vsel %vm2367, %v2449, 0
        %2767 = vmatprep.subr.mxu0 0.0
        %2768 = vmatpush1.msra.mxu0 %v2464
        %2769 = vmatprep.subr.mxu0 0.0
        %2770 = vmatpush1.msra.mxu0 %v2465
        %2771 = vmatprep.subr.mxu0 0.0
        %2772 = vmatpush1.msra.mxu0 0.0
        %2773 = vmatprep.subr.mxu0 0.0
        %2774 = vmatpush1.msra.mxu0 0.0
        %2775 = vmatprep.subr.mxu0 0.0
        %2776 = vmatpush1.msra.mxu0 0.0
        %2777 = vmatprep.subr.mxu0 0.0
        %2778 = vmatpush1.msra.mxu0 0.0
        %2779 = vmatprep.subr.mxu0 0.0
        %2780 = vmatpush1.msra.mxu0 0.0
        %2781 = vmatprep.subr.mxu0 0.0
        %2782 = vmatpush1.msra.mxu0 0.0
        %2783 = vmatprep.subr.mxu0 0.0
        %2784 = vmatpush1.msra.mxu0 0.0
        %2785 = vmatprep.subr.mxu0 0.0
        %2786 = vmatpush1.msra.mxu0 0.0
        %2787 = vmatprep.subr.mxu0 0.0
        %2788 = vmatpush1.msra.mxu0 0.0
        %2789 = vmatprep.subr.mxu0 0.0
        %2790 = vmatpush1.msra.mxu0 0.0
        %2791 = vmatprep.subr.mxu0 0.0
        %2792 = vmatpush1.msra.mxu0 0.0
        %2793 = vmatprep.subr.mxu0 0.0
        %2794 = vmatpush1.msra.mxu0 0.0
        %2795 = vmatprep.subr.mxu0 0.0
        %2796 = vmatpush1.msra.mxu0 0.0
        %2797 = vmatprep.subr.mxu0 0.0
        %2798 = vmatpush1.msra.mxu0 0.0
        %2799 = vmatprep.subr.mxu0 0.0
        %2800 = vmatpush1.msra.mxu0 0.0
        %2801 = vmatprep.subr.mxu0 0.0
        %2802 = vmatpush1.msra.mxu0 0.0
        %2803 = vmatprep.subr.mxu0 0.0
        %2804 = vmatpush1.msra.mxu0 0.0
        %2805 = vmatprep.subr.mxu0 0.0
        %2806 = vmatpush1.msra.mxu0 0.0
        %2807 = vmatprep.subr.mxu0 0.0
        %2808 = vmatpush1.msra.mxu0 0.0
        %2809 = vmatprep.subr.mxu0 0.0
        %2810 = vmatpush1.msra.mxu0 0.0
        %2811 = vmatprep.subr.mxu0 0.0
        %2812 = vmatpush1.msra.mxu0 0.0
        %2813 = vmatprep.subr.mxu0 0.0
        %2814 = vmatpush1.msra.mxu0 0.0
        %2815 = vmatprep.subr.mxu0 0.0
        %2816 = vmatpush1.msra.mxu0 0.0
        %2817 = vmatprep.subr.mxu0 0.0
        %2818 = vmatpush1.msra.mxu0 0.0
        %2819 = vmatprep.subr.mxu0 0.0
        %2820 = vmatpush1.msra.mxu0 0.0
        %2821 = vmatprep.subr.mxu0 0.0
        %2822 = vmatpush1.msra.mxu0 0.0
        %2823 = vmatprep.subr.mxu0 0.0
        %2824 = vmatpush1.msra.mxu0 0.0
        %2825 = vmatprep.subr.mxu0 0.0
        %2826 = vmatpush1.msra.mxu0 0.0
        %2827 = vmatprep.subr.mxu0 0.0
        %2828 = vmatpush1.msra.mxu0 0.0
        %2829 = vmatprep.subr.mxu0 0.0
        %2830 = vmatpush1.msra.mxu0 0.0
        %2831 = vmatprep.mubr.f32.mxu0 0.0
        %2832 = vmatmul.mubr.f32.gmra.mrb[0].mxu0 %v2765
        %v2833 = vpop.f32.mrb[0].mxu0
        %v2834 = vadd.f32 0.0, %v2833
        %v2835 = vpop.f32.mrb[0].mxu0
        %2836 = vdwg.mxu0
        %v2838 = vsel %vm2367, %v2451, 0
        %2840 = vmatprep.subr.mxu0 0.0
        %2841 = vmatpush1.msra.mxu0 %v2466
        %2842 = vmatprep.subr.mxu0 0.0
        %2843 = vmatpush1.msra.mxu0 %v2467
        %2844 = vmatprep.subr.mxu0 0.0
        %2845 = vmatpush1.msra.mxu0 0.0
        %2846 = vmatprep.subr.mxu0 0.0
        %2847 = vmatpush1.msra.mxu0 0.0
        %2848 = vmatprep.subr.mxu0 0.0
        %2849 = vmatpush1.msra.mxu0 0.0
        %2850 = vmatprep.subr.mxu0 0.0
        %2851 = vmatpush1.msra.mxu0 0.0
        %2852 = vmatprep.subr.mxu0 0.0
        %2853 = vmatpush1.msra.mxu0 0.0
        %2854 = vmatprep.subr.mxu0 0.0
        %2855 = vmatpush1.msra.mxu0 0.0
        %2856 = vmatprep.subr.mxu0 0.0
        %2857 = vmatpush1.msra.mxu0 0.0
        %2858 = vmatprep.subr.mxu0 0.0
        %2859 = vmatpush1.msra.mxu0 0.0
        %2860 = vmatprep.subr.mxu0 0.0
        %2861 = vmatpush1.msra.mxu0 0.0
        %2862 = vmatprep.subr.mxu0 0.0
        %2863 = vmatpush1.msra.mxu0 0.0
        %2864 = vmatprep.subr.mxu0 0.0
        %2865 = vmatpush1.msra.mxu0 0.0
        %2866 = vmatprep.subr.mxu0 0.0
        %2867 = vmatpush1.msra.mxu0 0.0
        %2868 = vmatprep.subr.mxu0 0.0
        %2869 = vmatpush1.msra.mxu0 0.0
        %2870 = vmatprep.subr.mxu0 0.0
        %2871 = vmatpush1.msra.mxu0 0.0
        %2872 = vmatprep.subr.mxu0 0.0
        %2873 = vmatpush1.msra.mxu0 0.0
        %2874 = vmatprep.subr.mxu0 0.0
        %2875 = vmatpush1.msra.mxu0 0.0
        %2876 = vmatprep.subr.mxu0 0.0
        %2877 = vmatpush1.msra.mxu0 0.0
        %2878 = vmatprep.subr.mxu0 0.0
        %2879 = vmatpush1.msra.mxu0 0.0
        %2880 = vmatprep.subr.mxu0 0.0
        %2881 = vmatpush1.msra.mxu0 0.0
        %2882 = vmatprep.subr.mxu0 0.0
        %2883 = vmatpush1.msra.mxu0 0.0
        %2884 = vmatprep.subr.mxu0 0.0
        %2885 = vmatpush1.msra.mxu0 0.0
        %2886 = vmatprep.subr.mxu0 0.0
        %2887 = vmatpush1.msra.mxu0 0.0
        %2888 = vmatprep.subr.mxu0 0.0
        %2889 = vmatpush1.msra.mxu0 0.0
        %2890 = vmatprep.subr.mxu0 0.0
        %2891 = vmatpush1.msra.mxu0 0.0
        %2892 = vmatprep.subr.mxu0 0.0
        %2893 = vmatpush1.msra.mxu0 0.0
        %2894 = vmatprep.subr.mxu0 0.0
        %2895 = vmatpush1.msra.mxu0 0.0
        %2896 = vmatprep.subr.mxu0 0.0
        %2897 = vmatpush1.msra.mxu0 0.0
        %2898 = vmatprep.subr.mxu0 0.0
        %2899 = vmatpush1.msra.mxu0 0.0
        %2900 = vmatprep.subr.mxu0 0.0
        %2901 = vmatpush1.msra.mxu0 0.0
        %2902 = vmatprep.subr.mxu0 0.0
        %2903 = vmatpush1.msra.mxu0 0.0
        %2904 = vmatprep.mubr.f32.mxu0 0.0
        %2905 = vmatmul.mubr.f32.gmra.mrb[0].mxu0 %v2838
        %v2906 = vpop.f32.mrb[0].mxu0
        %v2907 = vadd.f32 0.0, %v2906
        %v2908 = vpop.f32.mrb[0].mxu0
        %2909 = vdwg.mxu0
        %v2911 = vsel %vm2367, %v2453, 0
        %2913 = vmatprep.subr.mxu0 0.0
        %2914 = vmatpush1.msra.mxu0 %v2468
        %2915 = vmatprep.subr.mxu0 0.0
        %2916 = vmatpush1.msra.mxu0 %v2469
        %2917 = vmatprep.subr.mxu0 0.0
        %2918 = vmatpush1.msra.mxu0 0.0
        %2919 = vmatprep.subr.mxu0 0.0
        %2920 = vmatpush1.msra.mxu0 0.0
        %2921 = vmatprep.subr.mxu0 0.0
        %2922 = vmatpush1.msra.mxu0 0.0
        %2923 = vmatprep.subr.mxu0 0.0
        %2924 = vmatpush1.msra.mxu0 0.0
        %2925 = vmatprep.subr.mxu0 0.0
        %2926 = vmatpush1.msra.mxu0 0.0
        %2927 = vmatprep.subr.mxu0 0.0
        %2928 = vmatpush1.msra.mxu0 0.0
        %2929 = vmatprep.subr.mxu0 0.0
        %2930 = vmatpush1.msra.mxu0 0.0
        %2931 = vmatprep.subr.mxu0 0.0
        %2932 = vmatpush1.msra.mxu0 0.0
        %2933 = vmatprep.subr.mxu0 0.0
        %2934 = vmatpush1.msra.mxu0 0.0
        %2935 = vmatprep.subr.mxu0 0.0
        %2936 = vmatpush1.msra.mxu0 0.0
        %2937 = vmatprep.subr.mxu0 0.0
        %2938 = vmatpush1.msra.mxu0 0.0
        %2939 = vmatprep.subr.mxu0 0.0
        %2940 = vmatpush1.msra.mxu0 0.0
        %2941 = vmatprep.subr.mxu0 0.0
        %2942 = vmatpush1.msra.mxu0 0.0
        %2943 = vmatprep.subr.mxu0 0.0
        %2944 = vmatpush1.msra.mxu0 0.0
        %2945 = vmatprep.subr.mxu0 0.0
        %2946 = vmatpush1.msra.mxu0 0.0
        %2947 = vmatprep.subr.mxu0 0.0
        %2948 = vmatpush1.msra.mxu0 0.0
        %2949 = vmatprep.subr.mxu0 0.0
        %2950 = vmatpush1.msra.mxu0 0.0
        %2951 = vmatprep.subr.mxu0 0.0
        %2952 = vmatpush1.msra.mxu0 0.0
        %2953 = vmatprep.subr.mxu0 0.0
        %2954 = vmatpush1.msra.mxu0 0.0
        %2955 = vmatprep.subr.mxu0 0.0
        %2956 = vmatpush1.msra.mxu0 0.0
        %2957 = vmatprep.subr.mxu0 0.0
        %2958 = vmatpush1.msra.mxu0 0.0
        %2959 = vmatprep.subr.mxu0 0.0
        %2960 = vmatpush1.msra.mxu0 0.0
        %2961 = vmatprep.subr.mxu0 0.0
        %2962 = vmatpush1.msra.mxu0 0.0
        %2963 = vmatprep.subr.mxu0 0.0
        %2964 = vmatpush1.msra.mxu0 0.0
        %2965 = vmatprep.subr.mxu0 0.0
        %2966 = vmatpush1.msra.mxu0 0.0
        %2967 = vmatprep.subr.mxu0 0.0
        %2968 = vmatpush1.msra.mxu0 0.0
        %2969 = vmatprep.subr.mxu0 0.0
        %2970 = vmatpush1.msra.mxu0 0.0
        %2971 = vmatprep.subr.mxu0 0.0
        %2972 = vmatpush1.msra.mxu0 0.0
        %2973 = vmatprep.subr.mxu0 0.0
        %2974 = vmatpush1.msra.mxu0 0.0
        %2975 = vmatprep.subr.mxu0 0.0
        %2976 = vmatpush1.msra.mxu0 0.0
        %2977 = vmatprep.mubr.f32.mxu0 0.0
        %2978 = vmatmul.mubr.f32.gmra.mrb[0].mxu0 %v2911
        %v2979 = vpop.f32.mrb[0].mxu0
        %v2980 = vadd.f32 0.0, %v2979
        %v2981 = vpop.f32.mrb[0].mxu0
        %2982 = vdwg.mxu0
        %v2984 = vsel %vm2367, %v2455, 0
        %2986 = vmatprep.subr.mxu0 0.0
        %2987 = vmatpush1.msra.mxu0 %v2470
        %2988 = vmatprep.subr.mxu0 0.0
        %2989 = vmatpush1.msra.mxu0 %v2471
        %2990 = vmatprep.subr.mxu0 0.0
        %2991 = vmatpush1.msra.mxu0 0.0
        %2992 = vmatprep.subr.mxu0 0.0
        %2993 = vmatpush1.msra.mxu0 0.0
        %2994 = vmatprep.subr.mxu0 0.0
        %2995 = vmatpush1.msra.mxu0 0.0
        %2996 = vmatprep.subr.mxu0 0.0
        %2997 = vmatpush1.msra.mxu0 0.0
        %2998 = vmatprep.subr.mxu0 0.0
        %2999 = vmatpush1.msra.mxu0 0.0
        %3000 = vmatprep.subr.mxu0 0.0
        %3001 = vmatpush1.msra.mxu0 0.0
        %3002 = vmatprep.subr.mxu0 0.0
        %3003 = vmatpush1.msra.mxu0 0.0
        %3004 = vmatprep.subr.mxu0 0.0
        %3005 = vmatpush1.msra.mxu0 0.0
        %3006 = vmatprep.subr.mxu0 0.0
        %3007 = vmatpush1.msra.mxu0 0.0
        %3008 = vmatprep.subr.mxu0 0.0
        %3009 = vmatpush1.msra.mxu0 0.0
        %3010 = vmatprep.subr.mxu0 0.0
        %3011 = vmatpush1.msra.mxu0 0.0
        %3012 = vmatprep.subr.mxu0 0.0
        %3013 = vmatpush1.msra.mxu0 0.0
        %3014 = vmatprep.subr.mxu0 0.0
        %3015 = vmatpush1.msra.mxu0 0.0
        %3016 = vmatprep.subr.mxu0 0.0
        %3017 = vmatpush1.msra.mxu0 0.0
        %3018 = vmatprep.subr.mxu0 0.0
        %3019 = vmatpush1.msra.mxu0 0.0
        %3020 = vmatprep.subr.mxu0 0.0
        %3021 = vmatpush1.msra.mxu0 0.0
        %3022 = vmatprep.subr.mxu0 0.0
        %3023 = vmatpush1.msra.mxu0 0.0
        %3024 = vmatprep.subr.mxu0 0.0
        %3025 = vmatpush1.msra.mxu0 0.0
        %3026 = vmatprep.subr.mxu0 0.0
        %3027 = vmatpush1.msra.mxu0 0.0
        %3028 = vmatprep.subr.mxu0 0.0
        %3029 = vmatpush1.msra.mxu0 0.0
        %3030 = vmatprep.subr.mxu0 0.0
        %3031 = vmatpush1.msra.mxu0 0.0
        %3032 = vmatprep.subr.mxu0 0.0
        %3033 = vmatpush1.msra.mxu0 0.0
        %3034 = vmatprep.subr.mxu0 0.0
        %3035 = vmatpush1.msra.mxu0 0.0
        %3036 = vmatprep.subr.mxu0 0.0
        %3037 = vmatpush1.msra.mxu0 0.0
        %3038 = vmatprep.subr.mxu0 0.0
        %3039 = vmatpush1.msra.mxu0 0.0
        %3040 = vmatprep.subr.mxu0 0.0
        %3041 = vmatpush1.msra.mxu0 0.0
        %3042 = vmatprep.subr.mxu0 0.0
        %3043 = vmatpush1.msra.mxu0 0.0
        %3044 = vmatprep.subr.mxu0 0.0
        %3045 = vmatpush1.msra.mxu0 0.0
        %3046 = vmatprep.subr.mxu0 0.0
        %3047 = vmatpush1.msra.mxu0 0.0
        %3048 = vmatprep.subr.mxu0 0.0
        %3049 = vmatpush1.msra.mxu0 0.0
        %3050 = vmatprep.mubr.f32.mxu0 0.0
        %3051 = vmatmul.mubr.f32.gmra.mrb[0].mxu0 %v2984
        %v3052 = vpop.f32.mrb[0].mxu0
        %v3053 = vadd.f32 0.0, %v3052
        %v3054 = vpop.f32.mrb[0].mxu0
        %3055 = vdwg.mxu0
        %v3056 = vmul.f32 %v2542, 4.0
        %v3057 = vmul.f32 %v2615, 4.0
        %v3058 = vmul.f32 %v2688, 4.0
        %v3059 = vmul.f32 %v2761, 4.0
        %v3060 = vmul.f32 %v2834, 4.0
        %v3061 = vmul.f32 %v2907, 4.0
        %v3062 = vmul.f32 %v2980, 4.0
        %v3063 = vmul.f32 %v3053, 4.0
        %v3064 = vld [vmem:[%s12] sm:$0xff]
        %v3065 = vld [vmem:[%s12 + $0x8] sm:$0xff]
        %v3066 = vld [vmem:[%s12 + $0x10] sm:$0xff]
        %v3067 = vld [vmem:[%s12 + $0x18] sm:$0xff]
        %v3068 = vld [vmem:[%s13] sm:$0x1]
        %v3070 = vlaneseq
        %v3071 = vshrl.u32 %v3070, 7
        %v3072 = vsub.s32 0, %v3071
        %v3073 = vrot.slane %v3068, %v3072
        %v3076 = vsel %vm707, %v3056, 0
        %v3079 = vsel %vm707, %v3057, 0
        %v3082 = vsel %vm707, %v3058, 0
        %v3085 = vsel %vm707, %v3059, 0
        %v3088 = vsel %vm707, %v3060, 0
        %v3091 = vsel %vm707, %v3061, 0
        %v3094 = vsel %vm707, %v3062, 0
        %v3097 = vsel %vm707, %v3063, 0
        %3099 = vmatprep.subr.mxu0 0.0
        %3100 = vmatpush1.msra.mxu0 %v3064
        %3101 = vmatprep.subr.mxu0 0.0
        %3102 = vmatpush1.msra.mxu0 %v3065
        %3103 = vmatprep.subr.mxu0 0.0
        %3104 = vmatpush1.msra.mxu0 %v3066
        %3105 = vmatprep.subr.mxu0 0.0
        %3106 = vmatpush1.msra.mxu0 %v3067
        %3107 = vmatprep.subr.mxu0 0.0
        %3108 = vmatpush1.msra.mxu0 0.0
        %3109 = vmatprep.subr.mxu0 0.0
        %3110 = vmatpush1.msra.mxu0 0.0
        %3111 = vmatprep.subr.mxu0 0.0
        %3112 = vmatpush1.msra.mxu0 0.0
        %3113 = vmatprep.subr.mxu0 0.0
        %3114 = vmatpush1.msra.mxu0 0.0
        %3115 = vmatprep.subr.mxu0 0.0
        %3116 = vmatpush1.msra.mxu0 0.0
        %3117 = vmatprep.subr.mxu0 0.0
        %3118 = vmatpush1.msra.mxu0 0.0
        %3119 = vmatprep.subr.mxu0 0.0
        %3120 = vmatpush1.msra.mxu0 0.0
        %3121 = vmatprep.subr.mxu0 0.0
        %3122 = vmatpush1.msra.mxu0 0.0
        %3123 = vmatprep.subr.mxu0 0.0
        %3124 = vmatpush1.msra.mxu0 0.0
        %3125 = vmatprep.subr.mxu0 0.0
        %3126 = vmatpush1.msra.mxu0 0.0
        %3127 = vmatprep.subr.mxu0 0.0
        %3128 = vmatpush1.msra.mxu0 0.0
        %3129 = vmatprep.subr.mxu0 0.0
        %3130 = vmatpush1.msra.mxu0 0.0
        %3131 = vmatprep.subr.mxu0 0.0
        %3132 = vmatpush1.msra.mxu0 0.0
        %3133 = vmatprep.subr.mxu0 0.0
        %3134 = vmatpush1.msra.mxu0 0.0
        %3135 = vmatprep.subr.mxu0 0.0
        %3136 = vmatpush1.msra.mxu0 0.0
        %3137 = vmatprep.subr.mxu0 0.0
        %3138 = vmatpush1.msra.mxu0 0.0
        %3139 = vmatprep.subr.mxu0 0.0
        %3140 = vmatpush1.msra.mxu0 0.0
        %3141 = vmatprep.subr.mxu0 0.0
        %3142 = vmatpush1.msra.mxu0 0.0
        %3143 = vmatprep.subr.mxu0 0.0
        %3144 = vmatpush1.msra.mxu0 0.0
        %3145 = vmatprep.subr.mxu0 0.0
        %3146 = vmatpush1.msra.mxu0 0.0
        %3147 = vmatprep.subr.mxu0 0.0
        %3148 = vmatpush1.msra.mxu0 0.0
        %3149 = vmatprep.subr.mxu0 0.0
        %3150 = vmatpush1.msra.mxu0 0.0
        %3151 = vmatprep.subr.mxu0 0.0
        %3152 = vmatpush1.msra.mxu0 0.0
        %3153 = vmatprep.subr.mxu0 0.0
        %3154 = vmatpush1.msra.mxu0 0.0
        %3155 = vmatprep.subr.mxu0 0.0
        %3156 = vmatpush1.msra.mxu0 0.0
        %3157 = vmatprep.subr.mxu0 0.0
        %3158 = vmatpush1.msra.mxu0 0.0
        %3159 = vmatprep.subr.mxu0 0.0
        %3160 = vmatpush1.msra.mxu0 0.0
        %3161 = vmatprep.subr.mxu0 0.0
        %3162 = vmatpush1.msra.mxu0 0.0
        %3163 = vmatprep.mubr.f32.mxu0 0.0
        %3164 = vmatmul.mubr.f32.gmra.mrb[0].mxu0 %v3076
        %v3165 = vpop.f32.mrb[0].mxu0
        %v3166 = vadd.f32 %v3073, %v3165
        %v3167 = vpop.f32.mrb[0].mxu0
        %3168 = vmatprep.mubr.f32.mxu0 0.0
        %3169 = vmatmul.mubr.f32.gmra.mrb[0].mxu0 %v3079
        %v3170 = vpop.f32.mrb[0].mxu0
        %v3171 = vadd.f32 %v3073, %v3170
        %v3172 = vpop.f32.mrb[0].mxu0
        %3173 = vmatprep.mubr.f32.mxu0 0.0
        %3174 = vmatmul.mubr.f32.gmra.mrb[0].mxu0 %v3082
        %v3175 = vpop.f32.mrb[0].mxu0
        %v3176 = vadd.f32 %v3073, %v3175
        %v3177 = vpop.f32.mrb[0].mxu0
        %3178 = vmatprep.mubr.f32.mxu0 0.0
        %3179 = vmatmul.mubr.f32.gmra.mrb[0].mxu0 %v3085
        %v3180 = vpop.f32.mrb[0].mxu0
        %v3181 = vadd.f32 %v3073, %v3180
        %v3182 = vpop.f32.mrb[0].mxu0
        %3183 = vmatprep.mubr.f32.mxu0 0.0
        %3184 = vmatmul.mubr.f32.gmra.mrb[0].mxu0 %v3088
        %v3185 = vpop.f32.mrb[0].mxu0
        %v3186 = vadd.f32 %v3073, %v3185
        %v3187 = vpop.f32.mrb[0].mxu0
        %3188 = vmatprep.mubr.f32.mxu0 0.0
        %3189 = vmatmul.mubr.f32.gmra.mrb[0].mxu0 %v3091
        %v3190 = vpop.f32.mrb[0].mxu0
        %v3191 = vadd.f32 %v3073, %v3190
        %v3192 = vpop.f32.mrb[0].mxu0
        %3193 = vmatprep.mubr.f32.mxu0 0.0
        %3194 = vmatmul.mubr.f32.gmra.mrb[0].mxu0 %v3094
        %v3195 = vpop.f32.mrb[0].mxu0
        %v3196 = vadd.f32 %v3073, %v3195
        %v3197 = vpop.f32.mrb[0].mxu0
        %3198 = vmatprep.mubr.f32.mxu0 0.0
        %3199 = vmatmul.mubr.f32.gmra.mrb[0].mxu0 %v3097
        %v3200 = vpop.f32.mrb[0].mxu0
        %v3201 = vadd.f32 %v3073, %v3200
        %v3202 = vpop.f32.mrb[0].mxu0
        %3203 = vdwg.mxu0
        %v3204 = vadd.f32 %v3166, %v1587
        %v3205 = vadd.f32 %v3171, %v1588
        %v3206 = vadd.f32 %v3176, %v1589
        %v3207 = vadd.f32 %v3181, %v1590
        %v3208 = vadd.f32 %v3186, %v1591
        %v3209 = vadd.f32 %v3191, %v1592
        %v3210 = vadd.f32 %v3196, %v1593
        %v3211 = vadd.f32 %v3201, %v1594
        %v3212 = vmul.f32 %v3204, 0.70710677
        %v3213 = vmul.f32 %v3205, 0.70710677
        %v3214 = vmul.f32 %v3206, 0.70710677
        %v3215 = vmul.f32 %v3207, 0.70710677
        %v3216 = vmul.f32 %v3208, 0.70710677
        %v3217 = vmul.f32 %v3209, 0.70710677
        %v3218 = vmul.f32 %v3210, 0.70710677
        %v3219 = vmul.f32 %v3211, 0.70710677
        %v3220 = vadd.f32 %v3212, %v992
        %v3221 = vadd.f32 %v3213, %v997
        %v3222 = vadd.f32 %v3214, %v1002
        %v3223 = vadd.f32 %v3215, %v1007
        %v3224 = vadd.f32 %v3216, %v1012
        %v3225 = vadd.f32 %v3217, %v1017
        %v3226 = vadd.f32 %v3218, %v1022
        %v3227 = vadd.f32 %v3219, %v1027
        %v3228 = vmul.f32 %v3220, 0.70710677
        %v3229 = vmul.f32 %v3221, 0.70710677
        %v3230 = vmul.f32 %v3222, 0.70710677
        %v3231 = vmul.f32 %v3223, 0.70710677
        %v3232 = vmul.f32 %v3224, 0.70710677
        %v3233 = vmul.f32 %v3225, 0.70710677
        %v3234 = vmul.f32 %v3226, 0.70710677
        %v3235 = vmul.f32 %v3227, 0.70710677
        %v3236 = vld [vmem:[%s14] sm:$0xff]
        %v3237 = vld [vmem:[%s14 + $0x8] sm:$0xff]
        %v3238 = vld [vmem:[%s14 + $0x10] sm:$0xff]
        %v3239 = vld [vmem:[%s14 + $0x18] sm:$0xff]
        %v3240 = vld [vmem:[%s15] sm:$0x1]
        %v3242 = vlaneseq
        %v3243 = vshrl.u32 %v3242, 7
        %v3244 = vsub.s32 0, %v3243
        %v3245 = vrot.slane %v3240, %v3244
        %v3248 = vsel %vm707, %v3228, 0
        %v3251 = vsel %vm707, %v3229, 0
        %v3254 = vsel %vm707, %v3230, 0
        %v3257 = vsel %vm707, %v3231, 0
        %v3260 = vsel %vm707, %v3232, 0
        %v3263 = vsel %vm707, %v3233, 0
        %v3266 = vsel %vm707, %v3234, 0
        %v3269 = vsel %vm707, %v3235, 0
        %3271 = vmatprep.subr.mxu0 0.0
        %3272 = vmatpush1.msra.mxu0 %v3236
        %3273 = vmatprep.subr.mxu0 0.0
        %3274 = vmatpush1.msra.mxu0 %v3237
        %3275 = vmatprep.subr.mxu0 0.0
        %3276 = vmatpush1.msra.mxu0 %v3238
        %3277 = vmatprep.subr.mxu0 0.0
        %3278 = vmatpush1.msra.mxu0 %v3239
        %3279 = vmatprep.subr.mxu0 0.0
        %3280 = vmatpush1.msra.mxu0 0.0
        %3281 = vmatprep.subr.mxu0 0.0
        %3282 = vmatpush1.msra.mxu0 0.0
        %3283 = vmatprep.subr.mxu0 0.0
        %3284 = vmatpush1.msra.mxu0 0.0
        %3285 = vmatprep.subr.mxu0 0.0
        %3286 = vmatpush1.msra.mxu0 0.0
        %3287 = vmatprep.subr.mxu0 0.0
        %3288 = vmatpush1.msra.mxu0 0.0
        %3289 = vmatprep.subr.mxu0 0.0
        %3290 = vmatpush1.msra.mxu0 0.0
        %3291 = vmatprep.subr.mxu0 0.0
        %3292 = vmatpush1.msra.mxu0 0.0
        %3293 = vmatprep.subr.mxu0 0.0
        %3294 = vmatpush1.msra.mxu0 0.0
        %3295 = vmatprep.subr.mxu0 0.0
        %3296 = vmatpush1.msra.mxu0 0.0
        %3297 = vmatprep.subr.mxu0 0.0
        %3298 = vmatpush1.msra.mxu0 0.0
        %3299 = vmatprep.subr.mxu0 0.0
        %3300 = vmatpush1.msra.mxu0 0.0
        %3301 = vmatprep.subr.mxu0 0.0
        %3302 = vmatpush1.msra.mxu0 0.0
        %3303 = vmatprep.subr.mxu0 0.0
        %3304 = vmatpush1.msra.mxu0 0.0
        %3305 = vmatprep.subr.mxu0 0.0
        %3306 = vmatpush1.msra.mxu0 0.0
        %3307 = vmatprep.subr.mxu0 0.0
        %3308 = vmatpush1.msra.mxu0 0.0
        %3309 = vmatprep.subr.mxu0 0.0
        %3310 = vmatpush1.msra.mxu0 0.0
        %3311 = vmatprep.subr.mxu0 0.0
        %3312 = vmatpush1.msra.mxu0 0.0
        %3313 = vmatprep.subr.mxu0 0.0
        %3314 = vmatpush1.msra.mxu0 0.0
        %3315 = vmatprep.subr.mxu0 0.0
        %3316 = vmatpush1.msra.mxu0 0.0
        %3317 = vmatprep.subr.mxu0 0.0
        %3318 = vmatpush1.msra.mxu0 0.0
        %3319 = vmatprep.subr.mxu0 0.0
        %3320 = vmatpush1.msra.mxu0 0.0
        %3321 = vmatprep.subr.mxu0 0.0
        %3322 = vmatpush1.msra.mxu0 0.0
        %3323 = vmatprep.subr.mxu0 0.0
        %3324 = vmatpush1.msra.mxu0 0.0
        %3325 = vmatprep.subr.mxu0 0.0
        %3326 = vmatpush1.msra.mxu0 0.0
        %3327 = vmatprep.subr.mxu0 0.0
        %3328 = vmatpush1.msra.mxu0 0.0
        %3329 = vmatprep.subr.mxu0 0.0
        %3330 = vmatpush1.msra.mxu0 0.0
        %3331 = vmatprep.subr.mxu0 0.0
        %3332 = vmatpush1.msra.mxu0 0.0
        %3333 = vmatprep.subr.mxu0 0.0
        %3334 = vmatpush1.msra.mxu0 0.0
        %3335 = vmatprep.mubr.f32.mxu0 0.0
        %3336 = vmatmul.mubr.f32.gmra.mrb[0].mxu0 %v3248
        %v3337 = vpop.f32.mrb[0].mxu0
        %v3338 = vadd.f32 %v3245, %v3337
        %v3339 = vpop.f32.mrb[0].mxu0
        %3340 = vmatprep.mubr.f32.mxu0 0.0
        %3341 = vmatmul.mubr.f32.gmra.mrb[0].mxu0 %v3251
        %v3342 = vpop.f32.mrb[0].mxu0
        %v3343 = vadd.f32 %v3245, %v3342
        %v3344 = vpop.f32.mrb[0].mxu0
        %3345 = vmatprep.mubr.f32.mxu0 0.0
        %3346 = vmatmul.mubr.f32.gmra.mrb[0].mxu0 %v3254
        %v3347 = vpop.f32.mrb[0].mxu0
        %v3348 = vadd.f32 %v3245, %v3347
        %v3349 = vpop.f32.mrb[0].mxu0
        %3350 = vmatprep.mubr.f32.mxu0 0.0
        %3351 = vmatmul.mubr.f32.gmra.mrb[0].mxu0 %v3257
        %v3352 = vpop.f32.mrb[0].mxu0
        %v3353 = vadd.f32 %v3245, %v3352
        %v3354 = vpop.f32.mrb[0].mxu0
        %3355 = vmatprep.mubr.f32.mxu0 0.0
        %3356 = vmatmul.mubr.f32.gmra.mrb[0].mxu0 %v3260
        %v3357 = vpop.f32.mrb[0].mxu0
        %v3358 = vadd.f32 %v3245, %v3357
        %v3359 = vpop.f32.mrb[0].mxu0
        %3360 = vmatprep.mubr.f32.mxu0 0.0
        %3361 = vmatmul.mubr.f32.gmra.mrb[0].mxu0 %v3263
        %v3362 = vpop.f32.mrb[0].mxu0
        %v3363 = vadd.f32 %v3245, %v3362
        %v3364 = vpop.f32.mrb[0].mxu0
        %3365 = vmatprep.mubr.f32.mxu0 0.0
        %3366 = vmatmul.mubr.f32.gmra.mrb[0].mxu0 %v3266
        %v3367 = vpop.f32.mrb[0].mxu0
        %v3368 = vadd.f32 %v3245, %v3367
        %v3369 = vpop.f32.mrb[0].mxu0
        %3370 = vmatprep.mubr.f32.mxu0 0.0
        %3371 = vmatmul.mubr.f32.gmra.mrb[0].mxu0 %v3269
        %v3372 = vpop.f32.mrb[0].mxu0
        %v3373 = vadd.f32 %v3245, %v3372
        %v3374 = vpop.f32.mrb[0].mxu0
        %3375 = vdwg.mxu0
        %v3376 = vld [vmem:[%s16] sm:$0xff]
        %v3377 = vld [vmem:[%s16 + $0x8] sm:$0xff]
        %v3378 = vld [vmem:[%s17] sm:$0x1]
        %v3380 = vlaneseq
        %v3381 = vshrl.u32 %v3380, 7
        %v3382 = vsub.s32 0, %v3381
        %v3383 = vrot.slane %v3378, %v3382
        %v3386 = vsel %vm2367, %v3338, 0
        %v3389 = vsel %vm2367, %v3343, 0
        %v3392 = vsel %vm2367, %v3348, 0
        %v3395 = vsel %vm2367, %v3353, 0
        %v3398 = vsel %vm2367, %v3358, 0
        %v3401 = vsel %vm2367, %v3363, 0
        %v3404 = vsel %vm2367, %v3368, 0
        %v3407 = vsel %vm2367, %v3373, 0
        %3409 = vmatprep.subr.mxu0 0.0
        %3410 = vmatpush1.msra.mxu0 %v3376
        %3411 = vmatprep.subr.mxu0 0.0
        %3412 = vmatpush1.msra.mxu0 %v3377
        %3413 = vmatprep.subr.mxu0 0.0
        %3414 = vmatpush1.msra.mxu0 0.0
        %3415 = vmatprep.subr.mxu0 0.0
        %3416 = vmatpush1.msra.mxu0 0.0
        %3417 = vmatprep.subr.mxu0 0.0
        %3418 = vmatpush1.msra.mxu0 0.0
        %3419 = vmatprep.subr.mxu0 0.0
        %3420 = vmatpush1.msra.mxu0 0.0
        %3421 = vmatprep.subr.mxu0 0.0
        %3422 = vmatpush1.msra.mxu0 0.0
        %3423 = vmatprep.subr.mxu0 0.0
        %3424 = vmatpush1.msra.mxu0 0.0
        %3425 = vmatprep.subr.mxu0 0.0
        %3426 = vmatpush1.msra.mxu0 0.0
        %3427 = vmatprep.subr.mxu0 0.0
        %3428 = vmatpush1.msra.mxu0 0.0
        %3429 = vmatprep.subr.mxu0 0.0
        %3430 = vmatpush1.msra.mxu0 0.0
        %3431 = vmatprep.subr.mxu0 0.0
        %3432 = vmatpush1.msra.mxu0 0.0
        %3433 = vmatprep.subr.mxu0 0.0
        %3434 = vmatpush1.msra.mxu0 0.0
        %3435 = vmatprep.subr.mxu0 0.0
        %3436 = vmatpush1.msra.mxu0 0.0
        %3437 = vmatprep.subr.mxu0 0.0
        %3438 = vmatpush1.msra.mxu0 0.0
        %3439 = vmatprep.subr.mxu0 0.0
        %3440 = vmatpush1.msra.mxu0 0.0
        %3441 = vmatprep.subr.mxu0 0.0
        %3442 = vmatpush1.msra.mxu0 0.0
        %3443 = vmatprep.subr.mxu0 0.0
        %3444 = vmatpush1.msra.mxu0 0.0
        %3445 = vmatprep.subr.mxu0 0.0
        %3446 = vmatpush1.msra.mxu0 0.0
        %3447 = vmatprep.subr.mxu0 0.0
        %3448 = vmatpush1.msra.mxu0 0.0
        %3449 = vmatprep.subr.mxu0 0.0
        %3450 = vmatpush1.msra.mxu0 0.0
        %3451 = vmatprep.subr.mxu0 0.0
        %3452 = vmatpush1.msra.mxu0 0.0
        %3453 = vmatprep.subr.mxu0 0.0
        %3454 = vmatpush1.msra.mxu0 0.0
        %3455 = vmatprep.subr.mxu0 0.0
        %3456 = vmatpush1.msra.mxu0 0.0
        %3457 = vmatprep.subr.mxu0 0.0
        %3458 = vmatpush1.msra.mxu0 0.0
        %3459 = vmatprep.subr.mxu0 0.0
        %3460 = vmatpush1.msra.mxu0 0.0
        %3461 = vmatprep.subr.mxu0 0.0
        %3462 = vmatpush1.msra.mxu0 0.0
        %3463 = vmatprep.subr.mxu0 0.0
        %3464 = vmatpush1.msra.mxu0 0.0
        %3465 = vmatprep.subr.mxu0 0.0
        %3466 = vmatpush1.msra.mxu0 0.0
        %3467 = vmatprep.subr.mxu0 0.0
        %3468 = vmatpush1.msra.mxu0 0.0
        %3469 = vmatprep.subr.mxu0 0.0
        %3470 = vmatpush1.msra.mxu0 0.0
        %3471 = vmatprep.subr.mxu0 0.0
        %3472 = vmatpush1.msra.mxu0 0.0
        %3473 = vmatprep.mubr.f32.mxu0 0.0
        %3474 = vmatmul.mubr.f32.gmra.mrb[0].mxu0 %v3386
        %v3475 = vpop.f32.mrb[0].mxu0
        %v3476 = vadd.f32 %v3383, %v3475
        %v3477 = vpop.f32.mrb[0].mxu0
        %3478 = vmatprep.mubr.f32.mxu0 0.0
        %3479 = vmatmul.mubr.f32.gmra.mrb[0].mxu0 %v3389
        %v3480 = vpop.f32.mrb[0].mxu0
        %v3481 = vadd.f32 %v3383, %v3480
        %v3482 = vpop.f32.mrb[0].mxu0
        %3483 = vmatprep.mubr.f32.mxu0 0.0
        %3484 = vmatmul.mubr.f32.gmra.mrb[0].mxu0 %v3392
        %v3485 = vpop.f32.mrb[0].mxu0
        %v3486 = vadd.f32 %v3383, %v3485
        %v3487 = vpop.f32.mrb[0].mxu0
        %3488 = vmatprep.mubr.f32.mxu0 0.0
        %3489 = vmatmul.mubr.f32.gmra.mrb[0].mxu0 %v3395
        %v3490 = vpop.f32.mrb[0].mxu0
        %v3491 = vadd.f32 %v3383, %v3490
        %v3492 = vpop.f32.mrb[0].mxu0
        %3493 = vmatprep.mubr.f32.mxu0 0.0
        %3494 = vmatmul.mubr.f32.gmra.mrb[0].mxu0 %v3398
        %v3495 = vpop.f32.mrb[0].mxu0
        %v3496 = vadd.f32 %v3383, %v3495
        %v3497 = vpop.f32.mrb[0].mxu0
        %3498 = vmatprep.mubr.f32.mxu0 0.0
        %3499 = vmatmul.mubr.f32.gmra.mrb[0].mxu0 %v3401
        %v3500 = vpop.f32.mrb[0].mxu0
        %v3501 = vadd.f32 %v3383, %v3500
        %v3502 = vpop.f32.mrb[0].mxu0
        %3503 = vmatprep.mubr.f32.mxu0 0.0
        %3504 = vmatmul.mubr.f32.gmra.mrb[0].mxu0 %v3404
        %v3505 = vpop.f32.mrb[0].mxu0
        %v3506 = vadd.f32 %v3383, %v3505
        %v3507 = vpop.f32.mrb[0].mxu0
        %3508 = vmatprep.mubr.f32.mxu0 0.0
        %3509 = vmatmul.mubr.f32.gmra.mrb[0].mxu0 %v3407
        %v3510 = vpop.f32.mrb[0].mxu0
        %v3511 = vadd.f32 %v3383, %v3510
        %v3512 = vpop.f32.mrb[0].mxu0
        %3513 = vdwg.mxu0
        %3514 = vst [vmem:[%s652] sm:$0xff] %v3476
        %3515 = vst [vmem:[%s652 + $0x8] sm:$0xff] %v3481
        %3516 = vst [vmem:[%s652 + $0x10] sm:$0xff] %v3486
        %3517 = vst [vmem:[%s652 + $0x18] sm:$0xff] %v3491
        %3518 = vst [vmem:[%s652 + $0x20] sm:$0xff] %v3496
        %3519 = vst [vmem:[%s652 + $0x28] sm:$0xff] %v3501
        %3520 = vst [vmem:[%s652 + $0x30] sm:$0xff] %v3506
        %3521 = vst [vmem:[%s652 + $0x38] sm:$0xff] %v3511
        %v3522 = vsel %vm2367, %v2441, 0.0
        %v3523 = vsel %vm2367, %v2443, 0.0
        %v3524 = vsel %vm2367, %v2445, 0.0
        %v3525 = vsel %vm2367, %v2447, 0.0
        %v3526 = vsel %vm2367, %v2449, 0.0
        %v3527 = vsel %vm2367, %v2451, 0.0
        %v3528 = vsel %vm2367, %v2453, 0.0
        %v3529 = vsel %vm2367, %v2455, 0.0
        %3530 = vst [vmem:[%s659] sm:$0xff] %v3522
        %3531 = vst [vmem:[%s659 + $0x8] sm:$0xff] %v3523
        %3532 = vst [vmem:[%s659 + $0x10] sm:$0xff] %v3524
        %3533 = vst [vmem:[%s659 + $0x18] sm:$0xff] %v3525
        %3534 = vst [vmem:[%s659 + $0x20] sm:$0xff] %v3526
        %3535 = vst [vmem:[%s659 + $0x28] sm:$0xff] %v3527
        %3536 = vst [vmem:[%s659 + $0x30] sm:$0xff] %v3528
        %3537 = vst [vmem:[%s659 + $0x38] sm:$0xff] %v3529
        %s3538 = sand.u32 %s443, 1
        %s3539 = scalar_lea.sflag [#allocation3], %s3538
        %s3540 = sand.u32 %s443, 1
        %s3541 = smul.addr %s3540, 64
        %s3542 = scalar_lea.vmem [#allocation2], %s3541
        %s3543 = sand.u32 %s469, 1
        %s3544 = scalar_lea.sflag [#allocation5], %s3543
        %s3545 = sand.u32 %s469, 1
        %s3546 = smul.addr %s3545, 64
        %s3547 = scalar_lea.vmem [#allocation4], %s3546
        // Predicated region
        $region93: #{tpu_custom_call.1} parent=91 // pred_check
          %p3548 = pneg %p453
        $region94: #{tpu_custom_call.1} parent=91 // pred_check_branch
          %3550 = sbr.rel (%p3548) target = $region96
        $region95: #{tpu_custom_call.1} parent=91 // pred_region
          %s3551 = smul.u32 8, %s37
          %s3553 = ssub.s32 1024, 1024
          %3554 = vsyncadd %s3539, %s3553
          %s3555 = smul.addr %s3551, 128
          %s3556 = scalar_lea.hbm %s18, %s3555
          %s3557 = sshll.u32 %s3542, 4
          %s3558 = int_to_ptr.vmem [resolvable:$true] %s3557
          %3563 = dma.vmem_to_hbm [thread:$0]  %s3558, 1024, %s3556, %s3539, 128, 128, 8
        $region96: #{tpu_custom_call.1} parent=91 // pred_fallthru
          _
        // Predicated region
        $region97: #{tpu_custom_call.1} parent=91 // pred_check
          %p3564 = pneg %p479
        $region98: #{tpu_custom_call.1} parent=91 // pred_check_branch
          %3566 = sbr.rel (%p3564) target = $region100
        $region99: #{tpu_custom_call.1} parent=91 // pred_region
          %s3567 = smul.u32 8, %s37
          %s3569 = ssub.s32 1024, 1024
          %3570 = vsyncadd %s3544, %s3569
          %s3571 = smul.addr %s3567, 128
          %s3572 = scalar_lea.hbm %s19, %s3571
          %s3573 = sshll.u32 %s3547, 4
          %s3574 = int_to_ptr.vmem [resolvable:$true] %s3573
          %3579 = dma.vmem_to_hbm [thread:$0]  %s3574, 1024, %s3572, %s3544, 128, 128, 8
        $region100: #{tpu_custom_call.1} parent=91 // pred_fallthru
          _
      $region92: #{tpu_custom_call.1} parent=5 // pred_fallthru
        _
      %p3580 = scmp.le.s32.totalorder 2, %s32
      // Predicated region
      $region101: #{tpu_custom_call.1} parent=5 // pred_check
        %p3581 = pneg %p3580
      $region102: #{tpu_custom_call.1} parent=5 // pred_check_branch
        %3583 = sbr.rel (%p3581) target = $region104
      $region103: #{tpu_custom_call.1} parent=5 // pred_region
        %s3584 = ssub.s32 %s32, 2
        // Predicated region
        $region105: #{tpu_custom_call.1} parent=103 // pred_check
          %p3585 = pneg %p459
        $region106: #{tpu_custom_call.1} parent=103 // pred_check_branch
          %3587 = sbr.rel (%p3585) target = $region108
        $region107: #{tpu_custom_call.1} parent=103 // pred_region
          %s3588 = sand.u32 %s444, 1
          %s3589 = scalar_lea.sflag [#allocation3], %s3588
          %s3590 = sand.u32 %s444, 1
          %s3591 = smul.addr %s3590, 64
          %s3592 = scalar_lea.vmem [#allocation2], %s3591
          %3593 = dma.done %s3589, 1024
        $region108: #{tpu_custom_call.1} parent=103 // pred_fallthru
          _
        // Predicated region
        $region109: #{tpu_custom_call.1} parent=103 // pred_check
          %p3594 = pneg %p485
        $region110: #{tpu_custom_call.1} parent=103 // pred_check_branch
          %3596 = sbr.rel (%p3594) target = $region112
        $region111: #{tpu_custom_call.1} parent=103 // pred_region
          %s3597 = sand.u32 %s470, 1
          %s3598 = scalar_lea.sflag [#allocation5], %s3597
          %s3599 = sand.u32 %s470, 1
          %s3600 = smul.addr %s3599, 64
          %s3601 = scalar_lea.vmem [#allocation4], %s3600
          %3602 = dma.done %s3598, 1024
        $region112: #{tpu_custom_call.1} parent=103 // pred_fallthru
          _
      $region104: #{tpu_custom_call.1} parent=5 // pred_fallthru
        _
    $region6: #{tpu_custom_call.1} parent=1 // loop_footer
      %s36 = sadd.s32 1, %s32
    $region7: #{tpu_custom_call.1} parent=1 // loop_footer_branch
      %31 = sbr.rel target = $region3
    $region8: #{tpu_custom_call.1} parent=1 // loop_exit
      _
    %3603 = vsyncpa [#allocation3], 1
    %s3604 = scalar_lea.sflag [#allocation3], 1
    %3605 = vsyncpa %s3604, 1
    %3606 = vsyncpa [#allocation5], 1
    %s3607 = scalar_lea.sflag [#allocation5], 1
    %3608 = vsyncpa %s3607, 1

</llo_original>
